<compile_context>
chip_gen: v7x
topology: tpu7x:2x2x1
jax: 0.10.0
libtpu: 0.0.40
codegen_flags: <defaults>
</compile_context>

<pallas_src>
import functools

import jax
import jax.numpy as jnp
from jax import lax
from jax.experimental import pallas as pl
from jax.experimental.pallas import tpu as pltpu

BN_EPS = 1e-5
KPAD = 256  # conv1 contraction dim (7*7*3 = 147) zero-padded to a lane-aligned K


# ----------------------------------------------------------------------------
# Fused Pallas kernel: whole truncated network for ONE image (all in VMEM)
# ----------------------------------------------------------------------------
def _fused_stem_layer1_kernel(patches_ref, wconv1_ref, wblk_ref, bias_ref, o_ref,
                              *, h1, w1, h2, w2, c):
  """patches_ref: (1, h1*w1, KPAD)   conv1 im2col patches (zero padded in K)
     wconv1_ref:  (KPAD, c)          conv1 weight, BN scale folded, K zero-padded
     wblk_ref:    (4, 9*c, c)        layer1 conv weights, BN scale folded
     bias_ref:    (5, c)             folded BN biases: [bn1, b0c1, b0c2, b1c1, b1c2]
     o_ref:       (1, h2*w2, c)
  """
  f32 = jnp.float32
  biases = bias_ref[...]                                       # (5, c)

  # ---- conv1 (single big matmul) + folded BN bias + ReLU --------------------
  patches = patches_ref[...].reshape(h1 * w1, KPAD)            # (256, 256)
  y = jnp.dot(patches, wconv1_ref[...], preferred_element_type=f32)
  y = jnp.maximum(y + biases[0:1, :], 0.0)                     # (256, 64)
  y = y.reshape(h1, w1, c)

  # ---- maxpool 3x3 / s2 / p1 ------------------------------------------------
  # Zero padding is exact here because inputs are post-ReLU (>= 0).
  # Stride-2 selection via contiguous slice + reshape (no strided indexing).
  zcol = jnp.zeros((h1, 1, c), f32)
  pw = jnp.concatenate([zcol, y, zcol], axis=1)                # (16, 18, 64)
  wmax = None
  for dj in range(3):
    s = pw[:, dj:dj + 2 * w2, :].reshape(h1, w2, 2, c)[:, :, 0, :]   # (16, 8, 64)
    wmax = s if wmax is None else jnp.maximum(wmax, s)
  zrow = jnp.zeros((1, w2, c), f32)
  ph = jnp.concatenate([zrow, wmax, zrow], axis=0)             # (18, 8, 64)
  pooled = None
  for di in range(3):
    s = ph[di:di + 2 * h2, :, :].reshape(h2, 2, w2, c)[:, 0, :, :]   # (8, 8, 64)
    pooled = s if pooled is None else jnp.maximum(pooled, s)

  # ---- layer1: 2x BasicBlock(64), each conv as one (64,576)@(576,64) matmul --
  w_all = wblk_ref[...]                                        # (4, 576, 64)
  zc = jnp.zeros((h2, 1, c), f32)
  zr = jnp.zeros((1, w2 + 2, c), f32)

  def conv3x3(a, w, b):                 # a: (h2, w2, c) -> (h2*w2, c)
    p = jnp.concatenate([zc, a, zc], axis=1)                   # (8, 10, 64)
    p = jnp.concatenate([zr, p, zr], axis=0)                   # (10, 10, 64)
    cols = [p[i:i + h2, j:j + w2, :].reshape(h2 * w2, c)
            for i in range(3) for j in range(3)]
    m = jnp.concatenate(cols, axis=1)                          # (64, 576)
    return jnp.dot(m, w, preferred_element_type=f32) + b       # (64, 64)

  x = pooled
  for blk in range(2):
    identity = x.reshape(h2 * w2, c)
    h = conv3x3(x, w_all[2 * blk], biases[1 + 2 * blk:2 + 2 * blk, :])
    h = jnp.maximum(h, 0.0)
    h = conv3x3(h.reshape(h2, w2, c), w_all[2 * blk + 1],
                biases[2 + 2 * blk:3 + 2 * blk, :])
    x = jnp.maximum(h + identity, 0.0).reshape(h2, w2, c)      # residual + relu

  o_ref[...] = x.reshape(1, h2 * w2, c)


# ----------------------------------------------------------------------------
# Wrapper
# ----------------------------------------------------------------------------
def _im2col_conv1(x_nhwc, kh=7, kw=7, stride=2, pad=3):
  """Wrapper-side (XLA) im2col for the stride-2 7x7 conv1."""
  n, h, w, cin = x_nhwc.shape
  h1 = (h + 2 * pad - kh) // stride + 1
  w1 = (w + 2 * pad - kw) // stride + 1
  xp = jnp.pad(x_nhwc, ((0, 0), (pad, pad), (pad, pad), (0, 0)))
  slabs = []
  for i in range(kh):
    for j in range(kw):
      slabs.append(xp[:, i:i + stride * (h1 - 1) + 1:stride,
                      j:j + stride * (w1 - 1) + 1:stride, :])
  patches = jnp.concatenate(slabs, axis=-1)            # (n, h1, w1, kh*kw*cin)
  return patches.reshape(n, h1 * w1, kh * kw * cin), h1, w1


@jax.jit
def new_model_forward(x_nchw, params):
  c = 64
  x = jnp.transpose(x_nchw, (0, 2, 3, 1)).astype(jnp.float32)  # NCHW -> NHWC
  n = x.shape[0]

  # conv1 im2col patches, K padded to a lane-aligned 256.
  patches, h1, w1 = _im2col_conv1(x)
  k = patches.shape[-1]                                        # 147
  patches = jnp.pad(patches, ((0, 0), (0, 0), (0, KPAD - k)))

  # Fold inference-mode BN scale into the conv weights; biases kept separate.
  wconv1 = params["conv1_w"].reshape(k, c) * params["bn1_scale"][None, :]
  wconv1 = jnp.pad(wconv1, ((0, KPAD - k), (0, 0)))            # (256, 64)
  wblk, biases = [], [params["bn1_bias"]]
  for b in range(2):
    p = params[f"block{b}"]
    wblk.append(p["conv1_w"].reshape(9 * c, c) * p["bn1_scale"][None, :])
    wblk.append(p["conv2_w"].reshape(9 * c, c) * p["bn2_scale"][None, :])
    biases += [p["bn1_bias"], p["bn2_bias"]]
  wblk = jnp.stack(wblk)                                       # (4, 576, 64)
  biases = jnp.stack(biases)                                   # (5, 64)

  h2 = (h1 + 2 - 3) // 2 + 1
  w2 = (w1 + 2 - 3) // 2 + 1
  assert h1 == 2 * h2 and w1 == 2 * w2, "maxpool reshape trick needs even dims"

  kernel = functools.partial(_fused_stem_layer1_kernel,
                             h1=h1, w1=w1, h2=h2, w2=w2, c=c)
  out = pl.pallas_call(
      kernel,
      out_shape=jax.ShapeDtypeStruct((n, h2 * w2, c), jnp.float32),
      grid=(n,),
      in_specs=[
          pl.BlockSpec((1, h1 * w1, KPAD), lambda b: (b, 0, 0)),
          pl.BlockSpec((KPAD, c), lambda b: (0, 0)),
          pl.BlockSpec((4, 9 * c, c), lambda b: (0, 0, 0)),
          pl.BlockSpec((5, c), lambda b: (0, 0)),
      ],
      out_specs=pl.BlockSpec((1, h2 * w2, c), lambda b: (b, 0, 0)),
      compiler_params=pltpu.CompilerParams(
          dimension_semantics=("parallel",)),
  )(patches, wconv1, wblk, biases)

  out = out.reshape(n, h2, w2, c)
  return jnp.transpose(out, (0, 3, 1, 2))                      # NHWC -> NCHW


# ----------------------------------------------------------------------------
# Parameters (deterministic synthetic init, resnet18 shapes)
# ----------------------------------------------------------------------------
def _bn_fold(key, c):
  k1, k2, k3, k4 = jax.random.split(key, 4)
  gamma = jax.random.uniform(k1, (c,), jnp.float32, 0.5, 1.5)
  beta = 0.1 * jax.random.normal(k2, (c,), jnp.float32)
  mean = 0.1 * jax.random.normal(k3, (c,), jnp.float32)
  var = jax.random.uniform(k4, (c,), jnp.float32, 0.5, 1.5)
  scale = gamma / jnp.sqrt(var + BN_EPS)
  bias = beta - mean * scale
  return scale, bias


def _conv_w(key, kh, kw, cin, cout):
  fan_in = kh * kw * cin
  return jax.random.normal(key, (kh, kw, cin, cout), jnp.float32) * (2.0 / fan_in) ** 0.5


def init_params(key):
  keys = jax.random.split(key, 16)
  params = {"conv1_w": _conv_w(keys[0], 7, 7, 3, 64)}
  params["bn1_scale"], params["bn1_bias"] = _bn_fold(keys[1], 64)
  for b in range(2):  # layer1: two BasicBlocks, 64 channels, stride 1
    base = 2 + 4 * b
    blk = {"conv1_w": _conv_w(keys[base], 3, 3, 64, 64),
           "conv2_w": _conv_w(keys[base + 2], 3, 3, 64, 64)}
    blk["bn1_scale"], blk["bn1_bias"] = _bn_fold(keys[base + 1], 64)
    blk["bn2_scale"], blk["bn2_bias"] = _bn_fold(keys[base + 3], 64)
    params[f"block{b}"] = blk
  return params


# ----------------------------------------------------------------------------
# Pure-JAX reference for correctness checking
# ----------------------------------------------------------------------------
def _ref_conv(x, w, scale, bias, stride, pad, res=None):
  y = lax.conv_general_dilated(
      x, w, (stride, stride), [(pad, pad), (pad, pad)],
      dimension_numbers=("NHWC", "HWIO", "NHWC"),
      precision=lax.Precision.HIGHEST)
  y = y * scale + bias
  if res is not None:
    y = y + res
  return jnp.maximum(y, 0.0)


def reference_forward(x_nchw, params):
  x = jnp.transpose(x_nchw, (0, 2, 3, 1))
  x = _ref_conv(x, params["conv1_w"], params["bn1_scale"], params["bn1_bias"], 2, 3)
  xp = jnp.pad(x, ((0, 0), (1, 1), (1, 1), (0, 0)), constant_values=-jnp.inf)
  x = lax.reduce_window(xp, -jnp.inf, lax.max, (1, 3, 3, 1), (1, 2, 2, 1), "VALID")
  for b in range(2):
    p = params[f"block{b}"]
    identity = x
    y = _ref_conv(x, p["conv1_w"], p["bn1_scale"], p["bn1_bias"], 1, 1)
    x = _ref_conv(y, p["conv2_w"], p["bn2_scale"], p["bn2_bias"], 1, 1, res=identity)
  return jnp.transpose(x, (0, 3, 1, 2))


# ----------------------------------------------------------------------------
if __name__ == "__main__":
  key = jax.random.PRNGKey(0)
  kx, kp = jax.random.split(key)
  x = jax.random.normal(kx, (2, 3, 32, 32), jnp.float32)  # NCHW, like PyTorch
  params = init_params(kp)

  out = jax.block_until_ready(new_model_forward(x, params))
  assert out.shape == (2, 64, 8, 8), out.shape

  ref = jax.block_until_ready(reference_forward(x, params))
  err = jnp.max(jnp.abs(out - ref))
  assert jnp.allclose(out, ref, rtol=2e-2, atol=2e-2), f"max abs err {err}"

  print("KERNEL_OK")
</pallas_src>

<mosaic_0001>
module attributes {stable_mosaic.version = 11 : i64} {
  func.func @_fused_stem_layer1_kernel(%arg0: i32, %arg1: memref<1x256x256xf32, #tpu.memory_space<vmem>>, %arg2: memref<256x64xf32, #tpu.memory_space<vmem>>, %arg3: memref<4x576x64xf32, #tpu.memory_space<vmem>>, %arg4: memref<5x64xf32, #tpu.memory_space<vmem>>, %arg5: memref<1x64x64xf32, #tpu.memory_space<vmem>>) attributes {dimension_semantics = [#tpu.dimension_semantics<parallel>], iteration_bounds = array<i64: 2>, scalar_prefetch = 0 : i64, scratch_operands = 0 : i64, tpu.core_type = #tpu.core_type<tc>, window_params = [{transform_indices = @transform_0, window_bounds = array<i64: 1, 256, 256>}, {pipeline_mode = #tpu.pipeline_mode<synchronous>, transform_indices = @transform_1, window_bounds = array<i64: 256, 64>}, {pipeline_mode = #tpu.pipeline_mode<synchronous>, transform_indices = @transform_2, window_bounds = array<i64: 4, 576, 64>}, {pipeline_mode = #tpu.pipeline_mode<synchronous>, transform_indices = @transform_3, window_bounds = array<i64: 5, 64>}, {transform_indices = @transform_4, window_bounds = array<i64: 1, 64, 64>}]} {
    %c0 = arith.constant 0 : index
    %c0_0 = arith.constant 0 : index
    %0 = vector.load %arg4[%c0, %c0_0] : memref<5x64xf32, #tpu.memory_space<vmem>>, vector<5x64xf32>
    %c0_1 = arith.constant 0 : index
    %c0_2 = arith.constant 0 : index
    %c0_3 = arith.constant 0 : index
    %1 = vector.load %arg1[%c0_1, %c0_2, %c0_3] : memref<1x256x256xf32, #tpu.memory_space<vmem>>, vector<1x256x256xf32>
    %2 = vector.shape_cast %1 : vector<1x256x256xf32> to vector<256x256xf32>
    %c0_4 = arith.constant 0 : index
    %c0_5 = arith.constant 0 : index
    %3 = vector.load %arg2[%c0_4, %c0_5] : memref<256x64xf32, #tpu.memory_space<vmem>>, vector<256x64xf32>
    %cst = arith.constant dense<0.000000e+00> : vector<256x64xf32>
    %4 = tpu.matmul %2, %3, %cst {dimension_numbers = #tpu.dot_dimension_numbers<[1], [0], [0], [1], [0, 0, 1, 1], [], []>} : vector<256x256xf32>, vector<256x64xf32>, vector<256x64xf32> -> vector<256x64xf32>
    %5 = vector.extract_strided_slice %0 {offsets = [0, 0], sizes = [1, 64], strides = [1, 1]} : vector<5x64xf32> to vector<1x64xf32>
    %6 = vector.broadcast %5 : vector<1x64xf32> to vector<256x64xf32>
    %7 = arith.addf %4, %6 : vector<256x64xf32>
    %cst_6 = arith.constant 0.000000e+00 : f32
    %8 = vector.broadcast %cst_6 : f32 to vector<256x64xf32>
    %9 = arith.maximumf %7, %8 : vector<256x64xf32>
    %10 = vector.shape_cast %9 : vector<256x64xf32> to vector<16x16x64xf32>
    %cst_7 = arith.constant 0.000000e+00 : f32
    %11 = vector.broadcast %cst_7 : f32 to vector<16x1x64xf32>
    %12 = tpu.concatenate %11, %10, %11 in 1 : vector<16x1x64xf32>, vector<16x16x64xf32>, vector<16x1x64xf32> -> vector<16x18x64xf32>
    %13 = vector.extract_strided_slice %12 {offsets = [0, 0, 0], sizes = [16, 16, 64], strides = [1, 1, 1]} : vector<16x18x64xf32> to vector<16x16x64xf32>
    %14 = vector.shape_cast %13 : vector<16x16x64xf32> to vector<16x8x2x64xf32>
    %15 = vector.extract_strided_slice %14 {offsets = [0, 0, 0, 0], sizes = [16, 8, 1, 64], strides = [1, 1, 1, 1]} : vector<16x8x2x64xf32> to vector<16x8x1x64xf32>
    %16 = vector.shape_cast %15 : vector<16x8x1x64xf32> to vector<16x8x64xf32>
    %17 = vector.extract_strided_slice %12 {offsets = [0, 1, 0], sizes = [16, 16, 64], strides = [1, 1, 1]} : vector<16x18x64xf32> to vector<16x16x64xf32>
    %18 = vector.shape_cast %17 : vector<16x16x64xf32> to vector<16x8x2x64xf32>
    %19 = vector.extract_strided_slice %18 {offsets = [0, 0, 0, 0], sizes = [16, 8, 1, 64], strides = [1, 1, 1, 1]} : vector<16x8x2x64xf32> to vector<16x8x1x64xf32>
    %20 = vector.shape_cast %19 : vector<16x8x1x64xf32> to vector<16x8x64xf32>
    %21 = arith.maximumf %16, %20 : vector<16x8x64xf32>
    %22 = vector.extract_strided_slice %12 {offsets = [0, 2, 0], sizes = [16, 16, 64], strides = [1, 1, 1]} : vector<16x18x64xf32> to vector<16x16x64xf32>
    %23 = vector.shape_cast %22 : vector<16x16x64xf32> to vector<16x8x2x64xf32>
    %24 = vector.extract_strided_slice %23 {offsets = [0, 0, 0, 0], sizes = [16, 8, 1, 64], strides = [1, 1, 1, 1]} : vector<16x8x2x64xf32> to vector<16x8x1x64xf32>
    %25 = vector.shape_cast %24 : vector<16x8x1x64xf32> to vector<16x8x64xf32>
    %26 = arith.maximumf %21, %25 : vector<16x8x64xf32>
    %cst_8 = arith.constant 0.000000e+00 : f32
    %27 = vector.broadcast %cst_8 : f32 to vector<1x8x64xf32>
    %28 = tpu.concatenate %27, %26, %27 in 0 : vector<1x8x64xf32>, vector<16x8x64xf32>, vector<1x8x64xf32> -> vector<18x8x64xf32>
    %29 = vector.extract_strided_slice %28 {offsets = [0, 0, 0], sizes = [16, 8, 64], strides = [1, 1, 1]} : vector<18x8x64xf32> to vector<16x8x64xf32>
    %30 = vector.shape_cast %29 : vector<16x8x64xf32> to vector<8x2x8x64xf32>
    %31 = vector.extract_strided_slice %30 {offsets = [0, 0, 0, 0], sizes = [8, 1, 8, 64], strides = [1, 1, 1, 1]} : vector<8x2x8x64xf32> to vector<8x1x8x64xf32>
    %32 = vector.shape_cast %31 : vector<8x1x8x64xf32> to vector<8x8x64xf32>
    %33 = vector.extract_strided_slice %28 {offsets = [1, 0, 0], sizes = [16, 8, 64], strides = [1, 1, 1]} : vector<18x8x64xf32> to vector<16x8x64xf32>
    %34 = vector.shape_cast %33 : vector<16x8x64xf32> to vector<8x2x8x64xf32>
    %35 = vector.extract_strided_slice %34 {offsets = [0, 0, 0, 0], sizes = [8, 1, 8, 64], strides = [1, 1, 1, 1]} : vector<8x2x8x64xf32> to vector<8x1x8x64xf32>
    %36 = vector.shape_cast %35 : vector<8x1x8x64xf32> to vector<8x8x64xf32>
    %37 = arith.maximumf %32, %36 : vector<8x8x64xf32>
    %38 = vector.extract_strided_slice %28 {offsets = [2, 0, 0], sizes = [16, 8, 64], strides = [1, 1, 1]} : vector<18x8x64xf32> to vector<16x8x64xf32>
    %39 = vector.shape_cast %38 : vector<16x8x64xf32> to vector<8x2x8x64xf32>
    %40 = vector.extract_strided_slice %39 {offsets = [0, 0, 0, 0], sizes = [8, 1, 8, 64], strides = [1, 1, 1, 1]} : vector<8x2x8x64xf32> to vector<8x1x8x64xf32>
    %41 = vector.shape_cast %40 : vector<8x1x8x64xf32> to vector<8x8x64xf32>
    %42 = arith.maximumf %37, %41 : vector<8x8x64xf32>
    %c0_9 = arith.constant 0 : index
    %c0_10 = arith.constant 0 : index
    %c0_11 = arith.constant 0 : index
    %43 = vector.load %arg3[%c0_9, %c0_10, %c0_11] : memref<4x576x64xf32, #tpu.memory_space<vmem>>, vector<4x576x64xf32>
    %cst_12 = arith.constant 0.000000e+00 : f32
    %44 = vector.broadcast %cst_12 : f32 to vector<8x1x64xf32>
    %cst_13 = arith.constant 0.000000e+00 : f32
    %45 = vector.broadcast %cst_13 : f32 to vector<1x10x64xf32>
    %46 = vector.shape_cast %42 : vector<8x8x64xf32> to vector<64x64xf32>
    %47 = vector.extract_strided_slice %43 {offsets = [0, 0, 0], sizes = [1, 576, 64], strides = [1, 1, 1]} : vector<4x576x64xf32> to vector<1x576x64xf32>
    %48 = vector.shape_cast %47 : vector<1x576x64xf32> to vector<576x64xf32>
    %49 = vector.extract_strided_slice %0 {offsets = [1, 0], sizes = [1, 64], strides = [1, 1]} : vector<5x64xf32> to vector<1x64xf32>
    %50 = tpu.concatenate %44, %42, %44 in 1 : vector<8x1x64xf32>, vector<8x8x64xf32>, vector<8x1x64xf32> -> vector<8x10x64xf32>
    %51 = tpu.concatenate %45, %50, %45 in 0 : vector<1x10x64xf32>, vector<8x10x64xf32>, vector<1x10x64xf32> -> vector<10x10x64xf32>
    %52 = vector.extract_strided_slice %51 {offsets = [0, 0, 0], sizes = [8, 8, 64], strides = [1, 1, 1]} : vector<10x10x64xf32> to vector<8x8x64xf32>
    %53 = vector.shape_cast %52 : vector<8x8x64xf32> to vector<64x64xf32>
    %54 = vector.extract_strided_slice %51 {offsets = [0, 1, 0], sizes = [8, 8, 64], strides = [1, 1, 1]} : vector<10x10x64xf32> to vector<8x8x64xf32>
    %55 = vector.shape_cast %54 : vector<8x8x64xf32> to vector<64x64xf32>
    %56 = vector.extract_strided_slice %51 {offsets = [0, 2, 0], sizes = [8, 8, 64], strides = [1, 1, 1]} : vector<10x10x64xf32> to vector<8x8x64xf32>
    %57 = vector.shape_cast %56 : vector<8x8x64xf32> to vector<64x64xf32>
    %58 = vector.extract_strided_slice %51 {offsets = [1, 0, 0], sizes = [8, 8, 64], strides = [1, 1, 1]} : vector<10x10x64xf32> to vector<8x8x64xf32>
    %59 = vector.shape_cast %58 : vector<8x8x64xf32> to vector<64x64xf32>
    %60 = vector.extract_strided_slice %51 {offsets = [1, 1, 0], sizes = [8, 8, 64], strides = [1, 1, 1]} : vector<10x10x64xf32> to vector<8x8x64xf32>
    %61 = vector.shape_cast %60 : vector<8x8x64xf32> to vector<64x64xf32>
    %62 = vector.extract_strided_slice %51 {offsets = [1, 2, 0], sizes = [8, 8, 64], strides = [1, 1, 1]} : vector<10x10x64xf32> to vector<8x8x64xf32>
    %63 = vector.shape_cast %62 : vector<8x8x64xf32> to vector<64x64xf32>
    %64 = vector.extract_strided_slice %51 {offsets = [2, 0, 0], sizes = [8, 8, 64], strides = [1, 1, 1]} : vector<10x10x64xf32> to vector<8x8x64xf32>
    %65 = vector.shape_cast %64 : vector<8x8x64xf32> to vector<64x64xf32>
    %66 = vector.extract_strided_slice %51 {offsets = [2, 1, 0], sizes = [8, 8, 64], strides = [1, 1, 1]} : vector<10x10x64xf32> to vector<8x8x64xf32>
    %67 = vector.shape_cast %66 : vector<8x8x64xf32> to vector<64x64xf32>
    %68 = vector.extract_strided_slice %51 {offsets = [2, 2, 0], sizes = [8, 8, 64], strides = [1, 1, 1]} : vector<10x10x64xf32> to vector<8x8x64xf32>
    %69 = vector.shape_cast %68 : vector<8x8x64xf32> to vector<64x64xf32>
    %70 = tpu.concatenate %53, %55, %57, %59, %61, %63, %65, %67, %69 in 1 : vector<64x64xf32>, vector<64x64xf32>, vector<64x64xf32>, vector<64x64xf32>, vector<64x64xf32>, vector<64x64xf32>, vector<64x64xf32>, vector<64x64xf32>, vector<64x64xf32> -> vector<64x576xf32>
    %cst_14 = arith.constant dense<0.000000e+00> : vector<64x64xf32>
    %71 = tpu.matmul %70, %48, %cst_14 {dimension_numbers = #tpu.dot_dimension_numbers<[1], [0], [0], [1], [0, 0, 1, 1], [], []>} : vector<64x576xf32>, vector<576x64xf32>, vector<64x64xf32> -> vector<64x64xf32>
    %72 = vector.broadcast %49 : vector<1x64xf32> to vector<64x64xf32>
    %73 = arith.addf %71, %72 : vector<64x64xf32>
    %cst_15 = arith.constant 0.000000e+00 : f32
    %74 = vector.broadcast %cst_15 : f32 to vector<64x64xf32>
    %75 = arith.maximumf %73, %74 : vector<64x64xf32>
    %76 = vector.shape_cast %75 : vector<64x64xf32> to vector<8x8x64xf32>
    %77 = vector.extract_strided_slice %43 {offsets = [1, 0, 0], sizes = [1, 576, 64], strides = [1, 1, 1]} : vector<4x576x64xf32> to vector<1x576x64xf32>
    %78 = vector.shape_cast %77 : vector<1x576x64xf32> to vector<576x64xf32>
    %79 = vector.extract_strided_slice %0 {offsets = [2, 0], sizes = [1, 64], strides = [1, 1]} : vector<5x64xf32> to vector<1x64xf32>
    %80 = tpu.concatenate %44, %76, %44 in 1 : vector<8x1x64xf32>, vector<8x8x64xf32>, vector<8x1x64xf32> -> vector<8x10x64xf32>
    %81 = tpu.concatenate %45, %80, %45 in 0 : vector<1x10x64xf32>, vector<8x10x64xf32>, vector<1x10x64xf32> -> vector<10x10x64xf32>
    %82 = vector.extract_strided_slice %81 {offsets = [0, 0, 0], sizes = [8, 8, 64], strides = [1, 1, 1]} : vector<10x10x64xf32> to vector<8x8x64xf32>
    %83 = vector.shape_cast %82 : vector<8x8x64xf32> to vector<64x64xf32>
    %84 = vector.extract_strided_slice %81 {offsets = [0, 1, 0], sizes = [8, 8, 64], strides = [1, 1, 1]} : vector<10x10x64xf32> to vector<8x8x64xf32>
    %85 = vector.shape_cast %84 : vector<8x8x64xf32> to vector<64x64xf32>
    %86 = vector.extract_strided_slice %81 {offsets = [0, 2, 0], sizes = [8, 8, 64], strides = [1, 1, 1]} : vector<10x10x64xf32> to vector<8x8x64xf32>
    %87 = vector.shape_cast %86 : vector<8x8x64xf32> to vector<64x64xf32>
    %88 = vector.extract_strided_slice %81 {offsets = [1, 0, 0], sizes = [8, 8, 64], strides = [1, 1, 1]} : vector<10x10x64xf32> to vector<8x8x64xf32>
    %89 = vector.shape_cast %88 : vector<8x8x64xf32> to vector<64x64xf32>
    %90 = vector.extract_strided_slice %81 {offsets = [1, 1, 0], sizes = [8, 8, 64], strides = [1, 1, 1]} : vector<10x10x64xf32> to vector<8x8x64xf32>
    %91 = vector.shape_cast %90 : vector<8x8x64xf32> to vector<64x64xf32>
    %92 = vector.extract_strided_slice %81 {offsets = [1, 2, 0], sizes = [8, 8, 64], strides = [1, 1, 1]} : vector<10x10x64xf32> to vector<8x8x64xf32>
    %93 = vector.shape_cast %92 : vector<8x8x64xf32> to vector<64x64xf32>
    %94 = vector.extract_strided_slice %81 {offsets = [2, 0, 0], sizes = [8, 8, 64], strides = [1, 1, 1]} : vector<10x10x64xf32> to vector<8x8x64xf32>
    %95 = vector.shape_cast %94 : vector<8x8x64xf32> to vector<64x64xf32>
    %96 = vector.extract_strided_slice %81 {offsets = [2, 1, 0], sizes = [8, 8, 64], strides = [1, 1, 1]} : vector<10x10x64xf32> to vector<8x8x64xf32>
    %97 = vector.shape_cast %96 : vector<8x8x64xf32> to vector<64x64xf32>
    %98 = vector.extract_strided_slice %81 {offsets = [2, 2, 0], sizes = [8, 8, 64], strides = [1, 1, 1]} : vector<10x10x64xf32> to vector<8x8x64xf32>
    %99 = vector.shape_cast %98 : vector<8x8x64xf32> to vector<64x64xf32>
    %100 = tpu.concatenate %83, %85, %87, %89, %91, %93, %95, %97, %99 in 1 : vector<64x64xf32>, vector<64x64xf32>, vector<64x64xf32>, vector<64x64xf32>, vector<64x64xf32>, vector<64x64xf32>, vector<64x64xf32>, vector<64x64xf32>, vector<64x64xf32> -> vector<64x576xf32>
    %cst_16 = arith.constant dense<0.000000e+00> : vector<64x64xf32>
    %101 = tpu.matmul %100, %78, %cst_16 {dimension_numbers = #tpu.dot_dimension_numbers<[1], [0], [0], [1], [0, 0, 1, 1], [], []>} : vector<64x576xf32>, vector<576x64xf32>, vector<64x64xf32> -> vector<64x64xf32>
    %102 = vector.broadcast %79 : vector<1x64xf32> to vector<64x64xf32>
    %103 = arith.addf %101, %102 : vector<64x64xf32>
    %104 = arith.addf %103, %46 : vector<64x64xf32>
    %cst_17 = arith.constant 0.000000e+00 : f32
    %105 = vector.broadcast %cst_17 : f32 to vector<64x64xf32>
    %106 = arith.maximumf %104, %105 : vector<64x64xf32>
    %107 = vector.shape_cast %106 : vector<64x64xf32> to vector<8x8x64xf32>
    %108 = vector.shape_cast %107 : vector<8x8x64xf32> to vector<64x64xf32>
    %109 = vector.extract_strided_slice %43 {offsets = [2, 0, 0], sizes = [1, 576, 64], strides = [1, 1, 1]} : vector<4x576x64xf32> to vector<1x576x64xf32>
    %110 = vector.shape_cast %109 : vector<1x576x64xf32> to vector<576x64xf32>
    %111 = vector.extract_strided_slice %0 {offsets = [3, 0], sizes = [1, 64], strides = [1, 1]} : vector<5x64xf32> to vector<1x64xf32>
    %112 = tpu.concatenate %44, %107, %44 in 1 : vector<8x1x64xf32>, vector<8x8x64xf32>, vector<8x1x64xf32> -> vector<8x10x64xf32>
    %113 = tpu.concatenate %45, %112, %45 in 0 : vector<1x10x64xf32>, vector<8x10x64xf32>, vector<1x10x64xf32> -> vector<10x10x64xf32>
    %114 = vector.extract_strided_slice %113 {offsets = [0, 0, 0], sizes = [8, 8, 64], strides = [1, 1, 1]} : vector<10x10x64xf32> to vector<8x8x64xf32>
    %115 = vector.shape_cast %114 : vector<8x8x64xf32> to vector<64x64xf32>
    %116 = vector.extract_strided_slice %113 {offsets = [0, 1, 0], sizes = [8, 8, 64], strides = [1, 1, 1]} : vector<10x10x64xf32> to vector<8x8x64xf32>
    %117 = vector.shape_cast %116 : vector<8x8x64xf32> to vector<64x64xf32>
    %118 = vector.extract_strided_slice %113 {offsets = [0, 2, 0], sizes = [8, 8, 64], strides = [1, 1, 1]} : vector<10x10x64xf32> to vector<8x8x64xf32>
    %119 = vector.shape_cast %118 : vector<8x8x64xf32> to vector<64x64xf32>
    %120 = vector.extract_strided_slice %113 {offsets = [1, 0, 0], sizes = [8, 8, 64], strides = [1, 1, 1]} : vector<10x10x64xf32> to vector<8x8x64xf32>
    %121 = vector.shape_cast %120 : vector<8x8x64xf32> to vector<64x64xf32>
    %122 = vector.extract_strided_slice %113 {offsets = [1, 1, 0], sizes = [8, 8, 64], strides = [1, 1, 1]} : vector<10x10x64xf32> to vector<8x8x64xf32>
    %123 = vector.shape_cast %122 : vector<8x8x64xf32> to vector<64x64xf32>
    %124 = vector.extract_strided_slice %113 {offsets = [1, 2, 0], sizes = [8, 8, 64], strides = [1, 1, 1]} : vector<10x10x64xf32> to vector<8x8x64xf32>
    %125 = vector.shape_cast %124 : vector<8x8x64xf32> to vector<64x64xf32>
    %126 = vector.extract_strided_slice %113 {offsets = [2, 0, 0], sizes = [8, 8, 64], strides = [1, 1, 1]} : vector<10x10x64xf32> to vector<8x8x64xf32>
    %127 = vector.shape_cast %126 : vector<8x8x64xf32> to vector<64x64xf32>
    %128 = vector.extract_strided_slice %113 {offsets = [2, 1, 0], sizes = [8, 8, 64], strides = [1, 1, 1]} : vector<10x10x64xf32> to vector<8x8x64xf32>
    %129 = vector.shape_cast %128 : vector<8x8x64xf32> to vector<64x64xf32>
    %130 = vector.extract_strided_slice %113 {offsets = [2, 2, 0], sizes = [8, 8, 64], strides = [1, 1, 1]} : vector<10x10x64xf32> to vector<8x8x64xf32>
    %131 = vector.shape_cast %130 : vector<8x8x64xf32> to vector<64x64xf32>
    %132 = tpu.concatenate %115, %117, %119, %121, %123, %125, %127, %129, %131 in 1 : vector<64x64xf32>, vector<64x64xf32>, vector<64x64xf32>, vector<64x64xf32>, vector<64x64xf32>, vector<64x64xf32>, vector<64x64xf32>, vector<64x64xf32>, vector<64x64xf32> -> vector<64x576xf32>
    %cst_18 = arith.constant dense<0.000000e+00> : vector<64x64xf32>
    %133 = tpu.matmul %132, %110, %cst_18 {dimension_numbers = #tpu.dot_dimension_numbers<[1], [0], [0], [1], [0, 0, 1, 1], [], []>} : vector<64x576xf32>, vector<576x64xf32>, vector<64x64xf32> -> vector<64x64xf32>
    %134 = vector.broadcast %111 : vector<1x64xf32> to vector<64x64xf32>
    %135 = arith.addf %133, %134 : vector<64x64xf32>
    %cst_19 = arith.constant 0.000000e+00 : f32
    %136 = vector.broadcast %cst_19 : f32 to vector<64x64xf32>
    %137 = arith.maximumf %135, %136 : vector<64x64xf32>
    %138 = vector.shape_cast %137 : vector<64x64xf32> to vector<8x8x64xf32>
    %139 = vector.extract_strided_slice %43 {offsets = [3, 0, 0], sizes = [1, 576, 64], strides = [1, 1, 1]} : vector<4x576x64xf32> to vector<1x576x64xf32>
    %140 = vector.shape_cast %139 : vector<1x576x64xf32> to vector<576x64xf32>
    %141 = vector.extract_strided_slice %0 {offsets = [4, 0], sizes = [1, 64], strides = [1, 1]} : vector<5x64xf32> to vector<1x64xf32>
    %142 = tpu.concatenate %44, %138, %44 in 1 : vector<8x1x64xf32>, vector<8x8x64xf32>, vector<8x1x64xf32> -> vector<8x10x64xf32>
    %143 = tpu.concatenate %45, %142, %45 in 0 : vector<1x10x64xf32>, vector<8x10x64xf32>, vector<1x10x64xf32> -> vector<10x10x64xf32>
    %144 = vector.extract_strided_slice %143 {offsets = [0, 0, 0], sizes = [8, 8, 64], strides = [1, 1, 1]} : vector<10x10x64xf32> to vector<8x8x64xf32>
    %145 = vector.shape_cast %144 : vector<8x8x64xf32> to vector<64x64xf32>
    %146 = vector.extract_strided_slice %143 {offsets = [0, 1, 0], sizes = [8, 8, 64], strides = [1, 1, 1]} : vector<10x10x64xf32> to vector<8x8x64xf32>
    %147 = vector.shape_cast %146 : vector<8x8x64xf32> to vector<64x64xf32>
    %148 = vector.extract_strided_slice %143 {offsets = [0, 2, 0], sizes = [8, 8, 64], strides = [1, 1, 1]} : vector<10x10x64xf32> to vector<8x8x64xf32>
    %149 = vector.shape_cast %148 : vector<8x8x64xf32> to vector<64x64xf32>
    %150 = vector.extract_strided_slice %143 {offsets = [1, 0, 0], sizes = [8, 8, 64], strides = [1, 1, 1]} : vector<10x10x64xf32> to vector<8x8x64xf32>
    %151 = vector.shape_cast %150 : vector<8x8x64xf32> to vector<64x64xf32>
    %152 = vector.extract_strided_slice %143 {offsets = [1, 1, 0], sizes = [8, 8, 64], strides = [1, 1, 1]} : vector<10x10x64xf32> to vector<8x8x64xf32>
    %153 = vector.shape_cast %152 : vector<8x8x64xf32> to vector<64x64xf32>
    %154 = vector.extract_strided_slice %143 {offsets = [1, 2, 0], sizes = [8, 8, 64], strides = [1, 1, 1]} : vector<10x10x64xf32> to vector<8x8x64xf32>
    %155 = vector.shape_cast %154 : vector<8x8x64xf32> to vector<64x64xf32>
    %156 = vector.extract_strided_slice %143 {offsets = [2, 0, 0], sizes = [8, 8, 64], strides = [1, 1, 1]} : vector<10x10x64xf32> to vector<8x8x64xf32>
    %157 = vector.shape_cast %156 : vector<8x8x64xf32> to vector<64x64xf32>
    %158 = vector.extract_strided_slice %143 {offsets = [2, 1, 0], sizes = [8, 8, 64], strides = [1, 1, 1]} : vector<10x10x64xf32> to vector<8x8x64xf32>
    %159 = vector.shape_cast %158 : vector<8x8x64xf32> to vector<64x64xf32>
    %160 = vector.extract_strided_slice %143 {offsets = [2, 2, 0], sizes = [8, 8, 64], strides = [1, 1, 1]} : vector<10x10x64xf32> to vector<8x8x64xf32>
    %161 = vector.shape_cast %160 : vector<8x8x64xf32> to vector<64x64xf32>
    %162 = tpu.concatenate %145, %147, %149, %151, %153, %155, %157, %159, %161 in 1 : vector<64x64xf32>, vector<64x64xf32>, vector<64x64xf32>, vector<64x64xf32>, vector<64x64xf32>, vector<64x64xf32>, vector<64x64xf32>, vector<64x64xf32>, vector<64x64xf32> -> vector<64x576xf32>
    %cst_20 = arith.constant dense<0.000000e+00> : vector<64x64xf32>
    %163 = tpu.matmul %162, %140, %cst_20 {dimension_numbers = #tpu.dot_dimension_numbers<[1], [0], [0], [1], [0, 0, 1, 1], [], []>} : vector<64x576xf32>, vector<576x64xf32>, vector<64x64xf32> -> vector<64x64xf32>
    %164 = vector.broadcast %141 : vector<1x64xf32> to vector<64x64xf32>
    %165 = arith.addf %163, %164 : vector<64x64xf32>
    %166 = arith.addf %165, %108 : vector<64x64xf32>
    %cst_21 = arith.constant 0.000000e+00 : f32
    %167 = vector.broadcast %cst_21 : f32 to vector<64x64xf32>
    %168 = arith.maximumf %166, %167 : vector<64x64xf32>
    %169 = vector.shape_cast %168 : vector<64x64xf32> to vector<8x8x64xf32>
    %170 = vector.shape_cast %169 : vector<8x8x64xf32> to vector<1x64x64xf32>
    %c0_22 = arith.constant 0 : index
    %c0_23 = arith.constant 0 : index
    %c0_24 = arith.constant 0 : index
    %171 = vector.load %arg5[%c0_22, %c0_23, %c0_24] : memref<1x64x64xf32, #tpu.memory_space<vmem>>, vector<1x64x64xf32>
    tpu.vector_store %arg5[%c0_22, %c0_23, %c0_24], %170 {strides = array<i32>} : memref<1x64x64xf32, #tpu.memory_space<vmem>>, vector<1x64x64xf32>,
    return
  }
  func.func @transform_0(%arg0: i32) -> (i32, i32, i32) {
    %c0_i32 = arith.constant 0 : i32
    %c0_i32_0 = arith.constant 0 : i32
    %c0_i32_1 = arith.constant 0 : i32
    return %arg0, %c0_i32, %c0_i32_0 : i32, i32, i32
  }
  func.func @transform_1(%arg0: i32) -> (i32, i32) {
    %c0_i32 = arith.constant 0 : i32
    %c0_i32_0 = arith.constant 0 : i32
    %c0_i32_1 = arith.constant 0 : i32
    return %c0_i32, %c0_i32_0 : i32, i32
  }
  func.func @transform_2(%arg0: i32) -> (i32, i32, i32) {
    %c0_i32 = arith.constant 0 : i32
    %c0_i32_0 = arith.constant 0 : i32
    %c0_i32_1 = arith.constant 0 : i32
    %c0_i32_2 = arith.constant 0 : i32
    return %c0_i32, %c0_i32_0, %c0_i32_1 : i32, i32, i32
  }
  func.func @transform_3(%arg0: i32) -> (i32, i32) {
    %c0_i32 = arith.constant 0 : i32
    %c0_i32_0 = arith.constant 0 : i32
    %c0_i32_1 = arith.constant 0 : i32
    return %c0_i32, %c0_i32_0 : i32, i32
  }
  func.func @transform_4(%arg0: i32) -> (i32, i32, i32) {
    %c0_i32 = arith.constant 0 : i32
    %c0_i32_0 = arith.constant 0 : i32
    %c0_i32_1 = arith.constant 0 : i32
    return %arg0, %c0_i32, %c0_i32_0 : i32, i32, i32
  }
}

</mosaic_0001>

<llo_original>
// kernel: new_model_forward.1
$region0: #{new_model_forward.1}
  #allocation0 [shape = 'u32[]', space=smem, size = 0x4, offset = 0x4, fixed_abs, tag = 'smem constant byte address 0x4 - core index']
  #allocation1 [shape = 'u32[144,128]{1,0:T(1,128)}', space=vmem, size = 0x12000, scoped, tag = 'internal scratch']
  %s0 = inlined_call_operand.vmem [shape: f32[2,256,256], index: 0, kind: input, shape index: {}]
  %s1 = inlined_call_operand.vmem [shape: f32[256,64], index: 1, kind: input, shape index: {}]
  %s2 = inlined_call_operand.vmem [shape: f32[4,576,64], index: 2, kind: input, shape index: {}]
  %s3 = inlined_call_operand.vmem [shape: f32[5,64], index: 3, kind: input, shape index: {}]
  %s4 = inlined_call_operand.hbm [shape: f32[2,64,64], index: 4, kind: output, shape index: {}]
  %s5 = sld [smem:[#allocation0]]
  $region49: #{new_model_forward.1} parent=0
    _
  %s7 = ssub.s32 1, %s5
  %s8 = scalar_select 0, %s7, %s5
  $region1: #{new_model_forward.1} parent=0
    #allocation2 [shape = 'u8[65536]{0}', space=vmem, size = 0x10000, scoped, tag = 'output window, operand 0']
    #allocation3 [shape = 's32[2]{0}', space=sflag, size = 0x8, scoped, tag = 'scoped memory for new_model_forward.1']
    %9 = vsyncpa [#allocation3], 0
    %s10 = scalar_lea.sflag [#allocation3], 1
    %11 = vsyncpa %s10, 0
    loop: start=0, step=1, limit=4
    $region2: #{new_model_forward.1} parent=1 // loop_pre_header
      _
    $region3: #{new_model_forward.1} parent=1 // loop_header
      %s13 = sphi 0, %s17
      %p14 = scmp.ge.s32.totalorder %s13, 4
      %s23 = sphi 0, %s25
      %s26 = sphi 0, %s23
      %s27 = sphi 0, %s26
      %s43 = sphi 0, %s27
      %s47 = sphi 0, %s47
      %s49 = sphi 0, %s47
      %s50 = sphi 0, %s49
      %s64 = sphi 0, %s50
      %s68 = sphi 0, %s68
      %s70 = sphi 0, %s68
      %s71 = sphi 0, %s70
      %s85 = sphi 0, %s71
      %s89 = sphi 0, %s89
      %s91 = sphi 0, %s89
      %s92 = sphi 0, %s91
      %s106 = sphi 0, %s92
      %s112 = sphi 0, %s114
      %s115 = sphi 0, %s112
      %s116 = sphi 0, %s115
      %s132 = sphi 0, %s116
    $region4: #{new_model_forward.1} parent=1 // loop_header_branch
      %16 = sbr.rel (%p14) target = $region8
    $region5: #{new_model_forward.1} parent=1 // loop_body
      %s18 = ssub.s32 %s13, 1
      %s19 = ssub.s32 %s13, 2
      %s20 = sadd.s32 %s13, 1
      %s21 = ssub.s32 %s13, %s20
      %p22 = scmp.eq.s32.totalorder %s21, 0
      %s24 = sadd.s32 %s23, 1
      %s25 = scalar_select %p22, %s23, %s24
      %p28 = pneg %p22
      %p29 = scmp.eq.s32.totalorder %s13, 1
      %p30 = por %p28, %p29
      %p31 = scmp.ne.s32.totalorder %s23, %s26
      %p32 = scmp.eq.s32.totalorder %s13, 0
      %p33 = por %p31, %p32
      %p34 = scmp.ne.s32.totalorder %s23, %s26
      %p35 = scmp.eq.s32.totalorder %s18, 1
      %p36 = por %p34, %p35
      %p37 = scmp.ne.s32.totalorder %s26, %s27
      %p38 = scmp.eq.s32.totalorder %s18, 0
      %p39 = por %p37, %p38
      %p40 = scmp.ne.s32.totalorder %s26, %s27
      %p41 = scmp.eq.s32.totalorder %s19, 1
      %p42 = por %p40, %p41
      %p44 = scmp.ne.s32.totalorder %s27, %s43
      %p45 = scmp.eq.s32.totalorder %s19, 0
      %p46 = por %p44, %p45
      %s48 = sadd.s32 %s47, 1
      %p51 = scmp.eq.s32.totalorder %s13, 1
      %p52 = scmp.ne.s32.totalorder %s47, %s49
      %p53 = scmp.eq.s32.totalorder %s13, 0
      %p54 = por %p52, %p53
      %p55 = scmp.ne.s32.totalorder %s47, %s49
      %p56 = scmp.eq.s32.totalorder %s18, 1
      %p57 = por %p55, %p56
      %p58 = scmp.ne.s32.totalorder %s49, %s50
      %p59 = scmp.eq.s32.totalorder %s18, 0
      %p60 = por %p58, %p59
      %p61 = scmp.ne.s32.totalorder %s49, %s50
      %p62 = scmp.eq.s32.totalorder %s19, 1
      %p63 = por %p61, %p62
      %p65 = scmp.ne.s32.totalorder %s50, %s64
      %p66 = scmp.eq.s32.totalorder %s19, 0
      %p67 = por %p65, %p66
      %s69 = sadd.s32 %s68, 1
      %p72 = scmp.eq.s32.totalorder %s13, 1
      %p73 = scmp.ne.s32.totalorder %s68, %s70
      %p74 = scmp.eq.s32.totalorder %s13, 0
      %p75 = por %p73, %p74
      %p76 = scmp.ne.s32.totalorder %s68, %s70
      %p77 = scmp.eq.s32.totalorder %s18, 1
      %p78 = por %p76, %p77
      %p79 = scmp.ne.s32.totalorder %s70, %s71
      %p80 = scmp.eq.s32.totalorder %s18, 0
      %p81 = por %p79, %p80
      %p82 = scmp.ne.s32.totalorder %s70, %s71
      %p83 = scmp.eq.s32.totalorder %s19, 1
      %p84 = por %p82, %p83
      %p86 = scmp.ne.s32.totalorder %s71, %s85
      %p87 = scmp.eq.s32.totalorder %s19, 0
      %p88 = por %p86, %p87
      %s90 = sadd.s32 %s89, 1
      %p93 = scmp.eq.s32.totalorder %s13, 1
      %p94 = scmp.ne.s32.totalorder %s89, %s91
      %p95 = scmp.eq.s32.totalorder %s13, 0
      %p96 = por %p94, %p95
      %p97 = scmp.ne.s32.totalorder %s89, %s91
      %p98 = scmp.eq.s32.totalorder %s18, 1
      %p99 = por %p97, %p98
      %p100 = scmp.ne.s32.totalorder %s91, %s92
      %p101 = scmp.eq.s32.totalorder %s18, 0
      %p102 = por %p100, %p101
      %p103 = scmp.ne.s32.totalorder %s91, %s92
      %p104 = scmp.eq.s32.totalorder %s19, 1
      %p105 = por %p103, %p104
      %p107 = scmp.ne.s32.totalorder %s92, %s106
      %p108 = scmp.eq.s32.totalorder %s19, 0
      %p109 = por %p107, %p108
      %s110 = ssub.s32 %s13, %s20
      %p111 = scmp.eq.s32.totalorder %s110, 0
      %s113 = sadd.s32 %s112, 1
      %s114 = scalar_select %p111, %s112, %s113
      %p117 = pneg %p111
      %p118 = scmp.eq.s32.totalorder %s13, 1
      %p119 = por %p117, %p118
      %p120 = scmp.ne.s32.totalorder %s112, %s115
      %p121 = scmp.eq.s32.totalorder %s13, 0
      %p122 = por %p120, %p121
      %p123 = scmp.ne.s32.totalorder %s112, %s115
      %p124 = scmp.eq.s32.totalorder %s18, 1
      %p125 = por %p123, %p124
      %p126 = scmp.ne.s32.totalorder %s115, %s116
      %p127 = scmp.eq.s32.totalorder %s18, 0
      %p128 = por %p126, %p127
      %p129 = scmp.ne.s32.totalorder %s115, %s116
      %p130 = scmp.eq.s32.totalorder %s19, 1
      %p131 = por %p129, %p130
      %p133 = scmp.ne.s32.totalorder %s116, %s132
      %p134 = scmp.eq.s32.totalorder %s19, 0
      %p135 = por %p133, %p134
      %p136 = scmp.le.s32.totalorder 1, %s13
      %p137 = scmp.lt.s32.totalorder %s13, 3
      %p138 = pnand %p136, %p137
      %p139 = pneg %p138
      // Predicated region
      $region9: #{new_model_forward.1} parent=5 // pred_check
        _
      $region10: #{new_model_forward.1} parent=5 // pred_check_branch
        %141 = sbr.rel (%p138) target = $region12
      $region11: #{new_model_forward.1} parent=5 // pred_region
        %s142 = ssub.s32 %s13, 1
        // Predicated region
        $region13: #{new_model_forward.1} parent=11 // pred_check
          %p143 = pneg %p60
        $region14: #{new_model_forward.1} parent=11 // pred_check_branch
          %145 = sbr.rel (%p143) target = $region16
        $region15: #{new_model_forward.1} parent=11 // pred_region
          _
        $region16: #{new_model_forward.1} parent=11 // pred_fallthru
          _
        // Predicated region
        $region17: #{new_model_forward.1} parent=11 // pred_check
          %p146 = pneg %p81
        $region18: #{new_model_forward.1} parent=11 // pred_check_branch
          %148 = sbr.rel (%p146) target = $region20
        $region19: #{new_model_forward.1} parent=11 // pred_region
          _
        $region20: #{new_model_forward.1} parent=11 // pred_fallthru
          _
        // Predicated region
        $region21: #{new_model_forward.1} parent=11 // pred_check
          %p149 = pneg %p102
        $region22: #{new_model_forward.1} parent=11 // pred_check_branch
          %151 = sbr.rel (%p149) target = $region24
        $region23: #{new_model_forward.1} parent=11 // pred_region
          _
        $region24: #{new_model_forward.1} parent=11 // pred_fallthru
          _
      $region12: #{new_model_forward.1} parent=5 // pred_fallthru
        _
      %p152 = scmp.lt.s32.totalorder %s13, 2
      // Predicated region
      $region25: #{new_model_forward.1} parent=5 // pred_check
        %p153 = pneg %p152
      $region26: #{new_model_forward.1} parent=5 // pred_check_branch
        %155 = sbr.rel (%p153) target = $region28
      $region27: #{new_model_forward.1} parent=5 // pred_region
        // Predicated region
        $region29: #{new_model_forward.1} parent=27 // pred_check
          %p156 = pneg %p33
        $region30: #{new_model_forward.1} parent=27 // pred_check_branch
          %158 = sbr.rel (%p156) target = $region32
        $region31: #{new_model_forward.1} parent=27 // pred_region
          %p159 = scmp.lt.s32.totalorder %s13, 1
          %s160 = scalar_select %p159, %s13, 1
          %s161 = smul.addr %s160, 64
          %s162 = smul.addr %s161, 8
          %s163 = scalar_lea.vmem %s0, %s162
        $region32: #{new_model_forward.1} parent=27 // pred_fallthru
          _
      $region28: #{new_model_forward.1} parent=5 // pred_fallthru
        _
      %p164 = scmp.le.s32.totalorder 1, %s13
      %p165 = scmp.lt.s32.totalorder %s13, 3
      %p166 = pnand %p164, %p165
      %p167 = pneg %p166
      // Predicated region
      $region33: #{new_model_forward.1} parent=5 // pred_check
        _
      $region34: #{new_model_forward.1} parent=5 // pred_check_branch
        %169 = sbr.rel (%p166) target = $region36
      $region35: #{new_model_forward.1} parent=5 // pred_region
        %s170 = ssub.s32 %s13, 1
        %p171 = scmp.lt.s32.totalorder %s18, 1
        %s172 = scalar_select %p171, %s18, 1
        %s173 = smul.addr %s172, 64
        %s174 = smul.addr %s173, 8
        %s175 = scalar_lea.vmem %s0, %s174
        %p176 = pneg %p39
        %p177 = pneg %p36
        %p178 = pneg %p60
        %p179 = pneg %p57
        %p180 = pneg %p81
        %p181 = pneg %p78
        %p182 = pneg %p102
        %p183 = pneg %p99
        %p184 = pneg %p128
        %p185 = pneg %p125
        %s186 = sand.u32 %s115, 1
        %s187 = scalar_lea.sflag [#allocation3], %s186
        %s188 = sand.u32 %s115, 1
        %s189 = smul.addr %s188, 64
        %s190 = scalar_lea.vmem [#allocation2], %s189
        %p191 = scmp.lt.s32.totalorder %s18, 1
        %s192 = scalar_select %p191, %s18, 1
        %s193 = smul.addr %s192, 64
        %s194 = smul.addr %s193, 8
        %s195 = scalar_lea.vmem %s0, %s194
        %v196 = vld [vmem:[%s3] sm:$0x1f]
        %v197 = vld [vmem:[%s195] sm:$0xff]
        %v198 = vld [vmem:[%s195 + $0x8] sm:$0xff]
        %v199 = vld [vmem:[%s195 + $0x10] sm:$0xff]
        %v200 = vld [vmem:[%s195 + $0x18] sm:$0xff]
        %v201 = vld [vmem:[%s195 + $0x20] sm:$0xff]
        %v202 = vld [vmem:[%s195 + $0x28] sm:$0xff]
        %v203 = vld [vmem:[%s195 + $0x30] sm:$0xff]
        %v204 = vld [vmem:[%s195 + $0x38] sm:$0xff]
        %v205 = vld [vmem:[%s195 + $0x40] sm:$0xff]
        %v206 = vld [vmem:[%s195 + $0x48] sm:$0xff]
        %v207 = vld [vmem:[%s195 + $0x50] sm:$0xff]
        %v208 = vld [vmem:[%s195 + $0x58] sm:$0xff]
        %v209 = vld [vmem:[%s195 + $0x60] sm:$0xff]
        %v210 = vld [vmem:[%s195 + $0x68] sm:$0xff]
        %v211 = vld [vmem:[%s195 + $0x70] sm:$0xff]
        %v212 = vld [vmem:[%s195 + $0x78] sm:$0xff]
        %v213 = vld [vmem:[%s195 + $0x80] sm:$0xff]
        %v214 = vld [vmem:[%s195 + $0x88] sm:$0xff]
        %v215 = vld [vmem:[%s195 + $0x90] sm:$0xff]
        %v216 = vld [vmem:[%s195 + $0x98] sm:$0xff]
        %v217 = vld [vmem:[%s195 + $0xa0] sm:$0xff]
        %v218 = vld [vmem:[%s195 + $0xa8] sm:$0xff]
        %v219 = vld [vmem:[%s195 + $0xb0] sm:$0xff]
        %v220 = vld [vmem:[%s195 + $0xb8] sm:$0xff]
        %v221 = vld [vmem:[%s195 + $0xc0] sm:$0xff]
        %v222 = vld [vmem:[%s195 + $0xc8] sm:$0xff]
        %v223 = vld [vmem:[%s195 + $0xd0] sm:$0xff]
        %v224 = vld [vmem:[%s195 + $0xd8] sm:$0xff]
        %v225 = vld [vmem:[%s195 + $0xe0] sm:$0xff]
        %v226 = vld [vmem:[%s195 + $0xe8] sm:$0xff]
        %v227 = vld [vmem:[%s195 + $0xf0] sm:$0xff]
        %v228 = vld [vmem:[%s195 + $0xf8] sm:$0xff]
        %v229 = vld [vmem:[%s195 + $0x100] sm:$0xff]
        %v230 = vld [vmem:[%s195 + $0x108] sm:$0xff]
        %v231 = vld [vmem:[%s195 + $0x110] sm:$0xff]
        %v232 = vld [vmem:[%s195 + $0x118] sm:$0xff]
        %v233 = vld [vmem:[%s195 + $0x120] sm:$0xff]
        %v234 = vld [vmem:[%s195 + $0x128] sm:$0xff]
        %v235 = vld [vmem:[%s195 + $0x130] sm:$0xff]
        %v236 = vld [vmem:[%s195 + $0x138] sm:$0xff]
        %v237 = vld [vmem:[%s195 + $0x140] sm:$0xff]
        %v238 = vld [vmem:[%s195 + $0x148] sm:$0xff]
        %v239 = vld [vmem:[%s195 + $0x150] sm:$0xff]
        %v240 = vld [vmem:[%s195 + $0x158] sm:$0xff]
        %v241 = vld [vmem:[%s195 + $0x160] sm:$0xff]
        %v242 = vld [vmem:[%s195 + $0x168] sm:$0xff]
        %v243 = vld [vmem:[%s195 + $0x170] sm:$0xff]
        %v244 = vld [vmem:[%s195 + $0x178] sm:$0xff]
        %v245 = vld [vmem:[%s195 + $0x180] sm:$0xff]
        %v246 = vld [vmem:[%s195 + $0x188] sm:$0xff]
        %v247 = vld [vmem:[%s195 + $0x190] sm:$0xff]
        %v248 = vld [vmem:[%s195 + $0x198] sm:$0xff]
        %v249 = vld [vmem:[%s195 + $0x1a0] sm:$0xff]
        %v250 = vld [vmem:[%s195 + $0x1a8] sm:$0xff]
        %v251 = vld [vmem:[%s195 + $0x1b0] sm:$0xff]
        %v252 = vld [vmem:[%s195 + $0x1b8] sm:$0xff]
        %v253 = vld [vmem:[%s195 + $0x1c0] sm:$0xff]
        %v254 = vld [vmem:[%s195 + $0x1c8] sm:$0xff]
        %v255 = vld [vmem:[%s195 + $0x1d0] sm:$0xff]
        %v256 = vld [vmem:[%s195 + $0x1d8] sm:$0xff]
        %v257 = vld [vmem:[%s195 + $0x1e0] sm:$0xff]
        %v258 = vld [vmem:[%s195 + $0x1e8] sm:$0xff]
        %v259 = vld [vmem:[%s195 + $0x1f0] sm:$0xff]
        %v260 = vld [vmem:[%s195 + $0x1f8] sm:$0xff]
        %v261 = vld [vmem:[%s1] sm:$0xff]
        %v262 = vld [vmem:[%s1 + $0x8] sm:$0xff]
        %v263 = vld [vmem:[%s1 + $0x10] sm:$0xff]
        %v264 = vld [vmem:[%s1 + $0x18] sm:$0xff]
        %v265 = vld [vmem:[%s1 + $0x20] sm:$0xff]
        %v266 = vld [vmem:[%s1 + $0x28] sm:$0xff]
        %v267 = vld [vmem:[%s1 + $0x30] sm:$0xff]
        %v268 = vld [vmem:[%s1 + $0x38] sm:$0xff]
        %v269 = vld [vmem:[%s1 + $0x40] sm:$0xff]
        %v270 = vld [vmem:[%s1 + $0x48] sm:$0xff]
        %v271 = vld [vmem:[%s1 + $0x50] sm:$0xff]
        %v272 = vld [vmem:[%s1 + $0x58] sm:$0xff]
        %v273 = vld [vmem:[%s1 + $0x60] sm:$0xff]
        %v274 = vld [vmem:[%s1 + $0x68] sm:$0xff]
        %v275 = vld [vmem:[%s1 + $0x70] sm:$0xff]
        %v276 = vld [vmem:[%s1 + $0x78] sm:$0xff]
        %v277 = vld [vmem:[%s1 + $0x80] sm:$0xff]
        %v278 = vld [vmem:[%s1 + $0x88] sm:$0xff]
        %v279 = vld [vmem:[%s1 + $0x90] sm:$0xff]
        %v280 = vld [vmem:[%s1 + $0x98] sm:$0xff]
        %v281 = vld [vmem:[%s1 + $0xa0] sm:$0xff]
        %v282 = vld [vmem:[%s1 + $0xa8] sm:$0xff]
        %v283 = vld [vmem:[%s1 + $0xb0] sm:$0xff]
        %v284 = vld [vmem:[%s1 + $0xb8] sm:$0xff]
        %v285 = vld [vmem:[%s1 + $0xc0] sm:$0xff]
        %v286 = vld [vmem:[%s1 + $0xc8] sm:$0xff]
        %v287 = vld [vmem:[%s1 + $0xd0] sm:$0xff]
        %v288 = vld [vmem:[%s1 + $0xd8] sm:$0xff]
        %v289 = vld [vmem:[%s1 + $0xe0] sm:$0xff]
        %v290 = vld [vmem:[%s1 + $0xe8] sm:$0xff]
        %v291 = vld [vmem:[%s1 + $0xf0] sm:$0xff]
        %v292 = vld [vmem:[%s1 + $0xf8] sm:$0xff]
        %v293 = vlaneseq
        %v294 = vshrl.u32 %v293, 7
        %v295 = vsub.s32 0, %v294
        %v296 = vrot.slane %v196, %v295
        %297 = vmatprep.subr.mxu0 0.0
        %298 = vmatpush1.msra.mxu0 %v261
        %299 = vmatprep.subr.mxu0 0.0
        %300 = vmatpush1.msra.mxu0 %v262
        %301 = vmatprep.subr.mxu0 0.0
        %302 = vmatpush1.msra.mxu0 %v263
        %303 = vmatprep.subr.mxu0 0.0
        %304 = vmatpush1.msra.mxu0 %v264
        %305 = vmatprep.subr.mxu0 0.0
        %306 = vmatpush1.msra.mxu0 %v265
        %307 = vmatprep.subr.mxu0 0.0
        %308 = vmatpush1.msra.mxu0 %v266
        %309 = vmatprep.subr.mxu0 0.0
        %310 = vmatpush1.msra.mxu0 %v267
        %311 = vmatprep.subr.mxu0 0.0
        %312 = vmatpush1.msra.mxu0 %v268
        %313 = vmatprep.subr.mxu0 0.0
        %314 = vmatpush1.msra.mxu0 %v269
        %315 = vmatprep.subr.mxu0 0.0
        %316 = vmatpush1.msra.mxu0 %v270
        %317 = vmatprep.subr.mxu0 0.0
        %318 = vmatpush1.msra.mxu0 %v271
        %319 = vmatprep.subr.mxu0 0.0
        %320 = vmatpush1.msra.mxu0 %v272
        %321 = vmatprep.subr.mxu0 0.0
        %322 = vmatpush1.msra.mxu0 %v273
        %323 = vmatprep.subr.mxu0 0.0
        %324 = vmatpush1.msra.mxu0 %v274
        %325 = vmatprep.subr.mxu0 0.0
        %326 = vmatpush1.msra.mxu0 %v275
        %327 = vmatprep.subr.mxu0 0.0
        %328 = vmatpush1.msra.mxu0 %v276
        %329 = vmatprep.subr.mxu0 0.0
        %330 = vmatpush1.msra.mxu0 %v277
        %331 = vmatprep.subr.mxu0 0.0
        %332 = vmatpush1.msra.mxu0 %v278
        %333 = vmatprep.subr.mxu0 0.0
        %334 = vmatpush1.msra.mxu0 %v279
        %335 = vmatprep.subr.mxu0 0.0
        %336 = vmatpush1.msra.mxu0 %v280
        %337 = vmatprep.subr.mxu0 0.0
        %338 = vmatpush1.msra.mxu0 %v281
        %339 = vmatprep.subr.mxu0 0.0
        %340 = vmatpush1.msra.mxu0 %v282
        %341 = vmatprep.subr.mxu0 0.0
        %342 = vmatpush1.msra.mxu0 %v283
        %343 = vmatprep.subr.mxu0 0.0
        %344 = vmatpush1.msra.mxu0 %v284
        %345 = vmatprep.subr.mxu0 0.0
        %346 = vmatpush1.msra.mxu0 %v285
        %347 = vmatprep.subr.mxu0 0.0
        %348 = vmatpush1.msra.mxu0 %v286
        %349 = vmatprep.subr.mxu0 0.0
        %350 = vmatpush1.msra.mxu0 %v287
        %351 = vmatprep.subr.mxu0 0.0
        %352 = vmatpush1.msra.mxu0 %v288
        %353 = vmatprep.subr.mxu0 0.0
        %354 = vmatpush1.msra.mxu0 %v289
        %355 = vmatprep.subr.mxu0 0.0
        %356 = vmatpush1.msra.mxu0 %v290
        %357 = vmatprep.subr.mxu0 0.0
        %358 = vmatpush1.msra.mxu0 %v291
        %359 = vmatprep.subr.mxu0 0.0
        %360 = vmatpush1.msra.mxu0 %v292
        %361 = vmatprep.mubr.f32.mxu0 %v198
        %362 = vmatmul.mubr.f32.gmra.mrb[0].mxu0 %v197
        %v363 = vpop.f32.mrb[0].mxu0
        %v364 = vadd.f32 %v296, %v363
        %v365 = vpop.f32.mrb[0].mxu0
        %366 = vmatprep.mubr.f32.mxu0 %v200
        %367 = vmatmul.mubr.f32.gmra.mrb[0].mxu0 %v199
        %v368 = vpop.f32.mrb[0].mxu0
        %v369 = vadd.f32 %v296, %v368
        %v370 = vpop.f32.mrb[0].mxu0
        %371 = vmatprep.mubr.f32.mxu0 %v202
        %372 = vmatmul.mubr.f32.gmra.mrb[0].mxu0 %v201
        %v373 = vpop.f32.mrb[0].mxu0
        %v374 = vadd.f32 %v296, %v373
        %v375 = vpop.f32.mrb[0].mxu0
        %376 = vmatprep.mubr.f32.mxu0 %v204
        %377 = vmatmul.mubr.f32.gmra.mrb[0].mxu0 %v203
        %v378 = vpop.f32.mrb[0].mxu0
        %v379 = vadd.f32 %v296, %v378
        %v380 = vpop.f32.mrb[0].mxu0
        %381 = vmatprep.mubr.f32.mxu0 %v206
        %382 = vmatmul.mubr.f32.gmra.mrb[0].mxu0 %v205
        %v383 = vpop.f32.mrb[0].mxu0
        %v384 = vadd.f32 %v296, %v383
        %v385 = vpop.f32.mrb[0].mxu0
        %386 = vmatprep.mubr.f32.mxu0 %v208
        %387 = vmatmul.mubr.f32.gmra.mrb[0].mxu0 %v207
        %v388 = vpop.f32.mrb[0].mxu0
        %v389 = vadd.f32 %v296, %v388
        %v390 = vpop.f32.mrb[0].mxu0
        %391 = vmatprep.mubr.f32.mxu0 %v210
        %392 = vmatmul.mubr.f32.gmra.mrb[0].mxu0 %v209
        %v393 = vpop.f32.mrb[0].mxu0
        %v394 = vadd.f32 %v296, %v393
        %v395 = vpop.f32.mrb[0].mxu0
        %396 = vmatprep.mubr.f32.mxu0 %v212
        %397 = vmatmul.mubr.f32.gmra.mrb[0].mxu0 %v211
        %v398 = vpop.f32.mrb[0].mxu0
        %v399 = vadd.f32 %v296, %v398
        %v400 = vpop.f32.mrb[0].mxu0
        %401 = vmatprep.mubr.f32.mxu0 %v214
        %402 = vmatmul.mubr.f32.gmra.mrb[0].mxu0 %v213
        %v403 = vpop.f32.mrb[0].mxu0
        %v404 = vadd.f32 %v296, %v403
        %v405 = vpop.f32.mrb[0].mxu0
        %406 = vmatprep.mubr.f32.mxu0 %v216
        %407 = vmatmul.mubr.f32.gmra.mrb[0].mxu0 %v215
        %v408 = vpop.f32.mrb[0].mxu0
        %v409 = vadd.f32 %v296, %v408
        %v410 = vpop.f32.mrb[0].mxu0
        %411 = vmatprep.mubr.f32.mxu0 %v218
        %412 = vmatmul.mubr.f32.gmra.mrb[0].mxu0 %v217
        %v413 = vpop.f32.mrb[0].mxu0
        %v414 = vadd.f32 %v296, %v413
        %v415 = vpop.f32.mrb[0].mxu0
        %416 = vmatprep.mubr.f32.mxu0 %v220
        %417 = vmatmul.mubr.f32.gmra.mrb[0].mxu0 %v219
        %v418 = vpop.f32.mrb[0].mxu0
        %v419 = vadd.f32 %v296, %v418
        %v420 = vpop.f32.mrb[0].mxu0
        %421 = vmatprep.mubr.f32.mxu0 %v222
        %422 = vmatmul.mubr.f32.gmra.mrb[0].mxu0 %v221
        %v423 = vpop.f32.mrb[0].mxu0
        %v424 = vadd.f32 %v296, %v423
        %v425 = vpop.f32.mrb[0].mxu0
        %426 = vmatprep.mubr.f32.mxu0 %v224
        %427 = vmatmul.mubr.f32.gmra.mrb[0].mxu0 %v223
        %v428 = vpop.f32.mrb[0].mxu0
        %v429 = vadd.f32 %v296, %v428
        %v430 = vpop.f32.mrb[0].mxu0
        %431 = vmatprep.mubr.f32.mxu0 %v226
        %432 = vmatmul.mubr.f32.gmra.mrb[0].mxu0 %v225
        %v433 = vpop.f32.mrb[0].mxu0
        %v434 = vadd.f32 %v296, %v433
        %v435 = vpop.f32.mrb[0].mxu0
        %436 = vmatprep.mubr.f32.mxu0 %v228
        %437 = vmatmul.mubr.f32.gmra.mrb[0].mxu0 %v227
        %v438 = vpop.f32.mrb[0].mxu0
        %v439 = vadd.f32 %v296, %v438
        %v440 = vpop.f32.mrb[0].mxu0
        %441 = vmatprep.mubr.f32.mxu0 %v230
        %442 = vmatmul.mubr.f32.gmra.mrb[0].mxu0 %v229
        %v443 = vpop.f32.mrb[0].mxu0
        %v444 = vadd.f32 %v296, %v443
        %v445 = vpop.f32.mrb[0].mxu0
        %446 = vmatprep.mubr.f32.mxu0 %v232
        %447 = vmatmul.mubr.f32.gmra.mrb[0].mxu0 %v231
        %v448 = vpop.f32.mrb[0].mxu0
        %v449 = vadd.f32 %v296, %v448
        %v450 = vpop.f32.mrb[0].mxu0
        %451 = vmatprep.mubr.f32.mxu0 %v234
        %452 = vmatmul.mubr.f32.gmra.mrb[0].mxu0 %v233
        %v453 = vpop.f32.mrb[0].mxu0
        %v454 = vadd.f32 %v296, %v453
        %v455 = vpop.f32.mrb[0].mxu0
        %456 = vmatprep.mubr.f32.mxu0 %v236
        %457 = vmatmul.mubr.f32.gmra.mrb[0].mxu0 %v235
        %v458 = vpop.f32.mrb[0].mxu0
        %v459 = vadd.f32 %v296, %v458
        %v460 = vpop.f32.mrb[0].mxu0
        %461 = vmatprep.mubr.f32.mxu0 %v238
        %462 = vmatmul.mubr.f32.gmra.mrb[0].mxu0 %v237
        %v463 = vpop.f32.mrb[0].mxu0
        %v464 = vadd.f32 %v296, %v463
        %v465 = vpop.f32.mrb[0].mxu0
        %466 = vmatprep.mubr.f32.mxu0 %v240
        %467 = vmatmul.mubr.f32.gmra.mrb[0].mxu0 %v239
        %v468 = vpop.f32.mrb[0].mxu0
        %v469 = vadd.f32 %v296, %v468
        %v470 = vpop.f32.mrb[0].mxu0
        %471 = vmatprep.mubr.f32.mxu0 %v242
        %472 = vmatmul.mubr.f32.gmra.mrb[0].mxu0 %v241
        %v473 = vpop.f32.mrb[0].mxu0
        %v474 = vadd.f32 %v296, %v473
        %v475 = vpop.f32.mrb[0].mxu0
        %476 = vmatprep.mubr.f32.mxu0 %v244
        %477 = vmatmul.mubr.f32.gmra.mrb[0].mxu0 %v243
        %v478 = vpop.f32.mrb[0].mxu0
        %v479 = vadd.f32 %v296, %v478
        %v480 = vpop.f32.mrb[0].mxu0
        %481 = vmatprep.mubr.f32.mxu0 %v246
        %482 = vmatmul.mubr.f32.gmra.mrb[0].mxu0 %v245
        %v483 = vpop.f32.mrb[0].mxu0
        %v484 = vadd.f32 %v296, %v483
        %v485 = vpop.f32.mrb[0].mxu0
        %486 = vmatprep.mubr.f32.mxu0 %v248
        %487 = vmatmul.mubr.f32.gmra.mrb[0].mxu0 %v247
        %v488 = vpop.f32.mrb[0].mxu0
        %v489 = vadd.f32 %v296, %v488
        %v490 = vpop.f32.mrb[0].mxu0
        %491 = vmatprep.mubr.f32.mxu0 %v250
        %492 = vmatmul.mubr.f32.gmra.mrb[0].mxu0 %v249
        %v493 = vpop.f32.mrb[0].mxu0
        %v494 = vadd.f32 %v296, %v493
        %v495 = vpop.f32.mrb[0].mxu0
        %496 = vmatprep.mubr.f32.mxu0 %v252
        %497 = vmatmul.mubr.f32.gmra.mrb[0].mxu0 %v251
        %v498 = vpop.f32.mrb[0].mxu0
        %v499 = vadd.f32 %v296, %v498
        %v500 = vpop.f32.mrb[0].mxu0
        %501 = vmatprep.mubr.f32.mxu0 %v254
        %502 = vmatmul.mubr.f32.gmra.mrb[0].mxu0 %v253
        %v503 = vpop.f32.mrb[0].mxu0
        %v504 = vadd.f32 %v296, %v503
        %v505 = vpop.f32.mrb[0].mxu0
        %506 = vmatprep.mubr.f32.mxu0 %v256
        %507 = vmatmul.mubr.f32.gmra.mrb[0].mxu0 %v255
        %v508 = vpop.f32.mrb[0].mxu0
        %v509 = vadd.f32 %v296, %v508
        %v510 = vpop.f32.mrb[0].mxu0
        %511 = vmatprep.mubr.f32.mxu0 %v258
        %512 = vmatmul.mubr.f32.gmra.mrb[0].mxu0 %v257
        %v513 = vpop.f32.mrb[0].mxu0
        %v514 = vadd.f32 %v296, %v513
        %v515 = vpop.f32.mrb[0].mxu0
        %516 = vmatprep.mubr.f32.mxu0 %v260
        %517 = vmatmul.mubr.f32.gmra.mrb[0].mxu0 %v259
        %v518 = vpop.f32.mrb[0].mxu0
        %v519 = vadd.f32 %v296, %v518
        %v520 = vpop.f32.mrb[0].mxu0
        %521 = vdwg.mxu0
        %v522 = vmax.f32 %v364, 0.0
        %v523 = vmax.f32 %v369, 0.0
        %v524 = vmax.f32 %v374, 0.0
        %v525 = vmax.f32 %v379, 0.0
        %v526 = vmax.f32 %v384, 0.0
        %v527 = vmax.f32 %v389, 0.0
        %v528 = vmax.f32 %v394, 0.0
        %v529 = vmax.f32 %v399, 0.0
        %v530 = vmax.f32 %v404, 0.0
        %v531 = vmax.f32 %v409, 0.0
        %v532 = vmax.f32 %v414, 0.0
        %v533 = vmax.f32 %v419, 0.0
        %v534 = vmax.f32 %v424, 0.0
        %v535 = vmax.f32 %v429, 0.0
        %v536 = vmax.f32 %v434, 0.0
        %v537 = vmax.f32 %v439, 0.0
        %v538 = vmax.f32 %v444, 0.0
        %v539 = vmax.f32 %v449, 0.0
        %v540 = vmax.f32 %v454, 0.0
        %v541 = vmax.f32 %v459, 0.0
        %v542 = vmax.f32 %v464, 0.0
        %v543 = vmax.f32 %v469, 0.0
        %v544 = vmax.f32 %v474, 0.0
        %v545 = vmax.f32 %v479, 0.0
        %v546 = vmax.f32 %v484, 0.0
        %v547 = vmax.f32 %v489, 0.0
        %v548 = vmax.f32 %v494, 0.0
        %v549 = vmax.f32 %v499, 0.0
        %v550 = vmax.f32 %v504, 0.0
        %v551 = vmax.f32 %v509, 0.0
        %v552 = vmax.f32 %v514, 0.0
        %v553 = vmax.f32 %v519, 0.0
        %vm586 = vcmask 1040384
        %v587 = vrot.slane %v522, 7
        %v588 = vrot.slane %v523, 7
        %v589 = vsel %vm586, %v587, %v588
        %v590 = vrot.slane %v524, 7
        %v591 = vrot.slane %v525, 7
        %v592 = vsel %vm586, %v590, %v591
        %v593 = vrot.slane %v526, 7
        %v594 = vrot.slane %v527, 7
        %v595 = vsel %vm586, %v593, %v594
        %v596 = vrot.slane %v528, 7
        %v597 = vrot.slane %v529, 7
        %v598 = vsel %vm586, %v596, %v597
        %v599 = vrot.slane %v530, 7
        %v600 = vrot.slane %v531, 7
        %v601 = vsel %vm586, %v599, %v600
        %v602 = vrot.slane %v532, 7
        %v603 = vrot.slane %v533, 7
        %v604 = vsel %vm586, %v602, %v603
        %v605 = vrot.slane %v534, 7
        %v606 = vrot.slane %v535, 7
        %v607 = vsel %vm586, %v605, %v606
        %v608 = vrot.slane %v536, 7
        %v609 = vrot.slane %v537, 7
        %v610 = vsel %vm586, %v608, %v609
        %v611 = vrot.slane %v538, 7
        %v612 = vrot.slane %v539, 7
        %v613 = vsel %vm586, %v611, %v612
        %v614 = vrot.slane %v540, 7
        %v615 = vrot.slane %v541, 7
        %v616 = vsel %vm586, %v614, %v615
        %v617 = vrot.slane %v542, 7
        %v618 = vrot.slane %v543, 7
        %v619 = vsel %vm586, %v617, %v618
        %v620 = vrot.slane %v544, 7
        %v621 = vrot.slane %v545, 7
        %v622 = vsel %vm586, %v620, %v621
        %v623 = vrot.slane %v546, 7
        %v624 = vrot.slane %v547, 7
        %v625 = vsel %vm586, %v623, %v624
        %v626 = vrot.slane %v548, 7
        %v627 = vrot.slane %v549, 7
        %v628 = vsel %vm586, %v626, %v627
        %v629 = vrot.slane %v550, 7
        %v630 = vrot.slane %v551, 7
        %v631 = vsel %vm586, %v629, %v630
        %v632 = vrot.slane %v552, 7
        %v633 = vrot.slane %v553, 7
        %v634 = vsel %vm586, %v632, %v633
        %v667 = vsel %vm586, 0.0, %v587
        %v668 = vsel %vm586, 0.0, %v590
        %v669 = vsel %vm586, 0.0, %v593
        %v670 = vsel %vm586, 0.0, %v596
        %v671 = vsel %vm586, 0.0, %v599
        %v672 = vsel %vm586, 0.0, %v602
        %v673 = vsel %vm586, 0.0, %v605
        %v674 = vsel %vm586, 0.0, %v608
        %v675 = vsel %vm586, 0.0, %v611
        %v676 = vsel %vm586, 0.0, %v614
        %v677 = vsel %vm586, 0.0, %v617
        %v678 = vsel %vm586, 0.0, %v620
        %v679 = vsel %vm586, 0.0, %v623
        %v680 = vsel %vm586, 0.0, %v626
        %v681 = vsel %vm586, 0.0, %v629
        %v682 = vsel %vm586, 0.0, %v632
        %v683 = vsel %vm586, %v588, 0.0
        %v684 = vsel %vm586, %v591, 0.0
        %v685 = vsel %vm586, %v594, 0.0
        %v686 = vsel %vm586, %v597, 0.0
        %v687 = vsel %vm586, %v600, 0.0
        %v688 = vsel %vm586, %v603, 0.0
        %v689 = vsel %vm586, %v606, 0.0
        %v690 = vsel %vm586, %v609, 0.0
        %v691 = vsel %vm586, %v612, 0.0
        %v692 = vsel %vm586, %v615, 0.0
        %v693 = vsel %vm586, %v618, 0.0
        %v694 = vsel %vm586, %v621, 0.0
        %v695 = vsel %vm586, %v624, 0.0
        %v696 = vsel %vm586, %v627, 0.0
        %v697 = vsel %vm586, %v630, 0.0
        %v698 = vsel %vm586, %v633, 0.0
        %v715 = vcombine.high %v667, %v667
        %v717 = vunpack.c.l.s4 1983009808
        %v718 = vunpack.c.0.s8 %v717
        %v719 = vlaneseq
        %v720 = vshrl.u32 %v719, 7
        %v721 = vsub.s32 %v718, %v720
        %v722 = vrot.slane %v667, %v721
        %v724 = vunpack.c.l.s4 1983009808
        %v725 = vunpack.c.0.s8 %v724
        %v726 = vlaneseq
        %v727 = vshrl.u32 %v726, 7
        %v728 = vsub.s32 %v725, %v727
        %v729 = vrot.slane %v715, %v728
        %v730 = vcombine.high %v722, %v722
        %v731 = vcombine.high %v729, %v729
        %v732 = vcombine.high %v589, %v589
        %v734 = vunpack.c.l.s4 1983009808
        %v735 = vunpack.c.0.s8 %v734
        %v736 = vlaneseq
        %v737 = vshrl.u32 %v736, 7
        %v738 = vsub.s32 %v735, %v737
        %v739 = vrot.slane %v589, %v738
        %v741 = vunpack.c.l.s4 1983009808
        %v742 = vunpack.c.0.s8 %v741
        %v743 = vlaneseq
        %v744 = vshrl.u32 %v743, 7
        %v745 = vsub.s32 %v742, %v744
        %v746 = vrot.slane %v732, %v745
        %v747 = vcombine.high %v739, %v739
        %v748 = vcombine.high %v746, %v746
        %v749 = vcombine.high %v668, %v668
        %v751 = vunpack.c.l.s4 1983009808
        %v752 = vunpack.c.0.s8 %v751
        %v753 = vlaneseq
        %v754 = vshrl.u32 %v753, 7
        %v755 = vsub.s32 %v752, %v754
        %v756 = vrot.slane %v668, %v755
        %v758 = vunpack.c.l.s4 1983009808
        %v759 = vunpack.c.0.s8 %v758
        %v760 = vlaneseq
        %v761 = vshrl.u32 %v760, 7
        %v762 = vsub.s32 %v759, %v761
        %v763 = vrot.slane %v749, %v762
        %v764 = vcombine.high %v756, %v756
        %v765 = vcombine.high %v763, %v763
        %v766 = vcombine.high %v592, %v592
        %v768 = vunpack.c.l.s4 1983009808
        %v769 = vunpack.c.0.s8 %v768
        %v770 = vlaneseq
        %v771 = vshrl.u32 %v770, 7
        %v772 = vsub.s32 %v769, %v771
        %v773 = vrot.slane %v592, %v772
        %v775 = vunpack.c.l.s4 1983009808
        %v776 = vunpack.c.0.s8 %v775
        %v777 = vlaneseq
        %v778 = vshrl.u32 %v777, 7
        %v779 = vsub.s32 %v776, %v778
        %v780 = vrot.slane %v766, %v779
        %v781 = vcombine.high %v773, %v773
        %v782 = vcombine.high %v780, %v780
        %v783 = vcombine.high %v669, %v669
        %v785 = vunpack.c.l.s4 1983009808
        %v786 = vunpack.c.0.s8 %v785
        %v787 = vlaneseq
        %v788 = vshrl.u32 %v787, 7
        %v789 = vsub.s32 %v786, %v788
        %v790 = vrot.slane %v669, %v789
        %v792 = vunpack.c.l.s4 1983009808
        %v793 = vunpack.c.0.s8 %v792
        %v794 = vlaneseq
        %v795 = vshrl.u32 %v794, 7
        %v796 = vsub.s32 %v793, %v795
        %v797 = vrot.slane %v783, %v796
        %v798 = vcombine.high %v790, %v790
        %v799 = vcombine.high %v797, %v797
        %v800 = vcombine.high %v595, %v595
        %v802 = vunpack.c.l.s4 1983009808
        %v803 = vunpack.c.0.s8 %v802
        %v804 = vlaneseq
        %v805 = vshrl.u32 %v804, 7
        %v806 = vsub.s32 %v803, %v805
        %v807 = vrot.slane %v595, %v806
        %v809 = vunpack.c.l.s4 1983009808
        %v810 = vunpack.c.0.s8 %v809
        %v811 = vlaneseq
        %v812 = vshrl.u32 %v811, 7
        %v813 = vsub.s32 %v810, %v812
        %v814 = vrot.slane %v800, %v813
        %v815 = vcombine.high %v807, %v807
        %v816 = vcombine.high %v814, %v814
        %v817 = vcombine.high %v670, %v670
        %v819 = vunpack.c.l.s4 1983009808
        %v820 = vunpack.c.0.s8 %v819
        %v821 = vlaneseq
        %v822 = vshrl.u32 %v821, 7
        %v823 = vsub.s32 %v820, %v822
        %v824 = vrot.slane %v670, %v823
        %v826 = vunpack.c.l.s4 1983009808
        %v827 = vunpack.c.0.s8 %v826
        %v828 = vlaneseq
        %v829 = vshrl.u32 %v828, 7
        %v830 = vsub.s32 %v827, %v829
        %v831 = vrot.slane %v817, %v830
        %v832 = vcombine.high %v824, %v824
        %v833 = vcombine.high %v831, %v831
        %v834 = vcombine.high %v598, %v598
        %v836 = vunpack.c.l.s4 1983009808
        %v837 = vunpack.c.0.s8 %v836
        %v838 = vlaneseq
        %v839 = vshrl.u32 %v838, 7
        %v840 = vsub.s32 %v837, %v839
        %v841 = vrot.slane %v598, %v840
        %v843 = vunpack.c.l.s4 1983009808
        %v844 = vunpack.c.0.s8 %v843
        %v845 = vlaneseq
        %v846 = vshrl.u32 %v845, 7
        %v847 = vsub.s32 %v844, %v846
        %v848 = vrot.slane %v834, %v847
        %v849 = vcombine.high %v841, %v841
        %v850 = vcombine.high %v848, %v848
        %v851 = vcombine.high %v671, %v671
        %v853 = vunpack.c.l.s4 1983009808
        %v854 = vunpack.c.0.s8 %v853
        %v855 = vlaneseq
        %v856 = vshrl.u32 %v855, 7
        %v857 = vsub.s32 %v854, %v856
        %v858 = vrot.slane %v671, %v857
        %v860 = vunpack.c.l.s4 1983009808
        %v861 = vunpack.c.0.s8 %v860
        %v862 = vlaneseq
        %v863 = vshrl.u32 %v862, 7
        %v864 = vsub.s32 %v861, %v863
        %v865 = vrot.slane %v851, %v864
        %v866 = vcombine.high %v858, %v858
        %v867 = vcombine.high %v865, %v865
        %v868 = vcombine.high %v601, %v601
        %v870 = vunpack.c.l.s4 1983009808
        %v871 = vunpack.c.0.s8 %v870
        %v872 = vlaneseq
        %v873 = vshrl.u32 %v872, 7
        %v874 = vsub.s32 %v871, %v873
        %v875 = vrot.slane %v601, %v874
        %v877 = vunpack.c.l.s4 1983009808
        %v878 = vunpack.c.0.s8 %v877
        %v879 = vlaneseq
        %v880 = vshrl.u32 %v879, 7
        %v881 = vsub.s32 %v878, %v880
        %v882 = vrot.slane %v868, %v881
        %v883 = vcombine.high %v875, %v875
        %v884 = vcombine.high %v882, %v882
        %v885 = vcombine.high %v672, %v672
        %v887 = vunpack.c.l.s4 1983009808
        %v888 = vunpack.c.0.s8 %v887
        %v889 = vlaneseq
        %v890 = vshrl.u32 %v889, 7
        %v891 = vsub.s32 %v888, %v890
        %v892 = vrot.slane %v672, %v891
        %v894 = vunpack.c.l.s4 1983009808
        %v895 = vunpack.c.0.s8 %v894
        %v896 = vlaneseq
        %v897 = vshrl.u32 %v896, 7
        %v898 = vsub.s32 %v895, %v897
        %v899 = vrot.slane %v885, %v898
        %v900 = vcombine.high %v892, %v892
        %v901 = vcombine.high %v899, %v899
        %v902 = vcombine.high %v604, %v604
        %v904 = vunpack.c.l.s4 1983009808
        %v905 = vunpack.c.0.s8 %v904
        %v906 = vlaneseq
        %v907 = vshrl.u32 %v906, 7
        %v908 = vsub.s32 %v905, %v907
        %v909 = vrot.slane %v604, %v908
        %v911 = vunpack.c.l.s4 1983009808
        %v912 = vunpack.c.0.s8 %v911
        %v913 = vlaneseq
        %v914 = vshrl.u32 %v913, 7
        %v915 = vsub.s32 %v912, %v914
        %v916 = vrot.slane %v902, %v915
        %v917 = vcombine.high %v909, %v909
        %v918 = vcombine.high %v916, %v916
        %v919 = vcombine.high %v673, %v673
        %v921 = vunpack.c.l.s4 1983009808
        %v922 = vunpack.c.0.s8 %v921
        %v923 = vlaneseq
        %v924 = vshrl.u32 %v923, 7
        %v925 = vsub.s32 %v922, %v924
        %v926 = vrot.slane %v673, %v925
        %v928 = vunpack.c.l.s4 1983009808
        %v929 = vunpack.c.0.s8 %v928
        %v930 = vlaneseq
        %v931 = vshrl.u32 %v930, 7
        %v932 = vsub.s32 %v929, %v931
        %v933 = vrot.slane %v919, %v932
        %v934 = vcombine.high %v926, %v926
        %v935 = vcombine.high %v933, %v933
        %v936 = vcombine.high %v607, %v607
        %v938 = vunpack.c.l.s4 1983009808
        %v939 = vunpack.c.0.s8 %v938
        %v940 = vlaneseq
        %v941 = vshrl.u32 %v940, 7
        %v942 = vsub.s32 %v939, %v941
        %v943 = vrot.slane %v607, %v942
        %v945 = vunpack.c.l.s4 1983009808
        %v946 = vunpack.c.0.s8 %v945
        %v947 = vlaneseq
        %v948 = vshrl.u32 %v947, 7
        %v949 = vsub.s32 %v946, %v948
        %v950 = vrot.slane %v936, %v949
        %v951 = vcombine.high %v943, %v943
        %v952 = vcombine.high %v950, %v950
        %v953 = vcombine.high %v674, %v674
        %v955 = vunpack.c.l.s4 1983009808
        %v956 = vunpack.c.0.s8 %v955
        %v957 = vlaneseq
        %v958 = vshrl.u32 %v957, 7
        %v959 = vsub.s32 %v956, %v958
        %v960 = vrot.slane %v674, %v959
        %v962 = vunpack.c.l.s4 1983009808
        %v963 = vunpack.c.0.s8 %v962
        %v964 = vlaneseq
        %v965 = vshrl.u32 %v964, 7
        %v966 = vsub.s32 %v963, %v965
        %v967 = vrot.slane %v953, %v966
        %v968 = vcombine.high %v960, %v960
        %v969 = vcombine.high %v967, %v967
        %v970 = vcombine.high %v610, %v610
        %v972 = vunpack.c.l.s4 1983009808
        %v973 = vunpack.c.0.s8 %v972
        %v974 = vlaneseq
        %v975 = vshrl.u32 %v974, 7
        %v976 = vsub.s32 %v973, %v975
        %v977 = vrot.slane %v610, %v976
        %v979 = vunpack.c.l.s4 1983009808
        %v980 = vunpack.c.0.s8 %v979
        %v981 = vlaneseq
        %v982 = vshrl.u32 %v981, 7
        %v983 = vsub.s32 %v980, %v982
        %v984 = vrot.slane %v970, %v983
        %v985 = vcombine.high %v977, %v977
        %v986 = vcombine.high %v984, %v984
        %v987 = vcombine.high %v675, %v675
        %v989 = vunpack.c.l.s4 1983009808
        %v990 = vunpack.c.0.s8 %v989
        %v991 = vlaneseq
        %v992 = vshrl.u32 %v991, 7
        %v993 = vsub.s32 %v990, %v992
        %v994 = vrot.slane %v675, %v993
        %v996 = vunpack.c.l.s4 1983009808
        %v997 = vunpack.c.0.s8 %v996
        %v998 = vlaneseq
        %v999 = vshrl.u32 %v998, 7
        %v1000 = vsub.s32 %v997, %v999
        %v1001 = vrot.slane %v987, %v1000
        %v1002 = vcombine.high %v994, %v994
        %v1003 = vcombine.high %v1001, %v1001
        %v1004 = vcombine.high %v613, %v613
        %v1006 = vunpack.c.l.s4 1983009808
        %v1007 = vunpack.c.0.s8 %v1006
        %v1008 = vlaneseq
        %v1009 = vshrl.u32 %v1008, 7
        %v1010 = vsub.s32 %v1007, %v1009
        %v1011 = vrot.slane %v613, %v1010
        %v1013 = vunpack.c.l.s4 1983009808
        %v1014 = vunpack.c.0.s8 %v1013
        %v1015 = vlaneseq
        %v1016 = vshrl.u32 %v1015, 7
        %v1017 = vsub.s32 %v1014, %v1016
        %v1018 = vrot.slane %v1004, %v1017
        %v1019 = vcombine.high %v1011, %v1011
        %v1020 = vcombine.high %v1018, %v1018
        %v1021 = vcombine.high %v676, %v676
        %v1023 = vunpack.c.l.s4 1983009808
        %v1024 = vunpack.c.0.s8 %v1023
        %v1025 = vlaneseq
        %v1026 = vshrl.u32 %v1025, 7
        %v1027 = vsub.s32 %v1024, %v1026
        %v1028 = vrot.slane %v676, %v1027
        %v1030 = vunpack.c.l.s4 1983009808
        %v1031 = vunpack.c.0.s8 %v1030
        %v1032 = vlaneseq
        %v1033 = vshrl.u32 %v1032, 7
        %v1034 = vsub.s32 %v1031, %v1033
        %v1035 = vrot.slane %v1021, %v1034
        %v1036 = vcombine.high %v1028, %v1028
        %v1037 = vcombine.high %v1035, %v1035
        %v1038 = vcombine.high %v616, %v616
        %v1040 = vunpack.c.l.s4 1983009808
        %v1041 = vunpack.c.0.s8 %v1040
        %v1042 = vlaneseq
        %v1043 = vshrl.u32 %v1042, 7
        %v1044 = vsub.s32 %v1041, %v1043
        %v1045 = vrot.slane %v616, %v1044
        %v1047 = vunpack.c.l.s4 1983009808
        %v1048 = vunpack.c.0.s8 %v1047
        %v1049 = vlaneseq
        %v1050 = vshrl.u32 %v1049, 7
        %v1051 = vsub.s32 %v1048, %v1050
        %v1052 = vrot.slane %v1038, %v1051
        %v1053 = vcombine.high %v1045, %v1045
        %v1054 = vcombine.high %v1052, %v1052
        %v1055 = vcombine.high %v677, %v677
        %v1057 = vunpack.c.l.s4 1983009808
        %v1058 = vunpack.c.0.s8 %v1057
        %v1059 = vlaneseq
        %v1060 = vshrl.u32 %v1059, 7
        %v1061 = vsub.s32 %v1058, %v1060
        %v1062 = vrot.slane %v677, %v1061
        %v1064 = vunpack.c.l.s4 1983009808
        %v1065 = vunpack.c.0.s8 %v1064
        %v1066 = vlaneseq
        %v1067 = vshrl.u32 %v1066, 7
        %v1068 = vsub.s32 %v1065, %v1067
        %v1069 = vrot.slane %v1055, %v1068
        %v1070 = vcombine.high %v1062, %v1062
        %v1071 = vcombine.high %v1069, %v1069
        %v1072 = vcombine.high %v619, %v619
        %v1074 = vunpack.c.l.s4 1983009808
        %v1075 = vunpack.c.0.s8 %v1074
        %v1076 = vlaneseq
        %v1077 = vshrl.u32 %v1076, 7
        %v1078 = vsub.s32 %v1075, %v1077
        %v1079 = vrot.slane %v619, %v1078
        %v1081 = vunpack.c.l.s4 1983009808
        %v1082 = vunpack.c.0.s8 %v1081
        %v1083 = vlaneseq
        %v1084 = vshrl.u32 %v1083, 7
        %v1085 = vsub.s32 %v1082, %v1084
        %v1086 = vrot.slane %v1072, %v1085
        %v1087 = vcombine.high %v1079, %v1079
        %v1088 = vcombine.high %v1086, %v1086
        %v1089 = vcombine.high %v678, %v678
        %v1091 = vunpack.c.l.s4 1983009808
        %v1092 = vunpack.c.0.s8 %v1091
        %v1093 = vlaneseq
        %v1094 = vshrl.u32 %v1093, 7
        %v1095 = vsub.s32 %v1092, %v1094
        %v1096 = vrot.slane %v678, %v1095
        %v1098 = vunpack.c.l.s4 1983009808
        %v1099 = vunpack.c.0.s8 %v1098
        %v1100 = vlaneseq
        %v1101 = vshrl.u32 %v1100, 7
        %v1102 = vsub.s32 %v1099, %v1101
        %v1103 = vrot.slane %v1089, %v1102
        %v1104 = vcombine.high %v1096, %v1096
        %v1105 = vcombine.high %v1103, %v1103
        %v1106 = vcombine.high %v622, %v622
        %v1108 = vunpack.c.l.s4 1983009808
        %v1109 = vunpack.c.0.s8 %v1108
        %v1110 = vlaneseq
        %v1111 = vshrl.u32 %v1110, 7
        %v1112 = vsub.s32 %v1109, %v1111
        %v1113 = vrot.slane %v622, %v1112
        %v1115 = vunpack.c.l.s4 1983009808
        %v1116 = vunpack.c.0.s8 %v1115
        %v1117 = vlaneseq
        %v1118 = vshrl.u32 %v1117, 7
        %v1119 = vsub.s32 %v1116, %v1118
        %v1120 = vrot.slane %v1106, %v1119
        %v1121 = vcombine.high %v1113, %v1113
        %v1122 = vcombine.high %v1120, %v1120
        %v1123 = vcombine.high %v679, %v679
        %v1125 = vunpack.c.l.s4 1983009808
        %v1126 = vunpack.c.0.s8 %v1125
        %v1127 = vlaneseq
        %v1128 = vshrl.u32 %v1127, 7
        %v1129 = vsub.s32 %v1126, %v1128
        %v1130 = vrot.slane %v679, %v1129
        %v1132 = vunpack.c.l.s4 1983009808
        %v1133 = vunpack.c.0.s8 %v1132
        %v1134 = vlaneseq
        %v1135 = vshrl.u32 %v1134, 7
        %v1136 = vsub.s32 %v1133, %v1135
        %v1137 = vrot.slane %v1123, %v1136
        %v1138 = vcombine.high %v1130, %v1130
        %v1139 = vcombine.high %v1137, %v1137
        %v1140 = vcombine.high %v625, %v625
        %v1142 = vunpack.c.l.s4 1983009808
        %v1143 = vunpack.c.0.s8 %v1142
        %v1144 = vlaneseq
        %v1145 = vshrl.u32 %v1144, 7
        %v1146 = vsub.s32 %v1143, %v1145
        %v1147 = vrot.slane %v625, %v1146
        %v1149 = vunpack.c.l.s4 1983009808
        %v1150 = vunpack.c.0.s8 %v1149
        %v1151 = vlaneseq
        %v1152 = vshrl.u32 %v1151, 7
        %v1153 = vsub.s32 %v1150, %v1152
        %v1154 = vrot.slane %v1140, %v1153
        %v1155 = vcombine.high %v1147, %v1147
        %v1156 = vcombine.high %v1154, %v1154
        %v1157 = vcombine.high %v680, %v680
        %v1159 = vunpack.c.l.s4 1983009808
        %v1160 = vunpack.c.0.s8 %v1159
        %v1161 = vlaneseq
        %v1162 = vshrl.u32 %v1161, 7
        %v1163 = vsub.s32 %v1160, %v1162
        %v1164 = vrot.slane %v680, %v1163
        %v1166 = vunpack.c.l.s4 1983009808
        %v1167 = vunpack.c.0.s8 %v1166
        %v1168 = vlaneseq
        %v1169 = vshrl.u32 %v1168, 7
        %v1170 = vsub.s32 %v1167, %v1169
        %v1171 = vrot.slane %v1157, %v1170
        %v1172 = vcombine.high %v1164, %v1164
        %v1173 = vcombine.high %v1171, %v1171
        %v1174 = vcombine.high %v628, %v628
        %v1176 = vunpack.c.l.s4 1983009808
        %v1177 = vunpack.c.0.s8 %v1176
        %v1178 = vlaneseq
        %v1179 = vshrl.u32 %v1178, 7
        %v1180 = vsub.s32 %v1177, %v1179
        %v1181 = vrot.slane %v628, %v1180
        %v1183 = vunpack.c.l.s4 1983009808
        %v1184 = vunpack.c.0.s8 %v1183
        %v1185 = vlaneseq
        %v1186 = vshrl.u32 %v1185, 7
        %v1187 = vsub.s32 %v1184, %v1186
        %v1188 = vrot.slane %v1174, %v1187
        %v1189 = vcombine.high %v1181, %v1181
        %v1190 = vcombine.high %v1188, %v1188
        %v1191 = vcombine.high %v681, %v681
        %v1193 = vunpack.c.l.s4 1983009808
        %v1194 = vunpack.c.0.s8 %v1193
        %v1195 = vlaneseq
        %v1196 = vshrl.u32 %v1195, 7
        %v1197 = vsub.s32 %v1194, %v1196
        %v1198 = vrot.slane %v681, %v1197
        %v1200 = vunpack.c.l.s4 1983009808
        %v1201 = vunpack.c.0.s8 %v1200
        %v1202 = vlaneseq
        %v1203 = vshrl.u32 %v1202, 7
        %v1204 = vsub.s32 %v1201, %v1203
        %v1205 = vrot.slane %v1191, %v1204
        %v1206 = vcombine.high %v1198, %v1198
        %v1207 = vcombine.high %v1205, %v1205
        %v1208 = vcombine.high %v631, %v631
        %v1210 = vunpack.c.l.s4 1983009808
        %v1211 = vunpack.c.0.s8 %v1210
        %v1212 = vlaneseq
        %v1213 = vshrl.u32 %v1212, 7
        %v1214 = vsub.s32 %v1211, %v1213
        %v1215 = vrot.slane %v631, %v1214
        %v1217 = vunpack.c.l.s4 1983009808
        %v1218 = vunpack.c.0.s8 %v1217
        %v1219 = vlaneseq
        %v1220 = vshrl.u32 %v1219, 7
        %v1221 = vsub.s32 %v1218, %v1220
        %v1222 = vrot.slane %v1208, %v1221
        %v1223 = vcombine.high %v1215, %v1215
        %v1224 = vcombine.high %v1222, %v1222
        %v1225 = vcombine.high %v682, %v682
        %v1227 = vunpack.c.l.s4 1983009808
        %v1228 = vunpack.c.0.s8 %v1227
        %v1229 = vlaneseq
        %v1230 = vshrl.u32 %v1229, 7
        %v1231 = vsub.s32 %v1228, %v1230
        %v1232 = vrot.slane %v682, %v1231
        %v1234 = vunpack.c.l.s4 1983009808
        %v1235 = vunpack.c.0.s8 %v1234
        %v1236 = vlaneseq
        %v1237 = vshrl.u32 %v1236, 7
        %v1238 = vsub.s32 %v1235, %v1237
        %v1239 = vrot.slane %v1225, %v1238
        %v1240 = vcombine.high %v1232, %v1232
        %v1241 = vcombine.high %v1239, %v1239
        %v1242 = vcombine.high %v634, %v634
        %v1244 = vunpack.c.l.s4 1983009808
        %v1245 = vunpack.c.0.s8 %v1244
        %v1246 = vlaneseq
        %v1247 = vshrl.u32 %v1246, 7
        %v1248 = vsub.s32 %v1245, %v1247
        %v1249 = vrot.slane %v634, %v1248
        %v1251 = vunpack.c.l.s4 1983009808
        %v1252 = vunpack.c.0.s8 %v1251
        %v1253 = vlaneseq
        %v1254 = vshrl.u32 %v1253, 7
        %v1255 = vsub.s32 %v1252, %v1254
        %v1256 = vrot.slane %v1242, %v1255
        %v1257 = vcombine.high %v1249, %v1249
        %v1258 = vcombine.high %v1256, %v1256
        %v1404 = vunpack.c.l.s4 1983009808
        %v1405 = vunpack.c.0.s8 %v1404
        %v1406 = vlaneseq
        %v1407 = vshrl.u32 %v1406, 7
        %v1408 = vsub.s32 %v1405, %v1407
        %v1409 = vrot.slane %v683, %v1408
        %v1411 = vunpack.c.l.s4 1983009808
        %v1412 = vunpack.c.0.s8 %v1411
        %v1413 = vlaneseq
        %v1414 = vshrl.u32 %v1413, 7
        %v1415 = vsub.s32 %v1412, %v1414
        %v1416 = vrot.slane %v684, %v1415
        %v1418 = vunpack.c.l.s4 1983009808
        %v1419 = vunpack.c.0.s8 %v1418
        %v1420 = vlaneseq
        %v1421 = vshrl.u32 %v1420, 7
        %v1422 = vsub.s32 %v1419, %v1421
        %v1423 = vrot.slane %v685, %v1422
        %v1425 = vunpack.c.l.s4 1983009808
        %v1426 = vunpack.c.0.s8 %v1425
        %v1427 = vlaneseq
        %v1428 = vshrl.u32 %v1427, 7
        %v1429 = vsub.s32 %v1426, %v1428
        %v1430 = vrot.slane %v686, %v1429
        %v1432 = vunpack.c.l.s4 1983009808
        %v1433 = vunpack.c.0.s8 %v1432
        %v1434 = vlaneseq
        %v1435 = vshrl.u32 %v1434, 7
        %v1436 = vsub.s32 %v1433, %v1435
        %v1437 = vrot.slane %v687, %v1436
        %v1439 = vunpack.c.l.s4 1983009808
        %v1440 = vunpack.c.0.s8 %v1439
        %v1441 = vlaneseq
        %v1442 = vshrl.u32 %v1441, 7
        %v1443 = vsub.s32 %v1440, %v1442
        %v1444 = vrot.slane %v688, %v1443
        %v1446 = vunpack.c.l.s4 1983009808
        %v1447 = vunpack.c.0.s8 %v1446
        %v1448 = vlaneseq
        %v1449 = vshrl.u32 %v1448, 7
        %v1450 = vsub.s32 %v1447, %v1449
        %v1451 = vrot.slane %v689, %v1450
        %v1453 = vunpack.c.l.s4 1983009808
        %v1454 = vunpack.c.0.s8 %v1453
        %v1455 = vlaneseq
        %v1456 = vshrl.u32 %v1455, 7
        %v1457 = vsub.s32 %v1454, %v1456
        %v1458 = vrot.slane %v690, %v1457
        %v1460 = vunpack.c.l.s4 1983009808
        %v1461 = vunpack.c.0.s8 %v1460
        %v1462 = vlaneseq
        %v1463 = vshrl.u32 %v1462, 7
        %v1464 = vsub.s32 %v1461, %v1463
        %v1465 = vrot.slane %v691, %v1464
        %v1467 = vunpack.c.l.s4 1983009808
        %v1468 = vunpack.c.0.s8 %v1467
        %v1469 = vlaneseq
        %v1470 = vshrl.u32 %v1469, 7
        %v1471 = vsub.s32 %v1468, %v1470
        %v1472 = vrot.slane %v692, %v1471
        %v1474 = vunpack.c.l.s4 1983009808
        %v1475 = vunpack.c.0.s8 %v1474
        %v1476 = vlaneseq
        %v1477 = vshrl.u32 %v1476, 7
        %v1478 = vsub.s32 %v1475, %v1477
        %v1479 = vrot.slane %v693, %v1478
        %v1481 = vunpack.c.l.s4 1983009808
        %v1482 = vunpack.c.0.s8 %v1481
        %v1483 = vlaneseq
        %v1484 = vshrl.u32 %v1483, 7
        %v1485 = vsub.s32 %v1482, %v1484
        %v1486 = vrot.slane %v694, %v1485
        %v1488 = vunpack.c.l.s4 1983009808
        %v1489 = vunpack.c.0.s8 %v1488
        %v1490 = vlaneseq
        %v1491 = vshrl.u32 %v1490, 7
        %v1492 = vsub.s32 %v1489, %v1491
        %v1493 = vrot.slane %v695, %v1492
        %v1495 = vunpack.c.l.s4 1983009808
        %v1496 = vunpack.c.0.s8 %v1495
        %v1497 = vlaneseq
        %v1498 = vshrl.u32 %v1497, 7
        %v1499 = vsub.s32 %v1496, %v1498
        %v1500 = vrot.slane %v696, %v1499
        %v1502 = vunpack.c.l.s4 1983009808
        %v1503 = vunpack.c.0.s8 %v1502
        %v1504 = vlaneseq
        %v1505 = vshrl.u32 %v1504, 7
        %v1506 = vsub.s32 %v1503, %v1505
        %v1507 = vrot.slane %v697, %v1506
        %v1509 = vunpack.c.l.s4 1983009808
        %v1510 = vunpack.c.0.s8 %v1509
        %v1511 = vlaneseq
        %v1512 = vshrl.u32 %v1511, 7
        %v1513 = vsub.s32 %v1510, %v1512
        %v1514 = vrot.slane %v698, %v1513
        %vm1515 = vcmask 1042434
        %vm1516 = vmor %vm586, %vm1515
        %vm1517 = vcmask 1044484
        %vm1518 = vmor %vm1516, %vm1517
        %vm1519 = vcmask 1046534
        %vm1520 = vmor %vm1518, %vm1519
        %v1521 = vrot.slane %v722, 7
        %v1522 = vrot.slane %v1521, 2
        %v1523 = vrot.slane %v730, 7
        %v1524 = vsel %vm1520, %v1522, %v1523
        %v1525 = vrot.slane %v1523, 2
        %v1526 = vrot.slane %v729, 7
        %v1527 = vsel %vm1520, %v1525, %v1526
        %v1528 = vrot.slane %v1526, 2
        %v1529 = vrot.slane %v731, 7
        %v1530 = vsel %vm1520, %v1528, %v1529
        %v1531 = vrot.slane %v1529, 2
        %v1532 = vrot.slane %v739, 7
        %v1533 = vsel %vm1520, %v1531, %v1532
        %v1534 = vrot.slane %v1532, 2
        %v1535 = vrot.slane %v747, 7
        %v1536 = vsel %vm1520, %v1534, %v1535
        %v1537 = vrot.slane %v1535, 2
        %v1538 = vrot.slane %v746, 7
        %v1539 = vsel %vm1520, %v1537, %v1538
        %v1540 = vrot.slane %v1538, 2
        %v1541 = vrot.slane %v748, 7
        %v1542 = vsel %vm1520, %v1540, %v1541
        %v1543 = vrot.slane %v1541, 2
        %v1544 = vrot.slane %v1409, 7
        %v1545 = vsel %vm1520, %v1543, %v1544
        %v1546 = vrot.slane %v756, 7
        %v1547 = vrot.slane %v1546, 2
        %v1548 = vrot.slane %v764, 7
        %v1549 = vsel %vm1520, %v1547, %v1548
        %v1550 = vrot.slane %v1548, 2
        %v1551 = vrot.slane %v763, 7
        %v1552 = vsel %vm1520, %v1550, %v1551
        %v1553 = vrot.slane %v1551, 2
        %v1554 = vrot.slane %v765, 7
        %v1555 = vsel %vm1520, %v1553, %v1554
        %v1556 = vrot.slane %v1554, 2
        %v1557 = vrot.slane %v773, 7
        %v1558 = vsel %vm1520, %v1556, %v1557
        %v1559 = vrot.slane %v1557, 2
        %v1560 = vrot.slane %v781, 7
        %v1561 = vsel %vm1520, %v1559, %v1560
        %v1562 = vrot.slane %v1560, 2
        %v1563 = vrot.slane %v780, 7
        %v1564 = vsel %vm1520, %v1562, %v1563
        %v1565 = vrot.slane %v1563, 2
        %v1566 = vrot.slane %v782, 7
        %v1567 = vsel %vm1520, %v1565, %v1566
        %v1568 = vrot.slane %v1566, 2
        %v1569 = vrot.slane %v1416, 7
        %v1570 = vsel %vm1520, %v1568, %v1569
        %v1571 = vrot.slane %v790, 7
        %v1572 = vrot.slane %v1571, 2
        %v1573 = vrot.slane %v798, 7
        %v1574 = vsel %vm1520, %v1572, %v1573
        %v1575 = vrot.slane %v1573, 2
        %v1576 = vrot.slane %v797, 7
        %v1577 = vsel %vm1520, %v1575, %v1576
        %v1578 = vrot.slane %v1576, 2
        %v1579 = vrot.slane %v799, 7
        %v1580 = vsel %vm1520, %v1578, %v1579
        %v1581 = vrot.slane %v1579, 2
        %v1582 = vrot.slane %v807, 7
        %v1583 = vsel %vm1520, %v1581, %v1582
        %v1584 = vrot.slane %v1582, 2
        %v1585 = vrot.slane %v815, 7
        %v1586 = vsel %vm1520, %v1584, %v1585
        %v1587 = vrot.slane %v1585, 2
        %v1588 = vrot.slane %v814, 7
        %v1589 = vsel %vm1520, %v1587, %v1588
        %v1590 = vrot.slane %v1588, 2
        %v1591 = vrot.slane %v816, 7
        %v1592 = vsel %vm1520, %v1590, %v1591
        %v1593 = vrot.slane %v1591, 2
        %v1594 = vrot.slane %v1423, 7
        %v1595 = vsel %vm1520, %v1593, %v1594
        %v1596 = vrot.slane %v824, 7
        %v1597 = vrot.slane %v1596, 2
        %v1598 = vrot.slane %v832, 7
        %v1599 = vsel %vm1520, %v1597, %v1598
        %v1600 = vrot.slane %v1598, 2
        %v1601 = vrot.slane %v831, 7
        %v1602 = vsel %vm1520, %v1600, %v1601
        %v1603 = vrot.slane %v1601, 2
        %v1604 = vrot.slane %v833, 7
        %v1605 = vsel %vm1520, %v1603, %v1604
        %v1606 = vrot.slane %v1604, 2
        %v1607 = vrot.slane %v841, 7
        %v1608 = vsel %vm1520, %v1606, %v1607
        %v1609 = vrot.slane %v1607, 2
        %v1610 = vrot.slane %v849, 7
        %v1611 = vsel %vm1520, %v1609, %v1610
        %v1612 = vrot.slane %v1610, 2
        %v1613 = vrot.slane %v848, 7
        %v1614 = vsel %vm1520, %v1612, %v1613
        %v1615 = vrot.slane %v1613, 2
        %v1616 = vrot.slane %v850, 7
        %v1617 = vsel %vm1520, %v1615, %v1616
        %v1618 = vrot.slane %v1616, 2
        %v1619 = vrot.slane %v1430, 7
        %v1620 = vsel %vm1520, %v1618, %v1619
        %v1621 = vrot.slane %v858, 7
        %v1622 = vrot.slane %v1621, 2
        %v1623 = vrot.slane %v866, 7
        %v1624 = vsel %vm1520, %v1622, %v1623
        %v1625 = vrot.slane %v1623, 2
        %v1626 = vrot.slane %v865, 7
        %v1627 = vsel %vm1520, %v1625, %v1626
        %v1628 = vrot.slane %v1626, 2
        %v1629 = vrot.slane %v867, 7
        %v1630 = vsel %vm1520, %v1628, %v1629
        %v1631 = vrot.slane %v1629, 2
        %v1632 = vrot.slane %v875, 7
        %v1633 = vsel %vm1520, %v1631, %v1632
        %v1634 = vrot.slane %v1632, 2
        %v1635 = vrot.slane %v883, 7
        %v1636 = vsel %vm1520, %v1634, %v1635
        %v1637 = vrot.slane %v1635, 2
        %v1638 = vrot.slane %v882, 7
        %v1639 = vsel %vm1520, %v1637, %v1638
        %v1640 = vrot.slane %v1638, 2
        %v1641 = vrot.slane %v884, 7
        %v1642 = vsel %vm1520, %v1640, %v1641
        %v1643 = vrot.slane %v1641, 2
        %v1644 = vrot.slane %v1437, 7
        %v1645 = vsel %vm1520, %v1643, %v1644
        %v1646 = vrot.slane %v892, 7
        %v1647 = vrot.slane %v1646, 2
        %v1648 = vrot.slane %v900, 7
        %v1649 = vsel %vm1520, %v1647, %v1648
        %v1650 = vrot.slane %v1648, 2
        %v1651 = vrot.slane %v899, 7
        %v1652 = vsel %vm1520, %v1650, %v1651
        %v1653 = vrot.slane %v1651, 2
        %v1654 = vrot.slane %v901, 7
        %v1655 = vsel %vm1520, %v1653, %v1654
        %v1656 = vrot.slane %v1654, 2
        %v1657 = vrot.slane %v909, 7
        %v1658 = vsel %vm1520, %v1656, %v1657
        %v1659 = vrot.slane %v1657, 2
        %v1660 = vrot.slane %v917, 7
        %v1661 = vsel %vm1520, %v1659, %v1660
        %v1662 = vrot.slane %v1660, 2
        %v1663 = vrot.slane %v916, 7
        %v1664 = vsel %vm1520, %v1662, %v1663
        %v1665 = vrot.slane %v1663, 2
        %v1666 = vrot.slane %v918, 7
        %v1667 = vsel %vm1520, %v1665, %v1666
        %v1668 = vrot.slane %v1666, 2
        %v1669 = vrot.slane %v1444, 7
        %v1670 = vsel %vm1520, %v1668, %v1669
        %v1671 = vrot.slane %v926, 7
        %v1672 = vrot.slane %v1671, 2
        %v1673 = vrot.slane %v934, 7
        %v1674 = vsel %vm1520, %v1672, %v1673
        %v1675 = vrot.slane %v1673, 2
        %v1676 = vrot.slane %v933, 7
        %v1677 = vsel %vm1520, %v1675, %v1676
        %v1678 = vrot.slane %v1676, 2
        %v1679 = vrot.slane %v935, 7
        %v1680 = vsel %vm1520, %v1678, %v1679
        %v1681 = vrot.slane %v1679, 2
        %v1682 = vrot.slane %v943, 7
        %v1683 = vsel %vm1520, %v1681, %v1682
        %v1684 = vrot.slane %v1682, 2
        %v1685 = vrot.slane %v951, 7
        %v1686 = vsel %vm1520, %v1684, %v1685
        %v1687 = vrot.slane %v1685, 2
        %v1688 = vrot.slane %v950, 7
        %v1689 = vsel %vm1520, %v1687, %v1688
        %v1690 = vrot.slane %v1688, 2
        %v1691 = vrot.slane %v952, 7
        %v1692 = vsel %vm1520, %v1690, %v1691
        %v1693 = vrot.slane %v1691, 2
        %v1694 = vrot.slane %v1451, 7
        %v1695 = vsel %vm1520, %v1693, %v1694
        %v1696 = vrot.slane %v960, 7
        %v1697 = vrot.slane %v1696, 2
        %v1698 = vrot.slane %v968, 7
        %v1699 = vsel %vm1520, %v1697, %v1698
        %v1700 = vrot.slane %v1698, 2
        %v1701 = vrot.slane %v967, 7
        %v1702 = vsel %vm1520, %v1700, %v1701
        %v1703 = vrot.slane %v1701, 2
        %v1704 = vrot.slane %v969, 7
        %v1705 = vsel %vm1520, %v1703, %v1704
        %v1706 = vrot.slane %v1704, 2
        %v1707 = vrot.slane %v977, 7
        %v1708 = vsel %vm1520, %v1706, %v1707
        %v1709 = vrot.slane %v1707, 2
        %v1710 = vrot.slane %v985, 7
        %v1711 = vsel %vm1520, %v1709, %v1710
        %v1712 = vrot.slane %v1710, 2
        %v1713 = vrot.slane %v984, 7
        %v1714 = vsel %vm1520, %v1712, %v1713
        %v1715 = vrot.slane %v1713, 2
        %v1716 = vrot.slane %v986, 7
        %v1717 = vsel %vm1520, %v1715, %v1716
        %v1718 = vrot.slane %v1716, 2
        %v1719 = vrot.slane %v1458, 7
        %v1720 = vsel %vm1520, %v1718, %v1719
        %v1721 = vrot.slane %v994, 7
        %v1722 = vrot.slane %v1721, 2
        %v1723 = vrot.slane %v1002, 7
        %v1724 = vsel %vm1520, %v1722, %v1723
        %v1725 = vrot.slane %v1723, 2
        %v1726 = vrot.slane %v1001, 7
        %v1727 = vsel %vm1520, %v1725, %v1726
        %v1728 = vrot.slane %v1726, 2
        %v1729 = vrot.slane %v1003, 7
        %v1730 = vsel %vm1520, %v1728, %v1729
        %v1731 = vrot.slane %v1729, 2
        %v1732 = vrot.slane %v1011, 7
        %v1733 = vsel %vm1520, %v1731, %v1732
        %v1734 = vrot.slane %v1732, 2
        %v1735 = vrot.slane %v1019, 7
        %v1736 = vsel %vm1520, %v1734, %v1735
        %v1737 = vrot.slane %v1735, 2
        %v1738 = vrot.slane %v1018, 7
        %v1739 = vsel %vm1520, %v1737, %v1738
        %v1740 = vrot.slane %v1738, 2
        %v1741 = vrot.slane %v1020, 7
        %v1742 = vsel %vm1520, %v1740, %v1741
        %v1743 = vrot.slane %v1741, 2
        %v1744 = vrot.slane %v1465, 7
        %v1745 = vsel %vm1520, %v1743, %v1744
        %v1746 = vrot.slane %v1028, 7
        %v1747 = vrot.slane %v1746, 2
        %v1748 = vrot.slane %v1036, 7
        %v1749 = vsel %vm1520, %v1747, %v1748
        %v1750 = vrot.slane %v1748, 2
        %v1751 = vrot.slane %v1035, 7
        %v1752 = vsel %vm1520, %v1750, %v1751
        %v1753 = vrot.slane %v1751, 2
        %v1754 = vrot.slane %v1037, 7
        %v1755 = vsel %vm1520, %v1753, %v1754
        %v1756 = vrot.slane %v1754, 2
        %v1757 = vrot.slane %v1045, 7
        %v1758 = vsel %vm1520, %v1756, %v1757
        %v1759 = vrot.slane %v1757, 2
        %v1760 = vrot.slane %v1053, 7
        %v1761 = vsel %vm1520, %v1759, %v1760
        %v1762 = vrot.slane %v1760, 2
        %v1763 = vrot.slane %v1052, 7
        %v1764 = vsel %vm1520, %v1762, %v1763
        %v1765 = vrot.slane %v1763, 2
        %v1766 = vrot.slane %v1054, 7
        %v1767 = vsel %vm1520, %v1765, %v1766
        %v1768 = vrot.slane %v1766, 2
        %v1769 = vrot.slane %v1472, 7
        %v1770 = vsel %vm1520, %v1768, %v1769
        %v1771 = vrot.slane %v1062, 7
        %v1772 = vrot.slane %v1771, 2
        %v1773 = vrot.slane %v1070, 7
        %v1774 = vsel %vm1520, %v1772, %v1773
        %v1775 = vrot.slane %v1773, 2
        %v1776 = vrot.slane %v1069, 7
        %v1777 = vsel %vm1520, %v1775, %v1776
        %v1778 = vrot.slane %v1776, 2
        %v1779 = vrot.slane %v1071, 7
        %v1780 = vsel %vm1520, %v1778, %v1779
        %v1781 = vrot.slane %v1779, 2
        %v1782 = vrot.slane %v1079, 7
        %v1783 = vsel %vm1520, %v1781, %v1782
        %v1784 = vrot.slane %v1782, 2
        %v1785 = vrot.slane %v1087, 7
        %v1786 = vsel %vm1520, %v1784, %v1785
        %v1787 = vrot.slane %v1785, 2
        %v1788 = vrot.slane %v1086, 7
        %v1789 = vsel %vm1520, %v1787, %v1788
        %v1790 = vrot.slane %v1788, 2
        %v1791 = vrot.slane %v1088, 7
        %v1792 = vsel %vm1520, %v1790, %v1791
        %v1793 = vrot.slane %v1791, 2
        %v1794 = vrot.slane %v1479, 7
        %v1795 = vsel %vm1520, %v1793, %v1794
        %v1796 = vrot.slane %v1096, 7
        %v1797 = vrot.slane %v1796, 2
        %v1798 = vrot.slane %v1104, 7
        %v1799 = vsel %vm1520, %v1797, %v1798
        %v1800 = vrot.slane %v1798, 2
        %v1801 = vrot.slane %v1103, 7
        %v1802 = vsel %vm1520, %v1800, %v1801
        %v1803 = vrot.slane %v1801, 2
        %v1804 = vrot.slane %v1105, 7
        %v1805 = vsel %vm1520, %v1803, %v1804
        %v1806 = vrot.slane %v1804, 2
        %v1807 = vrot.slane %v1113, 7
        %v1808 = vsel %vm1520, %v1806, %v1807
        %v1809 = vrot.slane %v1807, 2
        %v1810 = vrot.slane %v1121, 7
        %v1811 = vsel %vm1520, %v1809, %v1810
        %v1812 = vrot.slane %v1810, 2
        %v1813 = vrot.slane %v1120, 7
        %v1814 = vsel %vm1520, %v1812, %v1813
        %v1815 = vrot.slane %v1813, 2
        %v1816 = vrot.slane %v1122, 7
        %v1817 = vsel %vm1520, %v1815, %v1816
        %v1818 = vrot.slane %v1816, 2
        %v1819 = vrot.slane %v1486, 7
        %v1820 = vsel %vm1520, %v1818, %v1819
        %v1821 = vrot.slane %v1130, 7
        %v1822 = vrot.slane %v1821, 2
        %v1823 = vrot.slane %v1138, 7
        %v1824 = vsel %vm1520, %v1822, %v1823
        %v1825 = vrot.slane %v1823, 2
        %v1826 = vrot.slane %v1137, 7
        %v1827 = vsel %vm1520, %v1825, %v1826
        %v1828 = vrot.slane %v1826, 2
        %v1829 = vrot.slane %v1139, 7
        %v1830 = vsel %vm1520, %v1828, %v1829
        %v1831 = vrot.slane %v1829, 2
        %v1832 = vrot.slane %v1147, 7
        %v1833 = vsel %vm1520, %v1831, %v1832
        %v1834 = vrot.slane %v1832, 2
        %v1835 = vrot.slane %v1155, 7
        %v1836 = vsel %vm1520, %v1834, %v1835
        %v1837 = vrot.slane %v1835, 2
        %v1838 = vrot.slane %v1154, 7
        %v1839 = vsel %vm1520, %v1837, %v1838
        %v1840 = vrot.slane %v1838, 2
        %v1841 = vrot.slane %v1156, 7
        %v1842 = vsel %vm1520, %v1840, %v1841
        %v1843 = vrot.slane %v1841, 2
        %v1844 = vrot.slane %v1493, 7
        %v1845 = vsel %vm1520, %v1843, %v1844
        %v1846 = vrot.slane %v1164, 7
        %v1847 = vrot.slane %v1846, 2
        %v1848 = vrot.slane %v1172, 7
        %v1849 = vsel %vm1520, %v1847, %v1848
        %v1850 = vrot.slane %v1848, 2
        %v1851 = vrot.slane %v1171, 7
        %v1852 = vsel %vm1520, %v1850, %v1851
        %v1853 = vrot.slane %v1851, 2
        %v1854 = vrot.slane %v1173, 7
        %v1855 = vsel %vm1520, %v1853, %v1854
        %v1856 = vrot.slane %v1854, 2
        %v1857 = vrot.slane %v1181, 7
        %v1858 = vsel %vm1520, %v1856, %v1857
        %v1859 = vrot.slane %v1857, 2
        %v1860 = vrot.slane %v1189, 7
        %v1861 = vsel %vm1520, %v1859, %v1860
        %v1862 = vrot.slane %v1860, 2
        %v1863 = vrot.slane %v1188, 7
        %v1864 = vsel %vm1520, %v1862, %v1863
        %v1865 = vrot.slane %v1863, 2
        %v1866 = vrot.slane %v1190, 7
        %v1867 = vsel %vm1520, %v1865, %v1866
        %v1868 = vrot.slane %v1866, 2
        %v1869 = vrot.slane %v1500, 7
        %v1870 = vsel %vm1520, %v1868, %v1869
        %v1871 = vrot.slane %v1198, 7
        %v1872 = vrot.slane %v1871, 2
        %v1873 = vrot.slane %v1206, 7
        %v1874 = vsel %vm1520, %v1872, %v1873
        %v1875 = vrot.slane %v1873, 2
        %v1876 = vrot.slane %v1205, 7
        %v1877 = vsel %vm1520, %v1875, %v1876
        %v1878 = vrot.slane %v1876, 2
        %v1879 = vrot.slane %v1207, 7
        %v1880 = vsel %vm1520, %v1878, %v1879
        %v1881 = vrot.slane %v1879, 2
        %v1882 = vrot.slane %v1215, 7
        %v1883 = vsel %vm1520, %v1881, %v1882
        %v1884 = vrot.slane %v1882, 2
        %v1885 = vrot.slane %v1223, 7
        %v1886 = vsel %vm1520, %v1884, %v1885
        %v1887 = vrot.slane %v1885, 2
        %v1888 = vrot.slane %v1222, 7
        %v1889 = vsel %vm1520, %v1887, %v1888
        %v1890 = vrot.slane %v1888, 2
        %v1891 = vrot.slane %v1224, 7
        %v1892 = vsel %vm1520, %v1890, %v1891
        %v1893 = vrot.slane %v1891, 2
        %v1894 = vrot.slane %v1507, 7
        %v1895 = vsel %vm1520, %v1893, %v1894
        %v1896 = vrot.slane %v1232, 7
        %v1897 = vrot.slane %v1896, 2
        %v1898 = vrot.slane %v1240, 7
        %v1899 = vsel %vm1520, %v1897, %v1898
        %v1900 = vrot.slane %v1898, 2
        %v1901 = vrot.slane %v1239, 7
        %v1902 = vsel %vm1520, %v1900, %v1901
        %v1903 = vrot.slane %v1901, 2
        %v1904 = vrot.slane %v1241, 7
        %v1905 = vsel %vm1520, %v1903, %v1904
        %v1906 = vrot.slane %v1904, 2
        %v1907 = vrot.slane %v1249, 7
        %v1908 = vsel %vm1520, %v1906, %v1907
        %v1909 = vrot.slane %v1907, 2
        %v1910 = vrot.slane %v1257, 7
        %v1911 = vsel %vm1520, %v1909, %v1910
        %v1912 = vrot.slane %v1910, 2
        %v1913 = vrot.slane %v1256, 7
        %v1914 = vsel %vm1520, %v1912, %v1913
        %v1915 = vrot.slane %v1913, 2
        %v1916 = vrot.slane %v1258, 7
        %v1917 = vsel %vm1520, %v1915, %v1916
        %v1918 = vrot.slane %v1916, 2
        %v1919 = vrot.slane %v1514, 7
        %v1920 = vsel %vm1520, %v1918, %v1919
        %v2049 = vmax.f32 %v722, %v1524
        %v2050 = vmax.f32 %v730, %v1527
        %v2051 = vmax.f32 %v729, %v1530
        %v2052 = vmax.f32 %v731, %v1533
        %v2053 = vmax.f32 %v739, %v1536
        %v2054 = vmax.f32 %v747, %v1539
        %v2055 = vmax.f32 %v746, %v1542
        %v2056 = vmax.f32 %v748, %v1545
        %v2057 = vmax.f32 %v756, %v1549
        %v2058 = vmax.f32 %v764, %v1552
        %v2059 = vmax.f32 %v763, %v1555
        %v2060 = vmax.f32 %v765, %v1558
        %v2061 = vmax.f32 %v773, %v1561
        %v2062 = vmax.f32 %v781, %v1564
        %v2063 = vmax.f32 %v780, %v1567
        %v2064 = vmax.f32 %v782, %v1570
        %v2065 = vmax.f32 %v790, %v1574
        %v2066 = vmax.f32 %v798, %v1577
        %v2067 = vmax.f32 %v797, %v1580
        %v2068 = vmax.f32 %v799, %v1583
        %v2069 = vmax.f32 %v807, %v1586
        %v2070 = vmax.f32 %v815, %v1589
        %v2071 = vmax.f32 %v814, %v1592
        %v2072 = vmax.f32 %v816, %v1595
        %v2073 = vmax.f32 %v824, %v1599
        %v2074 = vmax.f32 %v832, %v1602
        %v2075 = vmax.f32 %v831, %v1605
        %v2076 = vmax.f32 %v833, %v1608
        %v2077 = vmax.f32 %v841, %v1611
        %v2078 = vmax.f32 %v849, %v1614
        %v2079 = vmax.f32 %v848, %v1617
        %v2080 = vmax.f32 %v850, %v1620
        %v2081 = vmax.f32 %v858, %v1624
        %v2082 = vmax.f32 %v866, %v1627
        %v2083 = vmax.f32 %v865, %v1630
        %v2084 = vmax.f32 %v867, %v1633
        %v2085 = vmax.f32 %v875, %v1636
        %v2086 = vmax.f32 %v883, %v1639
        %v2087 = vmax.f32 %v882, %v1642
        %v2088 = vmax.f32 %v884, %v1645
        %v2089 = vmax.f32 %v892, %v1649
        %v2090 = vmax.f32 %v900, %v1652
        %v2091 = vmax.f32 %v899, %v1655
        %v2092 = vmax.f32 %v901, %v1658
        %v2093 = vmax.f32 %v909, %v1661
        %v2094 = vmax.f32 %v917, %v1664
        %v2095 = vmax.f32 %v916, %v1667
        %v2096 = vmax.f32 %v918, %v1670
        %v2097 = vmax.f32 %v926, %v1674
        %v2098 = vmax.f32 %v934, %v1677
        %v2099 = vmax.f32 %v933, %v1680
        %v2100 = vmax.f32 %v935, %v1683
        %v2101 = vmax.f32 %v943, %v1686
        %v2102 = vmax.f32 %v951, %v1689
        %v2103 = vmax.f32 %v950, %v1692
        %v2104 = vmax.f32 %v952, %v1695
        %v2105 = vmax.f32 %v960, %v1699
        %v2106 = vmax.f32 %v968, %v1702
        %v2107 = vmax.f32 %v967, %v1705
        %v2108 = vmax.f32 %v969, %v1708
        %v2109 = vmax.f32 %v977, %v1711
        %v2110 = vmax.f32 %v985, %v1714
        %v2111 = vmax.f32 %v984, %v1717
        %v2112 = vmax.f32 %v986, %v1720
        %v2113 = vmax.f32 %v994, %v1724
        %v2114 = vmax.f32 %v1002, %v1727
        %v2115 = vmax.f32 %v1001, %v1730
        %v2116 = vmax.f32 %v1003, %v1733
        %v2117 = vmax.f32 %v1011, %v1736
        %v2118 = vmax.f32 %v1019, %v1739
        %v2119 = vmax.f32 %v1018, %v1742
        %v2120 = vmax.f32 %v1020, %v1745
        %v2121 = vmax.f32 %v1028, %v1749
        %v2122 = vmax.f32 %v1036, %v1752
        %v2123 = vmax.f32 %v1035, %v1755
        %v2124 = vmax.f32 %v1037, %v1758
        %v2125 = vmax.f32 %v1045, %v1761
        %v2126 = vmax.f32 %v1053, %v1764
        %v2127 = vmax.f32 %v1052, %v1767
        %v2128 = vmax.f32 %v1054, %v1770
        %v2129 = vmax.f32 %v1062, %v1774
        %v2130 = vmax.f32 %v1070, %v1777
        %v2131 = vmax.f32 %v1069, %v1780
        %v2132 = vmax.f32 %v1071, %v1783
        %v2133 = vmax.f32 %v1079, %v1786
        %v2134 = vmax.f32 %v1087, %v1789
        %v2135 = vmax.f32 %v1086, %v1792
        %v2136 = vmax.f32 %v1088, %v1795
        %v2137 = vmax.f32 %v1096, %v1799
        %v2138 = vmax.f32 %v1104, %v1802
        %v2139 = vmax.f32 %v1103, %v1805
        %v2140 = vmax.f32 %v1105, %v1808
        %v2141 = vmax.f32 %v1113, %v1811
        %v2142 = vmax.f32 %v1121, %v1814
        %v2143 = vmax.f32 %v1120, %v1817
        %v2144 = vmax.f32 %v1122, %v1820
        %v2145 = vmax.f32 %v1130, %v1824
        %v2146 = vmax.f32 %v1138, %v1827
        %v2147 = vmax.f32 %v1137, %v1830
        %v2148 = vmax.f32 %v1139, %v1833
        %v2149 = vmax.f32 %v1147, %v1836
        %v2150 = vmax.f32 %v1155, %v1839
        %v2151 = vmax.f32 %v1154, %v1842
        %v2152 = vmax.f32 %v1156, %v1845
        %v2153 = vmax.f32 %v1164, %v1849
        %v2154 = vmax.f32 %v1172, %v1852
        %v2155 = vmax.f32 %v1171, %v1855
        %v2156 = vmax.f32 %v1173, %v1858
        %v2157 = vmax.f32 %v1181, %v1861
        %v2158 = vmax.f32 %v1189, %v1864
        %v2159 = vmax.f32 %v1188, %v1867
        %v2160 = vmax.f32 %v1190, %v1870
        %v2161 = vmax.f32 %v1198, %v1874
        %v2162 = vmax.f32 %v1206, %v1877
        %v2163 = vmax.f32 %v1205, %v1880
        %v2164 = vmax.f32 %v1207, %v1883
        %v2165 = vmax.f32 %v1215, %v1886
        %v2166 = vmax.f32 %v1223, %v1889
        %v2167 = vmax.f32 %v1222, %v1892
        %v2168 = vmax.f32 %v1224, %v1895
        %v2169 = vmax.f32 %v1232, %v1899
        %v2170 = vmax.f32 %v1240, %v1902
        %v2171 = vmax.f32 %v1239, %v1905
        %v2172 = vmax.f32 %v1241, %v1908
        %v2173 = vmax.f32 %v1249, %v1911
        %v2174 = vmax.f32 %v1257, %v1914
        %v2175 = vmax.f32 %v1256, %v1917
        %v2176 = vmax.f32 %v1258, %v1920
        %v2193 = vmax.f32 %v2049, %v730
        %v2194 = vmax.f32 %v2050, %v729
        %v2195 = vmax.f32 %v2051, %v731
        %v2196 = vmax.f32 %v2052, %v739
        %v2197 = vmax.f32 %v2053, %v747
        %v2198 = vmax.f32 %v2054, %v746
        %v2199 = vmax.f32 %v2055, %v748
        %v2200 = vmax.f32 %v2056, %v1409
        %v2201 = vmax.f32 %v2057, %v764
        %v2202 = vmax.f32 %v2058, %v763
        %v2203 = vmax.f32 %v2059, %v765
        %v2204 = vmax.f32 %v2060, %v773
        %v2205 = vmax.f32 %v2061, %v781
        %v2206 = vmax.f32 %v2062, %v780
        %v2207 = vmax.f32 %v2063, %v782
        %v2208 = vmax.f32 %v2064, %v1416
        %v2209 = vmax.f32 %v2065, %v798
        %v2210 = vmax.f32 %v2066, %v797
        %v2211 = vmax.f32 %v2067, %v799
        %v2212 = vmax.f32 %v2068, %v807
        %v2213 = vmax.f32 %v2069, %v815
        %v2214 = vmax.f32 %v2070, %v814
        %v2215 = vmax.f32 %v2071, %v816
        %v2216 = vmax.f32 %v2072, %v1423
        %v2217 = vmax.f32 %v2073, %v832
        %v2218 = vmax.f32 %v2074, %v831
        %v2219 = vmax.f32 %v2075, %v833
        %v2220 = vmax.f32 %v2076, %v841
        %v2221 = vmax.f32 %v2077, %v849
        %v2222 = vmax.f32 %v2078, %v848
        %v2223 = vmax.f32 %v2079, %v850
        %v2224 = vmax.f32 %v2080, %v1430
        %v2225 = vmax.f32 %v2081, %v866
        %v2226 = vmax.f32 %v2082, %v865
        %v2227 = vmax.f32 %v2083, %v867
        %v2228 = vmax.f32 %v2084, %v875
        %v2229 = vmax.f32 %v2085, %v883
        %v2230 = vmax.f32 %v2086, %v882
        %v2231 = vmax.f32 %v2087, %v884
        %v2232 = vmax.f32 %v2088, %v1437
        %v2233 = vmax.f32 %v2089, %v900
        %v2234 = vmax.f32 %v2090, %v899
        %v2235 = vmax.f32 %v2091, %v901
        %v2236 = vmax.f32 %v2092, %v909
        %v2237 = vmax.f32 %v2093, %v917
        %v2238 = vmax.f32 %v2094, %v916
        %v2239 = vmax.f32 %v2095, %v918
        %v2240 = vmax.f32 %v2096, %v1444
        %v2241 = vmax.f32 %v2097, %v934
        %v2242 = vmax.f32 %v2098, %v933
        %v2243 = vmax.f32 %v2099, %v935
        %v2244 = vmax.f32 %v2100, %v943
        %v2245 = vmax.f32 %v2101, %v951
        %v2246 = vmax.f32 %v2102, %v950
        %v2247 = vmax.f32 %v2103, %v952
        %v2248 = vmax.f32 %v2104, %v1451
        %v2249 = vmax.f32 %v2105, %v968
        %v2250 = vmax.f32 %v2106, %v967
        %v2251 = vmax.f32 %v2107, %v969
        %v2252 = vmax.f32 %v2108, %v977
        %v2253 = vmax.f32 %v2109, %v985
        %v2254 = vmax.f32 %v2110, %v984
        %v2255 = vmax.f32 %v2111, %v986
        %v2256 = vmax.f32 %v2112, %v1458
        %v2257 = vmax.f32 %v2113, %v1002
        %v2258 = vmax.f32 %v2114, %v1001
        %v2259 = vmax.f32 %v2115, %v1003
        %v2260 = vmax.f32 %v2116, %v1011
        %v2261 = vmax.f32 %v2117, %v1019
        %v2262 = vmax.f32 %v2118, %v1018
        %v2263 = vmax.f32 %v2119, %v1020
        %v2264 = vmax.f32 %v2120, %v1465
        %v2265 = vmax.f32 %v2121, %v1036
        %v2266 = vmax.f32 %v2122, %v1035
        %v2267 = vmax.f32 %v2123, %v1037
        %v2268 = vmax.f32 %v2124, %v1045
        %v2269 = vmax.f32 %v2125, %v1053
        %v2270 = vmax.f32 %v2126, %v1052
        %v2271 = vmax.f32 %v2127, %v1054
        %v2272 = vmax.f32 %v2128, %v1472
        %v2273 = vmax.f32 %v2129, %v1070
        %v2274 = vmax.f32 %v2130, %v1069
        %v2275 = vmax.f32 %v2131, %v1071
        %v2276 = vmax.f32 %v2132, %v1079
        %v2277 = vmax.f32 %v2133, %v1087
        %v2278 = vmax.f32 %v2134, %v1086
        %v2279 = vmax.f32 %v2135, %v1088
        %v2280 = vmax.f32 %v2136, %v1479
        %v2281 = vmax.f32 %v2137, %v1104
        %v2282 = vmax.f32 %v2138, %v1103
        %v2283 = vmax.f32 %v2139, %v1105
        %v2284 = vmax.f32 %v2140, %v1113
        %v2285 = vmax.f32 %v2141, %v1121
        %v2286 = vmax.f32 %v2142, %v1120
        %v2287 = vmax.f32 %v2143, %v1122
        %v2288 = vmax.f32 %v2144, %v1486
        %v2289 = vmax.f32 %v2145, %v1138
        %v2290 = vmax.f32 %v2146, %v1137
        %v2291 = vmax.f32 %v2147, %v1139
        %v2292 = vmax.f32 %v2148, %v1147
        %v2293 = vmax.f32 %v2149, %v1155
        %v2294 = vmax.f32 %v2150, %v1154
        %v2295 = vmax.f32 %v2151, %v1156
        %v2296 = vmax.f32 %v2152, %v1493
        %v2297 = vmax.f32 %v2153, %v1172
        %v2298 = vmax.f32 %v2154, %v1171
        %v2299 = vmax.f32 %v2155, %v1173
        %v2300 = vmax.f32 %v2156, %v1181
        %v2301 = vmax.f32 %v2157, %v1189
        %v2302 = vmax.f32 %v2158, %v1188
        %v2303 = vmax.f32 %v2159, %v1190
        %v2304 = vmax.f32 %v2160, %v1500
        %v2305 = vmax.f32 %v2161, %v1206
        %v2306 = vmax.f32 %v2162, %v1205
        %v2307 = vmax.f32 %v2163, %v1207
        %v2308 = vmax.f32 %v2164, %v1215
        %v2309 = vmax.f32 %v2165, %v1223
        %v2310 = vmax.f32 %v2166, %v1222
        %v2311 = vmax.f32 %v2167, %v1224
        %v2312 = vmax.f32 %v2168, %v1507
        %v2313 = vmax.f32 %v2169, %v1240
        %v2314 = vmax.f32 %v2170, %v1239
        %v2315 = vmax.f32 %v2171, %v1241
        %v2316 = vmax.f32 %v2172, %v1249
        %v2317 = vmax.f32 %v2173, %v1257
        %v2318 = vmax.f32 %v2174, %v1256
        %v2319 = vmax.f32 %v2175, %v1258
        %v2320 = vmax.f32 %v2176, %v1514
        %v2449 = vlaneseq
        %v2450 = vshrl.u32 %v2449, 7
        %v2451 = vsub.s32 0, %v2450
        %v2452 = vrot.slane %v2193, %v2451
        %v2453 = vlaneseq
        %v2454 = vshrl.u32 %v2453, 7
        %v2455 = vsub.s32 0, %v2454
        %v2456 = vrot.slane %v2194, %v2455
        %v2457 = vlaneseq
        %v2458 = vshrl.u32 %v2457, 7
        %v2459 = vsub.s32 0, %v2458
        %v2460 = vrot.slane %v2195, %v2459
        %v2461 = vlaneseq
        %v2462 = vshrl.u32 %v2461, 7
        %v2463 = vsub.s32 0, %v2462
        %v2464 = vrot.slane %v2196, %v2463
        %v2465 = vlaneseq
        %v2466 = vshrl.u32 %v2465, 7
        %v2467 = vsub.s32 0, %v2466
        %v2468 = vrot.slane %v2197, %v2467
        %v2469 = vlaneseq
        %v2470 = vshrl.u32 %v2469, 7
        %v2471 = vsub.s32 0, %v2470
        %v2472 = vrot.slane %v2198, %v2471
        %v2473 = vlaneseq
        %v2474 = vshrl.u32 %v2473, 7
        %v2475 = vsub.s32 0, %v2474
        %v2476 = vrot.slane %v2199, %v2475
        %v2477 = vlaneseq
        %v2478 = vshrl.u32 %v2477, 7
        %v2479 = vsub.s32 0, %v2478
        %v2480 = vrot.slane %v2200, %v2479
        %v2481 = vlaneseq
        %v2482 = vshrl.u32 %v2481, 7
        %v2483 = vsub.s32 0, %v2482
        %v2484 = vrot.slane %v2201, %v2483
        %v2485 = vlaneseq
        %v2486 = vshrl.u32 %v2485, 7
        %v2487 = vsub.s32 0, %v2486
        %v2488 = vrot.slane %v2202, %v2487
        %v2489 = vlaneseq
        %v2490 = vshrl.u32 %v2489, 7
        %v2491 = vsub.s32 0, %v2490
        %v2492 = vrot.slane %v2203, %v2491
        %v2493 = vlaneseq
        %v2494 = vshrl.u32 %v2493, 7
        %v2495 = vsub.s32 0, %v2494
        %v2496 = vrot.slane %v2204, %v2495
        %v2497 = vlaneseq
        %v2498 = vshrl.u32 %v2497, 7
        %v2499 = vsub.s32 0, %v2498
        %v2500 = vrot.slane %v2205, %v2499
        %v2501 = vlaneseq
        %v2502 = vshrl.u32 %v2501, 7
        %v2503 = vsub.s32 0, %v2502
        %v2504 = vrot.slane %v2206, %v2503
        %v2505 = vlaneseq
        %v2506 = vshrl.u32 %v2505, 7
        %v2507 = vsub.s32 0, %v2506
        %v2508 = vrot.slane %v2207, %v2507
        %v2509 = vlaneseq
        %v2510 = vshrl.u32 %v2509, 7
        %v2511 = vsub.s32 0, %v2510
        %v2512 = vrot.slane %v2208, %v2511
        %v2513 = vlaneseq
        %v2514 = vshrl.u32 %v2513, 7
        %v2515 = vsub.s32 0, %v2514
        %v2516 = vrot.slane %v2209, %v2515
        %v2517 = vlaneseq
        %v2518 = vshrl.u32 %v2517, 7
        %v2519 = vsub.s32 0, %v2518
        %v2520 = vrot.slane %v2210, %v2519
        %v2521 = vlaneseq
        %v2522 = vshrl.u32 %v2521, 7
        %v2523 = vsub.s32 0, %v2522
        %v2524 = vrot.slane %v2211, %v2523
        %v2525 = vlaneseq
        %v2526 = vshrl.u32 %v2525, 7
        %v2527 = vsub.s32 0, %v2526
        %v2528 = vrot.slane %v2212, %v2527
        %v2529 = vlaneseq
        %v2530 = vshrl.u32 %v2529, 7
        %v2531 = vsub.s32 0, %v2530
        %v2532 = vrot.slane %v2213, %v2531
        %v2533 = vlaneseq
        %v2534 = vshrl.u32 %v2533, 7
        %v2535 = vsub.s32 0, %v2534
        %v2536 = vrot.slane %v2214, %v2535
        %v2537 = vlaneseq
        %v2538 = vshrl.u32 %v2537, 7
        %v2539 = vsub.s32 0, %v2538
        %v2540 = vrot.slane %v2215, %v2539
        %v2541 = vlaneseq
        %v2542 = vshrl.u32 %v2541, 7
        %v2543 = vsub.s32 0, %v2542
        %v2544 = vrot.slane %v2216, %v2543
        %v2545 = vlaneseq
        %v2546 = vshrl.u32 %v2545, 7
        %v2547 = vsub.s32 0, %v2546
        %v2548 = vrot.slane %v2217, %v2547
        %v2549 = vlaneseq
        %v2550 = vshrl.u32 %v2549, 7
        %v2551 = vsub.s32 0, %v2550
        %v2552 = vrot.slane %v2218, %v2551
        %v2553 = vlaneseq
        %v2554 = vshrl.u32 %v2553, 7
        %v2555 = vsub.s32 0, %v2554
        %v2556 = vrot.slane %v2219, %v2555
        %v2557 = vlaneseq
        %v2558 = vshrl.u32 %v2557, 7
        %v2559 = vsub.s32 0, %v2558
        %v2560 = vrot.slane %v2220, %v2559
        %v2561 = vlaneseq
        %v2562 = vshrl.u32 %v2561, 7
        %v2563 = vsub.s32 0, %v2562
        %v2564 = vrot.slane %v2221, %v2563
        %v2565 = vlaneseq
        %v2566 = vshrl.u32 %v2565, 7
        %v2567 = vsub.s32 0, %v2566
        %v2568 = vrot.slane %v2222, %v2567
        %v2569 = vlaneseq
        %v2570 = vshrl.u32 %v2569, 7
        %v2571 = vsub.s32 0, %v2570
        %v2572 = vrot.slane %v2223, %v2571
        %v2573 = vlaneseq
        %v2574 = vshrl.u32 %v2573, 7
        %v2575 = vsub.s32 0, %v2574
        %v2576 = vrot.slane %v2224, %v2575
        %v2577 = vlaneseq
        %v2578 = vshrl.u32 %v2577, 7
        %v2579 = vsub.s32 0, %v2578
        %v2580 = vrot.slane %v2225, %v2579
        %v2581 = vlaneseq
        %v2582 = vshrl.u32 %v2581, 7
        %v2583 = vsub.s32 0, %v2582
        %v2584 = vrot.slane %v2226, %v2583
        %v2585 = vlaneseq
        %v2586 = vshrl.u32 %v2585, 7
        %v2587 = vsub.s32 0, %v2586
        %v2588 = vrot.slane %v2227, %v2587
        %v2589 = vlaneseq
        %v2590 = vshrl.u32 %v2589, 7
        %v2591 = vsub.s32 0, %v2590
        %v2592 = vrot.slane %v2228, %v2591
        %v2593 = vlaneseq
        %v2594 = vshrl.u32 %v2593, 7
        %v2595 = vsub.s32 0, %v2594
        %v2596 = vrot.slane %v2229, %v2595
        %v2597 = vlaneseq
        %v2598 = vshrl.u32 %v2597, 7
        %v2599 = vsub.s32 0, %v2598
        %v2600 = vrot.slane %v2230, %v2599
        %v2601 = vlaneseq
        %v2602 = vshrl.u32 %v2601, 7
        %v2603 = vsub.s32 0, %v2602
        %v2604 = vrot.slane %v2231, %v2603
        %v2605 = vlaneseq
        %v2606 = vshrl.u32 %v2605, 7
        %v2607 = vsub.s32 0, %v2606
        %v2608 = vrot.slane %v2232, %v2607
        %v2609 = vlaneseq
        %v2610 = vshrl.u32 %v2609, 7
        %v2611 = vsub.s32 0, %v2610
        %v2612 = vrot.slane %v2233, %v2611
        %v2613 = vlaneseq
        %v2614 = vshrl.u32 %v2613, 7
        %v2615 = vsub.s32 0, %v2614
        %v2616 = vrot.slane %v2234, %v2615
        %v2617 = vlaneseq
        %v2618 = vshrl.u32 %v2617, 7
        %v2619 = vsub.s32 0, %v2618
        %v2620 = vrot.slane %v2235, %v2619
        %v2621 = vlaneseq
        %v2622 = vshrl.u32 %v2621, 7
        %v2623 = vsub.s32 0, %v2622
        %v2624 = vrot.slane %v2236, %v2623
        %v2625 = vlaneseq
        %v2626 = vshrl.u32 %v2625, 7
        %v2627 = vsub.s32 0, %v2626
        %v2628 = vrot.slane %v2237, %v2627
        %v2629 = vlaneseq
        %v2630 = vshrl.u32 %v2629, 7
        %v2631 = vsub.s32 0, %v2630
        %v2632 = vrot.slane %v2238, %v2631
        %v2633 = vlaneseq
        %v2634 = vshrl.u32 %v2633, 7
        %v2635 = vsub.s32 0, %v2634
        %v2636 = vrot.slane %v2239, %v2635
        %v2637 = vlaneseq
        %v2638 = vshrl.u32 %v2637, 7
        %v2639 = vsub.s32 0, %v2638
        %v2640 = vrot.slane %v2240, %v2639
        %v2641 = vlaneseq
        %v2642 = vshrl.u32 %v2641, 7
        %v2643 = vsub.s32 0, %v2642
        %v2644 = vrot.slane %v2241, %v2643
        %v2645 = vlaneseq
        %v2646 = vshrl.u32 %v2645, 7
        %v2647 = vsub.s32 0, %v2646
        %v2648 = vrot.slane %v2242, %v2647
        %v2649 = vlaneseq
        %v2650 = vshrl.u32 %v2649, 7
        %v2651 = vsub.s32 0, %v2650
        %v2652 = vrot.slane %v2243, %v2651
        %v2653 = vlaneseq
        %v2654 = vshrl.u32 %v2653, 7
        %v2655 = vsub.s32 0, %v2654
        %v2656 = vrot.slane %v2244, %v2655
        %v2657 = vlaneseq
        %v2658 = vshrl.u32 %v2657, 7
        %v2659 = vsub.s32 0, %v2658
        %v2660 = vrot.slane %v2245, %v2659
        %v2661 = vlaneseq
        %v2662 = vshrl.u32 %v2661, 7
        %v2663 = vsub.s32 0, %v2662
        %v2664 = vrot.slane %v2246, %v2663
        %v2665 = vlaneseq
        %v2666 = vshrl.u32 %v2665, 7
        %v2667 = vsub.s32 0, %v2666
        %v2668 = vrot.slane %v2247, %v2667
        %v2669 = vlaneseq
        %v2670 = vshrl.u32 %v2669, 7
        %v2671 = vsub.s32 0, %v2670
        %v2672 = vrot.slane %v2248, %v2671
        %v2673 = vlaneseq
        %v2674 = vshrl.u32 %v2673, 7
        %v2675 = vsub.s32 0, %v2674
        %v2676 = vrot.slane %v2249, %v2675
        %v2677 = vlaneseq
        %v2678 = vshrl.u32 %v2677, 7
        %v2679 = vsub.s32 0, %v2678
        %v2680 = vrot.slane %v2250, %v2679
        %v2681 = vlaneseq
        %v2682 = vshrl.u32 %v2681, 7
        %v2683 = vsub.s32 0, %v2682
        %v2684 = vrot.slane %v2251, %v2683
        %v2685 = vlaneseq
        %v2686 = vshrl.u32 %v2685, 7
        %v2687 = vsub.s32 0, %v2686
        %v2688 = vrot.slane %v2252, %v2687
        %v2689 = vlaneseq
        %v2690 = vshrl.u32 %v2689, 7
        %v2691 = vsub.s32 0, %v2690
        %v2692 = vrot.slane %v2253, %v2691
        %v2693 = vlaneseq
        %v2694 = vshrl.u32 %v2693, 7
        %v2695 = vsub.s32 0, %v2694
        %v2696 = vrot.slane %v2254, %v2695
        %v2697 = vlaneseq
        %v2698 = vshrl.u32 %v2697, 7
        %v2699 = vsub.s32 0, %v2698
        %v2700 = vrot.slane %v2255, %v2699
        %v2701 = vlaneseq
        %v2702 = vshrl.u32 %v2701, 7
        %v2703 = vsub.s32 0, %v2702
        %v2704 = vrot.slane %v2256, %v2703
        %v2705 = vlaneseq
        %v2706 = vshrl.u32 %v2705, 7
        %v2707 = vsub.s32 0, %v2706
        %v2708 = vrot.slane %v2257, %v2707
        %v2709 = vlaneseq
        %v2710 = vshrl.u32 %v2709, 7
        %v2711 = vsub.s32 0, %v2710
        %v2712 = vrot.slane %v2258, %v2711
        %v2713 = vlaneseq
        %v2714 = vshrl.u32 %v2713, 7
        %v2715 = vsub.s32 0, %v2714
        %v2716 = vrot.slane %v2259, %v2715
        %v2717 = vlaneseq
        %v2718 = vshrl.u32 %v2717, 7
        %v2719 = vsub.s32 0, %v2718
        %v2720 = vrot.slane %v2260, %v2719
        %v2721 = vlaneseq
        %v2722 = vshrl.u32 %v2721, 7
        %v2723 = vsub.s32 0, %v2722
        %v2724 = vrot.slane %v2261, %v2723
        %v2725 = vlaneseq
        %v2726 = vshrl.u32 %v2725, 7
        %v2727 = vsub.s32 0, %v2726
        %v2728 = vrot.slane %v2262, %v2727
        %v2729 = vlaneseq
        %v2730 = vshrl.u32 %v2729, 7
        %v2731 = vsub.s32 0, %v2730
        %v2732 = vrot.slane %v2263, %v2731
        %v2733 = vlaneseq
        %v2734 = vshrl.u32 %v2733, 7
        %v2735 = vsub.s32 0, %v2734
        %v2736 = vrot.slane %v2264, %v2735
        %v2737 = vlaneseq
        %v2738 = vshrl.u32 %v2737, 7
        %v2739 = vsub.s32 0, %v2738
        %v2740 = vrot.slane %v2265, %v2739
        %v2741 = vlaneseq
        %v2742 = vshrl.u32 %v2741, 7
        %v2743 = vsub.s32 0, %v2742
        %v2744 = vrot.slane %v2266, %v2743
        %v2745 = vlaneseq
        %v2746 = vshrl.u32 %v2745, 7
        %v2747 = vsub.s32 0, %v2746
        %v2748 = vrot.slane %v2267, %v2747
        %v2749 = vlaneseq
        %v2750 = vshrl.u32 %v2749, 7
        %v2751 = vsub.s32 0, %v2750
        %v2752 = vrot.slane %v2268, %v2751
        %v2753 = vlaneseq
        %v2754 = vshrl.u32 %v2753, 7
        %v2755 = vsub.s32 0, %v2754
        %v2756 = vrot.slane %v2269, %v2755
        %v2757 = vlaneseq
        %v2758 = vshrl.u32 %v2757, 7
        %v2759 = vsub.s32 0, %v2758
        %v2760 = vrot.slane %v2270, %v2759
        %v2761 = vlaneseq
        %v2762 = vshrl.u32 %v2761, 7
        %v2763 = vsub.s32 0, %v2762
        %v2764 = vrot.slane %v2271, %v2763
        %v2765 = vlaneseq
        %v2766 = vshrl.u32 %v2765, 7
        %v2767 = vsub.s32 0, %v2766
        %v2768 = vrot.slane %v2272, %v2767
        %v2769 = vlaneseq
        %v2770 = vshrl.u32 %v2769, 7
        %v2771 = vsub.s32 0, %v2770
        %v2772 = vrot.slane %v2273, %v2771
        %v2773 = vlaneseq
        %v2774 = vshrl.u32 %v2773, 7
        %v2775 = vsub.s32 0, %v2774
        %v2776 = vrot.slane %v2274, %v2775
        %v2777 = vlaneseq
        %v2778 = vshrl.u32 %v2777, 7
        %v2779 = vsub.s32 0, %v2778
        %v2780 = vrot.slane %v2275, %v2779
        %v2781 = vlaneseq
        %v2782 = vshrl.u32 %v2781, 7
        %v2783 = vsub.s32 0, %v2782
        %v2784 = vrot.slane %v2276, %v2783
        %v2785 = vlaneseq
        %v2786 = vshrl.u32 %v2785, 7
        %v2787 = vsub.s32 0, %v2786
        %v2788 = vrot.slane %v2277, %v2787
        %v2789 = vlaneseq
        %v2790 = vshrl.u32 %v2789, 7
        %v2791 = vsub.s32 0, %v2790
        %v2792 = vrot.slane %v2278, %v2791
        %v2793 = vlaneseq
        %v2794 = vshrl.u32 %v2793, 7
        %v2795 = vsub.s32 0, %v2794
        %v2796 = vrot.slane %v2279, %v2795
        %v2797 = vlaneseq
        %v2798 = vshrl.u32 %v2797, 7
        %v2799 = vsub.s32 0, %v2798
        %v2800 = vrot.slane %v2280, %v2799
        %v2801 = vlaneseq
        %v2802 = vshrl.u32 %v2801, 7
        %v2803 = vsub.s32 0, %v2802
        %v2804 = vrot.slane %v2281, %v2803
        %v2805 = vlaneseq
        %v2806 = vshrl.u32 %v2805, 7
        %v2807 = vsub.s32 0, %v2806
        %v2808 = vrot.slane %v2282, %v2807
        %v2809 = vlaneseq
        %v2810 = vshrl.u32 %v2809, 7
        %v2811 = vsub.s32 0, %v2810
        %v2812 = vrot.slane %v2283, %v2811
        %v2813 = vlaneseq
        %v2814 = vshrl.u32 %v2813, 7
        %v2815 = vsub.s32 0, %v2814
        %v2816 = vrot.slane %v2284, %v2815
        %v2817 = vlaneseq
        %v2818 = vshrl.u32 %v2817, 7
        %v2819 = vsub.s32 0, %v2818
        %v2820 = vrot.slane %v2285, %v2819
        %v2821 = vlaneseq
        %v2822 = vshrl.u32 %v2821, 7
        %v2823 = vsub.s32 0, %v2822
        %v2824 = vrot.slane %v2286, %v2823
        %v2825 = vlaneseq
        %v2826 = vshrl.u32 %v2825, 7
        %v2827 = vsub.s32 0, %v2826
        %v2828 = vrot.slane %v2287, %v2827
        %v2829 = vlaneseq
        %v2830 = vshrl.u32 %v2829, 7
        %v2831 = vsub.s32 0, %v2830
        %v2832 = vrot.slane %v2288, %v2831
        %v2833 = vlaneseq
        %v2834 = vshrl.u32 %v2833, 7
        %v2835 = vsub.s32 0, %v2834
        %v2836 = vrot.slane %v2289, %v2835
        %v2837 = vlaneseq
        %v2838 = vshrl.u32 %v2837, 7
        %v2839 = vsub.s32 0, %v2838
        %v2840 = vrot.slane %v2290, %v2839
        %v2841 = vlaneseq
        %v2842 = vshrl.u32 %v2841, 7
        %v2843 = vsub.s32 0, %v2842
        %v2844 = vrot.slane %v2291, %v2843
        %v2845 = vlaneseq
        %v2846 = vshrl.u32 %v2845, 7
        %v2847 = vsub.s32 0, %v2846
        %v2848 = vrot.slane %v2292, %v2847
        %v2849 = vlaneseq
        %v2850 = vshrl.u32 %v2849, 7
        %v2851 = vsub.s32 0, %v2850
        %v2852 = vrot.slane %v2293, %v2851
        %v2853 = vlaneseq
        %v2854 = vshrl.u32 %v2853, 7
        %v2855 = vsub.s32 0, %v2854
        %v2856 = vrot.slane %v2294, %v2855
        %v2857 = vlaneseq
        %v2858 = vshrl.u32 %v2857, 7
        %v2859 = vsub.s32 0, %v2858
        %v2860 = vrot.slane %v2295, %v2859
        %v2861 = vlaneseq
        %v2862 = vshrl.u32 %v2861, 7
        %v2863 = vsub.s32 0, %v2862
        %v2864 = vrot.slane %v2296, %v2863
        %v2865 = vlaneseq
        %v2866 = vshrl.u32 %v2865, 7
        %v2867 = vsub.s32 0, %v2866
        %v2868 = vrot.slane %v2297, %v2867
        %v2869 = vlaneseq
        %v2870 = vshrl.u32 %v2869, 7
        %v2871 = vsub.s32 0, %v2870
        %v2872 = vrot.slane %v2298, %v2871
        %v2873 = vlaneseq
        %v2874 = vshrl.u32 %v2873, 7
        %v2875 = vsub.s32 0, %v2874
        %v2876 = vrot.slane %v2299, %v2875
        %v2877 = vlaneseq
        %v2878 = vshrl.u32 %v2877, 7
        %v2879 = vsub.s32 0, %v2878
        %v2880 = vrot.slane %v2300, %v2879
        %v2881 = vlaneseq
        %v2882 = vshrl.u32 %v2881, 7
        %v2883 = vsub.s32 0, %v2882
        %v2884 = vrot.slane %v2301, %v2883
        %v2885 = vlaneseq
        %v2886 = vshrl.u32 %v2885, 7
        %v2887 = vsub.s32 0, %v2886
        %v2888 = vrot.slane %v2302, %v2887
        %v2889 = vlaneseq
        %v2890 = vshrl.u32 %v2889, 7
        %v2891 = vsub.s32 0, %v2890
        %v2892 = vrot.slane %v2303, %v2891
        %v2893 = vlaneseq
        %v2894 = vshrl.u32 %v2893, 7
        %v2895 = vsub.s32 0, %v2894
        %v2896 = vrot.slane %v2304, %v2895
        %v2897 = vlaneseq
        %v2898 = vshrl.u32 %v2897, 7
        %v2899 = vsub.s32 0, %v2898
        %v2900 = vrot.slane %v2305, %v2899
        %v2901 = vlaneseq
        %v2902 = vshrl.u32 %v2901, 7
        %v2903 = vsub.s32 0, %v2902
        %v2904 = vrot.slane %v2306, %v2903
        %v2905 = vlaneseq
        %v2906 = vshrl.u32 %v2905, 7
        %v2907 = vsub.s32 0, %v2906
        %v2908 = vrot.slane %v2307, %v2907
        %v2909 = vlaneseq
        %v2910 = vshrl.u32 %v2909, 7
        %v2911 = vsub.s32 0, %v2910
        %v2912 = vrot.slane %v2308, %v2911
        %v2913 = vlaneseq
        %v2914 = vshrl.u32 %v2913, 7
        %v2915 = vsub.s32 0, %v2914
        %v2916 = vrot.slane %v2309, %v2915
        %v2917 = vlaneseq
        %v2918 = vshrl.u32 %v2917, 7
        %v2919 = vsub.s32 0, %v2918
        %v2920 = vrot.slane %v2310, %v2919
        %v2921 = vlaneseq
        %v2922 = vshrl.u32 %v2921, 7
        %v2923 = vsub.s32 0, %v2922
        %v2924 = vrot.slane %v2311, %v2923
        %v2925 = vlaneseq
        %v2926 = vshrl.u32 %v2925, 7
        %v2927 = vsub.s32 0, %v2926
        %v2928 = vrot.slane %v2312, %v2927
        %v2929 = vlaneseq
        %v2930 = vshrl.u32 %v2929, 7
        %v2931 = vsub.s32 0, %v2930
        %v2932 = vrot.slane %v2313, %v2931
        %v2933 = vlaneseq
        %v2934 = vshrl.u32 %v2933, 7
        %v2935 = vsub.s32 0, %v2934
        %v2936 = vrot.slane %v2314, %v2935
        %v2937 = vlaneseq
        %v2938 = vshrl.u32 %v2937, 7
        %v2939 = vsub.s32 0, %v2938
        %v2940 = vrot.slane %v2315, %v2939
        %v2941 = vlaneseq
        %v2942 = vshrl.u32 %v2941, 7
        %v2943 = vsub.s32 0, %v2942
        %v2944 = vrot.slane %v2316, %v2943
        %v2945 = vlaneseq
        %v2946 = vshrl.u32 %v2945, 7
        %v2947 = vsub.s32 0, %v2946
        %v2948 = vrot.slane %v2317, %v2947
        %v2949 = vlaneseq
        %v2950 = vshrl.u32 %v2949, 7
        %v2951 = vsub.s32 0, %v2950
        %v2952 = vrot.slane %v2318, %v2951
        %v2953 = vlaneseq
        %v2954 = vshrl.u32 %v2953, 7
        %v2955 = vsub.s32 0, %v2954
        %v2956 = vrot.slane %v2319, %v2955
        %v2957 = vlaneseq
        %v2958 = vshrl.u32 %v2957, 7
        %v2959 = vsub.s32 0, %v2958
        %v2960 = vrot.slane %v2320, %v2959
        %vm2961 = vcmask 1041409
        %v2962 = vsel %vm2961, %v2456, %v2452
        %v2963 = vsel %vm1515, %v2460, %v2962
        %vm2964 = vcmask 1043459
        %v2965 = vsel %vm2964, %v2464, %v2963
        %v2966 = vsel %vm1517, %v2468, %v2965
        %vm2967 = vcmask 1045509
        %v2968 = vsel %vm2967, %v2472, %v2966
        %v2969 = vsel %vm1519, %v2476, %v2968
        %vm2970 = vcmask 1047559
        %v2971 = vsel %vm2970, %v2480, %v2969
        %v2972 = vsel %vm2961, %v2488, %v2484
        %v2973 = vsel %vm1515, %v2492, %v2972
        %v2974 = vsel %vm2964, %v2496, %v2973
        %v2975 = vsel %vm1517, %v2500, %v2974
        %v2976 = vsel %vm2967, %v2504, %v2975
        %v2977 = vsel %vm1519, %v2508, %v2976
        %v2978 = vsel %vm2970, %v2512, %v2977
        %v2979 = vsel %vm2961, %v2520, %v2516
        %v2980 = vsel %vm1515, %v2524, %v2979
        %v2981 = vsel %vm2964, %v2528, %v2980
        %v2982 = vsel %vm1517, %v2532, %v2981
        %v2983 = vsel %vm2967, %v2536, %v2982
        %v2984 = vsel %vm1519, %v2540, %v2983
        %v2985 = vsel %vm2970, %v2544, %v2984
        %v2986 = vsel %vm2961, %v2552, %v2548
        %v2987 = vsel %vm1515, %v2556, %v2986
        %v2988 = vsel %vm2964, %v2560, %v2987
        %v2989 = vsel %vm1517, %v2564, %v2988
        %v2990 = vsel %vm2967, %v2568, %v2989
        %v2991 = vsel %vm1519, %v2572, %v2990
        %v2992 = vsel %vm2970, %v2576, %v2991
        %v2993 = vsel %vm2961, %v2584, %v2580
        %v2994 = vsel %vm1515, %v2588, %v2993
        %v2995 = vsel %vm2964, %v2592, %v2994
        %v2996 = vsel %vm1517, %v2596, %v2995
        %v2997 = vsel %vm2967, %v2600, %v2996
        %v2998 = vsel %vm1519, %v2604, %v2997
        %v2999 = vsel %vm2970, %v2608, %v2998
        %v3000 = vsel %vm2961, %v2616, %v2612
        %v3001 = vsel %vm1515, %v2620, %v3000
        %v3002 = vsel %vm2964, %v2624, %v3001
        %v3003 = vsel %vm1517, %v2628, %v3002
        %v3004 = vsel %vm2967, %v2632, %v3003
        %v3005 = vsel %vm1519, %v2636, %v3004
        %v3006 = vsel %vm2970, %v2640, %v3005
        %v3007 = vsel %vm2961, %v2648, %v2644
        %v3008 = vsel %vm1515, %v2652, %v3007
        %v3009 = vsel %vm2964, %v2656, %v3008
        %v3010 = vsel %vm1517, %v2660, %v3009
        %v3011 = vsel %vm2967, %v2664, %v3010
        %v3012 = vsel %vm1519, %v2668, %v3011
        %v3013 = vsel %vm2970, %v2672, %v3012
        %v3014 = vsel %vm2961, %v2680, %v2676
        %v3015 = vsel %vm1515, %v2684, %v3014
        %v3016 = vsel %vm2964, %v2688, %v3015
        %v3017 = vsel %vm1517, %v2692, %v3016
        %v3018 = vsel %vm2967, %v2696, %v3017
        %v3019 = vsel %vm1519, %v2700, %v3018
        %v3020 = vsel %vm2970, %v2704, %v3019
        %v3021 = vsel %vm2961, %v2712, %v2708
        %v3022 = vsel %vm1515, %v2716, %v3021
        %v3023 = vsel %vm2964, %v2720, %v3022
        %v3024 = vsel %vm1517, %v2724, %v3023
        %v3025 = vsel %vm2967, %v2728, %v3024
        %v3026 = vsel %vm1519, %v2732, %v3025
        %v3027 = vsel %vm2970, %v2736, %v3026
        %v3028 = vsel %vm2961, %v2744, %v2740
        %v3029 = vsel %vm1515, %v2748, %v3028
        %v3030 = vsel %vm2964, %v2752, %v3029
        %v3031 = vsel %vm1517, %v2756, %v3030
        %v3032 = vsel %vm2967, %v2760, %v3031
        %v3033 = vsel %vm1519, %v2764, %v3032
        %v3034 = vsel %vm2970, %v2768, %v3033
        %v3035 = vsel %vm2961, %v2776, %v2772
        %v3036 = vsel %vm1515, %v2780, %v3035
        %v3037 = vsel %vm2964, %v2784, %v3036
        %v3038 = vsel %vm1517, %v2788, %v3037
        %v3039 = vsel %vm2967, %v2792, %v3038
        %v3040 = vsel %vm1519, %v2796, %v3039
        %v3041 = vsel %vm2970, %v2800, %v3040
        %v3042 = vsel %vm2961, %v2808, %v2804
        %v3043 = vsel %vm1515, %v2812, %v3042
        %v3044 = vsel %vm2964, %v2816, %v3043
        %v3045 = vsel %vm1517, %v2820, %v3044
        %v3046 = vsel %vm2967, %v2824, %v3045
        %v3047 = vsel %vm1519, %v2828, %v3046
        %v3048 = vsel %vm2970, %v2832, %v3047
        %v3049 = vsel %vm2961, %v2840, %v2836
        %v3050 = vsel %vm1515, %v2844, %v3049
        %v3051 = vsel %vm2964, %v2848, %v3050
        %v3052 = vsel %vm1517, %v2852, %v3051
        %v3053 = vsel %vm2967, %v2856, %v3052
        %v3054 = vsel %vm1519, %v2860, %v3053
        %v3055 = vsel %vm2970, %v2864, %v3054
        %v3056 = vsel %vm2961, %v2872, %v2868
        %v3057 = vsel %vm1515, %v2876, %v3056
        %v3058 = vsel %vm2964, %v2880, %v3057
        %v3059 = vsel %vm1517, %v2884, %v3058
        %v3060 = vsel %vm2967, %v2888, %v3059
        %v3061 = vsel %vm1519, %v2892, %v3060
        %v3062 = vsel %vm2970, %v2896, %v3061
        %v3063 = vsel %vm2961, %v2904, %v2900
        %v3064 = vsel %vm1515, %v2908, %v3063
        %v3065 = vsel %vm2964, %v2912, %v3064
        %v3066 = vsel %vm1517, %v2916, %v3065
        %v3067 = vsel %vm2967, %v2920, %v3066
        %v3068 = vsel %vm1519, %v2924, %v3067
        %v3069 = vsel %vm2970, %v2928, %v3068
        %v3070 = vsel %vm2961, %v2936, %v2932
        %v3071 = vsel %vm1515, %v2940, %v3070
        %v3072 = vsel %vm2964, %v2944, %v3071
        %v3073 = vsel %vm1517, %v2948, %v3072
        %v3074 = vsel %vm2967, %v2952, %v3073
        %v3075 = vsel %vm1519, %v2956, %v3074
        %v3076 = vsel %vm2970, %v2960, %v3075
        %v3093 = vmax.f32 %v2971, 0.0
        %v3094 = vmax.f32 %v2978, %v2985
        %v3095 = vmax.f32 %v2992, %v2999
        %v3096 = vmax.f32 %v3006, %v3013
        %v3097 = vmax.f32 %v3020, %v3027
        %v3098 = vmax.f32 %v3034, %v3041
        %v3099 = vmax.f32 %v3048, %v3055
        %v3100 = vmax.f32 %v3062, %v3069
        %v3101 = vmax.f32 %v3093, %v2978
        %v3102 = vmax.f32 %v3094, %v2992
        %v3103 = vmax.f32 %v3095, %v3006
        %v3104 = vmax.f32 %v3096, %v3020
        %v3105 = vmax.f32 %v3097, %v3034
        %v3106 = vmax.f32 %v3098, %v3048
        %v3107 = vmax.f32 %v3099, %v3062
        %v3108 = vmax.f32 %v3100, %v3076
        %v3109 = vld [vmem:[%s2] sm:$0xff]
        %v3110 = vld [vmem:[%s2 + $0x8] sm:$0xff]
        %v3111 = vld [vmem:[%s2 + $0x10] sm:$0xff]
        %v3112 = vld [vmem:[%s2 + $0x18] sm:$0xff]
        %v3113 = vld [vmem:[%s2 + $0x20] sm:$0xff]
        %v3114 = vld [vmem:[%s2 + $0x28] sm:$0xff]
        %v3115 = vld [vmem:[%s2 + $0x30] sm:$0xff]
        %v3116 = vld [vmem:[%s2 + $0x38] sm:$0xff]
        %v3117 = vld [vmem:[%s2 + $0x40] sm:$0xff]
        %v3118 = vld [vmem:[%s2 + $0x48] sm:$0xff]
        %v3119 = vld [vmem:[%s2 + $0x50] sm:$0xff]
        %v3120 = vld [vmem:[%s2 + $0x58] sm:$0xff]
        %v3121 = vld [vmem:[%s2 + $0x60] sm:$0xff]
        %v3122 = vld [vmem:[%s2 + $0x68] sm:$0xff]
        %v3123 = vld [vmem:[%s2 + $0x70] sm:$0xff]
        %v3124 = vld [vmem:[%s2 + $0x78] sm:$0xff]
        %v3125 = vld [vmem:[%s2 + $0x80] sm:$0xff]
        %v3126 = vld [vmem:[%s2 + $0x88] sm:$0xff]
        %v3127 = vld [vmem:[%s2 + $0x90] sm:$0xff]
        %v3128 = vld [vmem:[%s2 + $0x98] sm:$0xff]
        %v3129 = vld [vmem:[%s2 + $0xa0] sm:$0xff]
        %v3130 = vld [vmem:[%s2 + $0xa8] sm:$0xff]
        %v3131 = vld [vmem:[%s2 + $0xb0] sm:$0xff]
        %v3132 = vld [vmem:[%s2 + $0xb8] sm:$0xff]
        %v3133 = vld [vmem:[%s2 + $0xc0] sm:$0xff]
        %v3134 = vld [vmem:[%s2 + $0xc8] sm:$0xff]
        %v3135 = vld [vmem:[%s2 + $0xd0] sm:$0xff]
        %v3136 = vld [vmem:[%s2 + $0xd8] sm:$0xff]
        %v3137 = vld [vmem:[%s2 + $0xe0] sm:$0xff]
        %v3138 = vld [vmem:[%s2 + $0xe8] sm:$0xff]
        %v3139 = vld [vmem:[%s2 + $0xf0] sm:$0xff]
        %v3140 = vld [vmem:[%s2 + $0xf8] sm:$0xff]
        %v3141 = vld [vmem:[%s2 + $0x100] sm:$0xff]
        %v3142 = vld [vmem:[%s2 + $0x108] sm:$0xff]
        %v3143 = vld [vmem:[%s2 + $0x110] sm:$0xff]
        %v3144 = vld [vmem:[%s2 + $0x118] sm:$0xff]
        %v3145 = vld [vmem:[%s2 + $0x120] sm:$0xff]
        %v3146 = vld [vmem:[%s2 + $0x128] sm:$0xff]
        %v3147 = vld [vmem:[%s2 + $0x130] sm:$0xff]
        %v3148 = vld [vmem:[%s2 + $0x138] sm:$0xff]
        %v3149 = vld [vmem:[%s2 + $0x140] sm:$0xff]
        %v3150 = vld [vmem:[%s2 + $0x148] sm:$0xff]
        %v3151 = vld [vmem:[%s2 + $0x150] sm:$0xff]
        %v3152 = vld [vmem:[%s2 + $0x158] sm:$0xff]
        %v3153 = vld [vmem:[%s2 + $0x160] sm:$0xff]
        %v3154 = vld [vmem:[%s2 + $0x168] sm:$0xff]
        %v3155 = vld [vmem:[%s2 + $0x170] sm:$0xff]
        %v3156 = vld [vmem:[%s2 + $0x178] sm:$0xff]
        %v3157 = vld [vmem:[%s2 + $0x180] sm:$0xff]
        %v3158 = vld [vmem:[%s2 + $0x188] sm:$0xff]
        %v3159 = vld [vmem:[%s2 + $0x190] sm:$0xff]
        %v3160 = vld [vmem:[%s2 + $0x198] sm:$0xff]
        %v3161 = vld [vmem:[%s2 + $0x1a0] sm:$0xff]
        %v3162 = vld [vmem:[%s2 + $0x1a8] sm:$0xff]
        %v3163 = vld [vmem:[%s2 + $0x1b0] sm:$0xff]
        %v3164 = vld [vmem:[%s2 + $0x1b8] sm:$0xff]
        %v3165 = vld [vmem:[%s2 + $0x1c0] sm:$0xff]
        %v3166 = vld [vmem:[%s2 + $0x1c8] sm:$0xff]
        %v3167 = vld [vmem:[%s2 + $0x1d0] sm:$0xff]
        %v3168 = vld [vmem:[%s2 + $0x1d8] sm:$0xff]
        %v3169 = vld [vmem:[%s2 + $0x1e0] sm:$0xff]
        %v3170 = vld [vmem:[%s2 + $0x1e8] sm:$0xff]
        %v3171 = vld [vmem:[%s2 + $0x1f0] sm:$0xff]
        %v3172 = vld [vmem:[%s2 + $0x1f8] sm:$0xff]
        %v3173 = vld [vmem:[%s2 + $0x200] sm:$0xff]
        %v3174 = vld [vmem:[%s2 + $0x208] sm:$0xff]
        %v3175 = vld [vmem:[%s2 + $0x210] sm:$0xff]
        %v3176 = vld [vmem:[%s2 + $0x218] sm:$0xff]
        %v3177 = vld [vmem:[%s2 + $0x220] sm:$0xff]
        %v3178 = vld [vmem:[%s2 + $0x228] sm:$0xff]
        %v3179 = vld [vmem:[%s2 + $0x230] sm:$0xff]
        %v3180 = vld [vmem:[%s2 + $0x238] sm:$0xff]
        %v3181 = vld [vmem:[%s2 + $0x240] sm:$0xff]
        %v3182 = vld [vmem:[%s2 + $0x248] sm:$0xff]
        %v3183 = vld [vmem:[%s2 + $0x250] sm:$0xff]
        %v3184 = vld [vmem:[%s2 + $0x258] sm:$0xff]
        %v3185 = vld [vmem:[%s2 + $0x260] sm:$0xff]
        %v3186 = vld [vmem:[%s2 + $0x268] sm:$0xff]
        %v3187 = vld [vmem:[%s2 + $0x270] sm:$0xff]
        %v3188 = vld [vmem:[%s2 + $0x278] sm:$0xff]
        %v3189 = vld [vmem:[%s2 + $0x280] sm:$0xff]
        %v3190 = vld [vmem:[%s2 + $0x288] sm:$0xff]
        %v3191 = vld [vmem:[%s2 + $0x290] sm:$0xff]
        %v3192 = vld [vmem:[%s2 + $0x298] sm:$0xff]
        %v3193 = vld [vmem:[%s2 + $0x2a0] sm:$0xff]
        %v3194 = vld [vmem:[%s2 + $0x2a8] sm:$0xff]
        %v3195 = vld [vmem:[%s2 + $0x2b0] sm:$0xff]
        %v3196 = vld [vmem:[%s2 + $0x2b8] sm:$0xff]
        %v3197 = vld [vmem:[%s2 + $0x2c0] sm:$0xff]
        %v3198 = vld [vmem:[%s2 + $0x2c8] sm:$0xff]
        %v3199 = vld [vmem:[%s2 + $0x2d0] sm:$0xff]
        %v3200 = vld [vmem:[%s2 + $0x2d8] sm:$0xff]
        %v3201 = vld [vmem:[%s2 + $0x2e0] sm:$0xff]
        %v3202 = vld [vmem:[%s2 + $0x2e8] sm:$0xff]
        %v3203 = vld [vmem:[%s2 + $0x2f0] sm:$0xff]
        %v3204 = vld [vmem:[%s2 + $0x2f8] sm:$0xff]
        %v3205 = vld [vmem:[%s2 + $0x300] sm:$0xff]
        %v3206 = vld [vmem:[%s2 + $0x308] sm:$0xff]
        %v3207 = vld [vmem:[%s2 + $0x310] sm:$0xff]
        %v3208 = vld [vmem:[%s2 + $0x318] sm:$0xff]
        %v3209 = vld [vmem:[%s2 + $0x320] sm:$0xff]
        %v3210 = vld [vmem:[%s2 + $0x328] sm:$0xff]
        %v3211 = vld [vmem:[%s2 + $0x330] sm:$0xff]
        %v3212 = vld [vmem:[%s2 + $0x338] sm:$0xff]
        %v3213 = vld [vmem:[%s2 + $0x340] sm:$0xff]
        %v3214 = vld [vmem:[%s2 + $0x348] sm:$0xff]
        %v3215 = vld [vmem:[%s2 + $0x350] sm:$0xff]
        %v3216 = vld [vmem:[%s2 + $0x358] sm:$0xff]
        %v3217 = vld [vmem:[%s2 + $0x360] sm:$0xff]
        %v3218 = vld [vmem:[%s2 + $0x368] sm:$0xff]
        %v3219 = vld [vmem:[%s2 + $0x370] sm:$0xff]
        %v3220 = vld [vmem:[%s2 + $0x378] sm:$0xff]
        %v3221 = vld [vmem:[%s2 + $0x380] sm:$0xff]
        %v3222 = vld [vmem:[%s2 + $0x388] sm:$0xff]
        %v3223 = vld [vmem:[%s2 + $0x390] sm:$0xff]
        %v3224 = vld [vmem:[%s2 + $0x398] sm:$0xff]
        %v3225 = vld [vmem:[%s2 + $0x3a0] sm:$0xff]
        %v3226 = vld [vmem:[%s2 + $0x3a8] sm:$0xff]
        %v3227 = vld [vmem:[%s2 + $0x3b0] sm:$0xff]
        %v3228 = vld [vmem:[%s2 + $0x3b8] sm:$0xff]
        %v3229 = vld [vmem:[%s2 + $0x3c0] sm:$0xff]
        %v3230 = vld [vmem:[%s2 + $0x3c8] sm:$0xff]
        %v3231 = vld [vmem:[%s2 + $0x3d0] sm:$0xff]
        %v3232 = vld [vmem:[%s2 + $0x3d8] sm:$0xff]
        %v3233 = vld [vmem:[%s2 + $0x3e0] sm:$0xff]
        %v3234 = vld [vmem:[%s2 + $0x3e8] sm:$0xff]
        %v3235 = vld [vmem:[%s2 + $0x3f0] sm:$0xff]
        %v3236 = vld [vmem:[%s2 + $0x3f8] sm:$0xff]
        %v3237 = vld [vmem:[%s2 + $0x400] sm:$0xff]
        %v3238 = vld [vmem:[%s2 + $0x408] sm:$0xff]
        %v3239 = vld [vmem:[%s2 + $0x410] sm:$0xff]
        %v3240 = vld [vmem:[%s2 + $0x418] sm:$0xff]
        %v3241 = vld [vmem:[%s2 + $0x420] sm:$0xff]
        %v3242 = vld [vmem:[%s2 + $0x428] sm:$0xff]
        %v3243 = vld [vmem:[%s2 + $0x430] sm:$0xff]
        %v3244 = vld [vmem:[%s2 + $0x438] sm:$0xff]
        %v3245 = vld [vmem:[%s2 + $0x440] sm:$0xff]
        %v3246 = vld [vmem:[%s2 + $0x448] sm:$0xff]
        %v3247 = vld [vmem:[%s2 + $0x450] sm:$0xff]
        %v3248 = vld [vmem:[%s2 + $0x458] sm:$0xff]
        %v3249 = vld [vmem:[%s2 + $0x460] sm:$0xff]
        %v3250 = vld [vmem:[%s2 + $0x468] sm:$0xff]
        %v3251 = vld [vmem:[%s2 + $0x470] sm:$0xff]
        %v3252 = vld [vmem:[%s2 + $0x478] sm:$0xff]
        %v3253 = vld [vmem:[%s2 + $0x480] sm:$0xff]
        %v3254 = vld [vmem:[%s2 + $0x488] sm:$0xff]
        %v3255 = vld [vmem:[%s2 + $0x490] sm:$0xff]
        %v3256 = vld [vmem:[%s2 + $0x498] sm:$0xff]
        %v3257 = vld [vmem:[%s2 + $0x4a0] sm:$0xff]
        %v3258 = vld [vmem:[%s2 + $0x4a8] sm:$0xff]
        %v3259 = vld [vmem:[%s2 + $0x4b0] sm:$0xff]
        %v3260 = vld [vmem:[%s2 + $0x4b8] sm:$0xff]
        %v3261 = vld [vmem:[%s2 + $0x4c0] sm:$0xff]
        %v3262 = vld [vmem:[%s2 + $0x4c8] sm:$0xff]
        %v3263 = vld [vmem:[%s2 + $0x4d0] sm:$0xff]
        %v3264 = vld [vmem:[%s2 + $0x4d8] sm:$0xff]
        %v3265 = vld [vmem:[%s2 + $0x4e0] sm:$0xff]
        %v3266 = vld [vmem:[%s2 + $0x4e8] sm:$0xff]
        %v3267 = vld [vmem:[%s2 + $0x4f0] sm:$0xff]
        %v3268 = vld [vmem:[%s2 + $0x4f8] sm:$0xff]
        %v3269 = vld [vmem:[%s2 + $0x500] sm:$0xff]
        %v3270 = vld [vmem:[%s2 + $0x508] sm:$0xff]
        %v3271 = vld [vmem:[%s2 + $0x510] sm:$0xff]
        %v3272 = vld [vmem:[%s2 + $0x518] sm:$0xff]
        %v3273 = vld [vmem:[%s2 + $0x520] sm:$0xff]
        %v3274 = vld [vmem:[%s2 + $0x528] sm:$0xff]
        %v3275 = vld [vmem:[%s2 + $0x530] sm:$0xff]
        %v3276 = vld [vmem:[%s2 + $0x538] sm:$0xff]
        %v3277 = vld [vmem:[%s2 + $0x540] sm:$0xff]
        %v3278 = vld [vmem:[%s2 + $0x548] sm:$0xff]
        %v3279 = vld [vmem:[%s2 + $0x550] sm:$0xff]
        %v3280 = vld [vmem:[%s2 + $0x558] sm:$0xff]
        %v3281 = vld [vmem:[%s2 + $0x560] sm:$0xff]
        %v3282 = vld [vmem:[%s2 + $0x568] sm:$0xff]
        %v3283 = vld [vmem:[%s2 + $0x570] sm:$0xff]
        %v3284 = vld [vmem:[%s2 + $0x578] sm:$0xff]
        %v3285 = vld [vmem:[%s2 + $0x580] sm:$0xff]
        %v3286 = vld [vmem:[%s2 + $0x588] sm:$0xff]
        %v3287 = vld [vmem:[%s2 + $0x590] sm:$0xff]
        %v3288 = vld [vmem:[%s2 + $0x598] sm:$0xff]
        %v3289 = vld [vmem:[%s2 + $0x5a0] sm:$0xff]
        %v3290 = vld [vmem:[%s2 + $0x5a8] sm:$0xff]
        %v3291 = vld [vmem:[%s2 + $0x5b0] sm:$0xff]
        %v3292 = vld [vmem:[%s2 + $0x5b8] sm:$0xff]
        %v3293 = vld [vmem:[%s2 + $0x5c0] sm:$0xff]
        %v3294 = vld [vmem:[%s2 + $0x5c8] sm:$0xff]
        %v3295 = vld [vmem:[%s2 + $0x5d0] sm:$0xff]
        %v3296 = vld [vmem:[%s2 + $0x5d8] sm:$0xff]
        %v3297 = vld [vmem:[%s2 + $0x5e0] sm:$0xff]
        %v3298 = vld [vmem:[%s2 + $0x5e8] sm:$0xff]
        %v3299 = vld [vmem:[%s2 + $0x5f0] sm:$0xff]
        %v3300 = vld [vmem:[%s2 + $0x5f8] sm:$0xff]
        %v3301 = vld [vmem:[%s2 + $0x600] sm:$0xff]
        %v3302 = vld [vmem:[%s2 + $0x608] sm:$0xff]
        %v3303 = vld [vmem:[%s2 + $0x610] sm:$0xff]
        %v3304 = vld [vmem:[%s2 + $0x618] sm:$0xff]
        %v3305 = vld [vmem:[%s2 + $0x620] sm:$0xff]
        %v3306 = vld [vmem:[%s2 + $0x628] sm:$0xff]
        %v3307 = vld [vmem:[%s2 + $0x630] sm:$0xff]
        %v3308 = vld [vmem:[%s2 + $0x638] sm:$0xff]
        %v3309 = vld [vmem:[%s2 + $0x640] sm:$0xff]
        %v3310 = vld [vmem:[%s2 + $0x648] sm:$0xff]
        %v3311 = vld [vmem:[%s2 + $0x650] sm:$0xff]
        %v3312 = vld [vmem:[%s2 + $0x658] sm:$0xff]
        %v3313 = vld [vmem:[%s2 + $0x660] sm:$0xff]
        %v3314 = vld [vmem:[%s2 + $0x668] sm:$0xff]
        %v3315 = vld [vmem:[%s2 + $0x670] sm:$0xff]
        %v3316 = vld [vmem:[%s2 + $0x678] sm:$0xff]
        %v3317 = vld [vmem:[%s2 + $0x680] sm:$0xff]
        %v3318 = vld [vmem:[%s2 + $0x688] sm:$0xff]
        %v3319 = vld [vmem:[%s2 + $0x690] sm:$0xff]
        %v3320 = vld [vmem:[%s2 + $0x698] sm:$0xff]
        %v3321 = vld [vmem:[%s2 + $0x6a0] sm:$0xff]
        %v3322 = vld [vmem:[%s2 + $0x6a8] sm:$0xff]
        %v3323 = vld [vmem:[%s2 + $0x6b0] sm:$0xff]
        %v3324 = vld [vmem:[%s2 + $0x6b8] sm:$0xff]
        %v3325 = vld [vmem:[%s2 + $0x6c0] sm:$0xff]
        %v3326 = vld [vmem:[%s2 + $0x6c8] sm:$0xff]
        %v3327 = vld [vmem:[%s2 + $0x6d0] sm:$0xff]
        %v3328 = vld [vmem:[%s2 + $0x6d8] sm:$0xff]
        %v3329 = vld [vmem:[%s2 + $0x6e0] sm:$0xff]
        %v3330 = vld [vmem:[%s2 + $0x6e8] sm:$0xff]
        %v3331 = vld [vmem:[%s2 + $0x6f0] sm:$0xff]
        %v3332 = vld [vmem:[%s2 + $0x6f8] sm:$0xff]
        %v3333 = vld [vmem:[%s2 + $0x700] sm:$0xff]
        %v3334 = vld [vmem:[%s2 + $0x708] sm:$0xff]
        %v3335 = vld [vmem:[%s2 + $0x710] sm:$0xff]
        %v3336 = vld [vmem:[%s2 + $0x718] sm:$0xff]
        %v3337 = vld [vmem:[%s2 + $0x720] sm:$0xff]
        %v3338 = vld [vmem:[%s2 + $0x728] sm:$0xff]
        %v3339 = vld [vmem:[%s2 + $0x730] sm:$0xff]
        %v3340 = vld [vmem:[%s2 + $0x738] sm:$0xff]
        %v3341 = vld [vmem:[%s2 + $0x740] sm:$0xff]
        %v3342 = vld [vmem:[%s2 + $0x748] sm:$0xff]
        %v3343 = vld [vmem:[%s2 + $0x750] sm:$0xff]
        %v3344 = vld [vmem:[%s2 + $0x758] sm:$0xff]
        %v3345 = vld [vmem:[%s2 + $0x760] sm:$0xff]
        %v3346 = vld [vmem:[%s2 + $0x768] sm:$0xff]
        %v3347 = vld [vmem:[%s2 + $0x770] sm:$0xff]
        %v3348 = vld [vmem:[%s2 + $0x778] sm:$0xff]
        %v3349 = vld [vmem:[%s2 + $0x780] sm:$0xff]
        %v3350 = vld [vmem:[%s2 + $0x788] sm:$0xff]
        %v3351 = vld [vmem:[%s2 + $0x790] sm:$0xff]
        %v3352 = vld [vmem:[%s2 + $0x798] sm:$0xff]
        %v3353 = vld [vmem:[%s2 + $0x7a0] sm:$0xff]
        %v3354 = vld [vmem:[%s2 + $0x7a8] sm:$0xff]
        %v3355 = vld [vmem:[%s2 + $0x7b0] sm:$0xff]
        %v3356 = vld [vmem:[%s2 + $0x7b8] sm:$0xff]
        %v3357 = vld [vmem:[%s2 + $0x7c0] sm:$0xff]
        %v3358 = vld [vmem:[%s2 + $0x7c8] sm:$0xff]
        %v3359 = vld [vmem:[%s2 + $0x7d0] sm:$0xff]
        %v3360 = vld [vmem:[%s2 + $0x7d8] sm:$0xff]
        %v3361 = vld [vmem:[%s2 + $0x7e0] sm:$0xff]
        %v3362 = vld [vmem:[%s2 + $0x7e8] sm:$0xff]
        %v3363 = vld [vmem:[%s2 + $0x7f0] sm:$0xff]
        %v3364 = vld [vmem:[%s2 + $0x7f8] sm:$0xff]
        %v3365 = vld [vmem:[%s2 + $0x800] sm:$0xff]
        %v3366 = vld [vmem:[%s2 + $0x808] sm:$0xff]
        %v3367 = vld [vmem:[%s2 + $0x810] sm:$0xff]
        %v3368 = vld [vmem:[%s2 + $0x818] sm:$0xff]
        %v3369 = vld [vmem:[%s2 + $0x820] sm:$0xff]
        %v3370 = vld [vmem:[%s2 + $0x828] sm:$0xff]
        %v3371 = vld [vmem:[%s2 + $0x830] sm:$0xff]
        %v3372 = vld [vmem:[%s2 + $0x838] sm:$0xff]
        %v3373 = vld [vmem:[%s2 + $0x840] sm:$0xff]
        %v3374 = vld [vmem:[%s2 + $0x848] sm:$0xff]
        %v3375 = vld [vmem:[%s2 + $0x850] sm:$0xff]
        %v3376 = vld [vmem:[%s2 + $0x858] sm:$0xff]
        %v3377 = vld [vmem:[%s2 + $0x860] sm:$0xff]
        %v3378 = vld [vmem:[%s2 + $0x868] sm:$0xff]
        %v3379 = vld [vmem:[%s2 + $0x870] sm:$0xff]
        %v3380 = vld [vmem:[%s2 + $0x878] sm:$0xff]
        %v3381 = vld [vmem:[%s2 + $0x880] sm:$0xff]
        %v3382 = vld [vmem:[%s2 + $0x888] sm:$0xff]
        %v3383 = vld [vmem:[%s2 + $0x890] sm:$0xff]
        %v3384 = vld [vmem:[%s2 + $0x898] sm:$0xff]
        %v3385 = vld [vmem:[%s2 + $0x8a0] sm:$0xff]
        %v3386 = vld [vmem:[%s2 + $0x8a8] sm:$0xff]
        %v3387 = vld [vmem:[%s2 + $0x8b0] sm:$0xff]
        %v3388 = vld [vmem:[%s2 + $0x8b8] sm:$0xff]
        %v3389 = vld [vmem:[%s2 + $0x8c0] sm:$0xff]
        %v3390 = vld [vmem:[%s2 + $0x8c8] sm:$0xff]
        %v3391 = vld [vmem:[%s2 + $0x8d0] sm:$0xff]
        %v3392 = vld [vmem:[%s2 + $0x8d8] sm:$0xff]
        %v3393 = vld [vmem:[%s2 + $0x8e0] sm:$0xff]
        %v3394 = vld [vmem:[%s2 + $0x8e8] sm:$0xff]
        %v3395 = vld [vmem:[%s2 + $0x8f0] sm:$0xff]
        %v3396 = vld [vmem:[%s2 + $0x8f8] sm:$0xff]
        %v3405 = vrot.slane %v3101, 7
        %v3406 = vrot.slane %v3102, 7
        %v3407 = vrot.slane %v3103, 7
        %v3408 = vrot.slane %v3104, 7
        %v3409 = vrot.slane %v3105, 7
        %v3410 = vrot.slane %v3106, 7
        %v3411 = vrot.slane %v3107, 7
        %v3412 = vrot.slane %v3108, 7
        %v3421 = vsel %vm586, 0.0, %v3405
        %v3422 = vsel %vm586, 0.0, %v3406
        %v3423 = vsel %vm586, 0.0, %v3407
        %v3424 = vsel %vm586, 0.0, %v3408
        %v3425 = vsel %vm586, 0.0, %v3409
        %v3426 = vsel %vm586, 0.0, %v3410
        %v3427 = vsel %vm586, 0.0, %v3411
        %v3428 = vsel %vm586, 0.0, %v3412
        %v3429 = vsel %vm586, %v3405, 0.0
        %v3430 = vsel %vm586, %v3406, 0.0
        %v3431 = vsel %vm586, %v3407, 0.0
        %v3432 = vsel %vm586, %v3408, 0.0
        %v3433 = vsel %vm586, %v3409, 0.0
        %v3434 = vsel %vm586, %v3410, 0.0
        %v3435 = vsel %vm586, %v3411, 0.0
        %v3436 = vsel %vm586, %v3412, 0.0
        %vm3452 = vcmask 1046528
        %v3453 = vrot.slane 0.0, 1
        %v3454 = vsel %vm3452, %v3453, %v3453
        %v3455 = vrot.slane %v3421, 1
        %v3456 = vrot.slane %v3429, 1
        %v3457 = vsel %vm3452, %v3455, %v3456
        %v3458 = vrot.slane %v3422, 1
        %v3459 = vrot.slane %v3430, 1
        %v3460 = vsel %vm3452, %v3458, %v3459
        %v3461 = vrot.slane %v3423, 1
        %v3462 = vrot.slane %v3431, 1
        %v3463 = vsel %vm3452, %v3461, %v3462
        %v3464 = vrot.slane %v3424, 1
        %v3465 = vrot.slane %v3432, 1
        %v3466 = vsel %vm3452, %v3464, %v3465
        %v3467 = vrot.slane %v3425, 1
        %v3468 = vrot.slane %v3433, 1
        %v3469 = vsel %vm3452, %v3467, %v3468
        %v3470 = vrot.slane %v3426, 1
        %v3471 = vrot.slane %v3434, 1
        %v3472 = vsel %vm3452, %v3470, %v3471
        %v3473 = vrot.slane %v3427, 1
        %v3474 = vrot.slane %v3435, 1
        %v3475 = vsel %vm3452, %v3473, %v3474
        %vm3476 = vcmask 1045504
        %v3477 = vrot.slane 0.0, 2
        %v3478 = vsel %vm3476, %v3477, %v3477
        %v3479 = vrot.slane %v3421, 2
        %v3480 = vrot.slane %v3429, 2
        %v3481 = vsel %vm3476, %v3479, %v3480
        %v3482 = vrot.slane %v3422, 2
        %v3483 = vrot.slane %v3430, 2
        %v3484 = vsel %vm3476, %v3482, %v3483
        %v3485 = vrot.slane %v3423, 2
        %v3486 = vrot.slane %v3431, 2
        %v3487 = vsel %vm3476, %v3485, %v3486
        %v3488 = vrot.slane %v3424, 2
        %v3489 = vrot.slane %v3432, 2
        %v3490 = vsel %vm3476, %v3488, %v3489
        %v3491 = vrot.slane %v3425, 2
        %v3492 = vrot.slane %v3433, 2
        %v3493 = vsel %vm3476, %v3491, %v3492
        %v3494 = vrot.slane %v3426, 2
        %v3495 = vrot.slane %v3434, 2
        %v3496 = vsel %vm3476, %v3494, %v3495
        %v3497 = vrot.slane %v3427, 2
        %v3498 = vrot.slane %v3435, 2
        %v3499 = vsel %vm3476, %v3497, %v3498
        %v3510 = vrot.slane %v3428, 1
        %v3511 = vrot.slane %v3436, 1
        %v3512 = vsel %vm3452, %v3510, %v3511
        %v3521 = vrot.slane %v3428, 2
        %v3522 = vrot.slane %v3436, 2
        %v3523 = vsel %vm3476, %v3521, %v3522
        %3524 = vrot.lane.b32.xlu0 %v3454, 64
        %v3525 = vpop.permute.xlu0 %3524
        %3526 = vrot.lane.b32.xlu0 %v3457, 64
        %v3527 = vpop.permute.xlu0 %3526
        %3528 = vrot.lane.b32.xlu0 %v3460, 64
        %v3529 = vpop.permute.xlu0 %3528
        %3530 = vrot.lane.b32.xlu0 %v3463, 64
        %v3531 = vpop.permute.xlu0 %3530
        %3532 = vrot.lane.b32.xlu0 %v3466, 64
        %v3533 = vpop.permute.xlu0 %3532
        %3534 = vrot.lane.b32.xlu0 %v3469, 64
        %v3535 = vpop.permute.xlu0 %3534
        %3536 = vrot.lane.b32.xlu0 %v3472, 64
        %v3537 = vpop.permute.xlu0 %3536
        %3538 = vrot.lane.b32.xlu0 %v3475, 64
        %v3539 = vpop.permute.xlu0 %3538
        %3548 = vrot.lane.b32.xlu0 %v3421, 64
        %v3549 = vpop.permute.xlu0 %3548
        %3550 = vrot.lane.b32.xlu0 %v3422, 64
        %v3551 = vpop.permute.xlu0 %3550
        %3552 = vrot.lane.b32.xlu0 %v3423, 64
        %v3553 = vpop.permute.xlu0 %3552
        %3554 = vrot.lane.b32.xlu0 %v3424, 64
        %v3555 = vpop.permute.xlu0 %3554
        %3556 = vrot.lane.b32.xlu0 %v3425, 64
        %v3557 = vpop.permute.xlu0 %3556
        %3558 = vrot.lane.b32.xlu0 %v3426, 64
        %v3559 = vpop.permute.xlu0 %3558
        %3560 = vrot.lane.b32.xlu0 %v3427, 64
        %v3561 = vpop.permute.xlu0 %3560
        %3562 = vrot.lane.b32.xlu0 %v3428, 64
        %v3563 = vpop.permute.xlu0 %3562
        %3572 = vrot.lane.b32.xlu0 %v3481, 64
        %v3573 = vpop.permute.xlu0 %3572
        %3574 = vrot.lane.b32.xlu0 %v3484, 64
        %v3575 = vpop.permute.xlu0 %3574
        %3576 = vrot.lane.b32.xlu0 %v3487, 64
        %v3577 = vpop.permute.xlu0 %3576
        %3578 = vrot.lane.b32.xlu0 %v3490, 64
        %v3579 = vpop.permute.xlu0 %3578
        %3580 = vrot.lane.b32.xlu0 %v3493, 64
        %v3581 = vpop.permute.xlu0 %3580
        %3582 = vrot.lane.b32.xlu0 %v3496, 64
        %v3583 = vpop.permute.xlu0 %3582
        %3584 = vrot.lane.b32.xlu0 %v3499, 64
        %v3585 = vpop.permute.xlu0 %3584
        %3586 = vrot.lane.b32.xlu0 %v3523, 64
        %v3587 = vpop.permute.xlu0 %3586
        %3596 = vrot.lane.b32.xlu0 %v3512, 64
        %v3597 = vpop.permute.xlu0 %3596
        %vm3599 = vcmask 523264
        %v3600 = vsel %vm3599, 0.0, %v3525
        %v3601 = vsel %vm3599, %v3421, %v3527
        %v3602 = vsel %vm3599, %v3422, %v3529
        %v3603 = vsel %vm3599, %v3423, %v3531
        %v3604 = vsel %vm3599, %v3424, %v3533
        %v3605 = vsel %vm3599, %v3425, %v3535
        %v3606 = vsel %vm3599, %v3426, %v3537
        %v3607 = vsel %vm3599, %v3427, %v3539
        %v3608 = vsel %vm3599, %v3478, %v3549
        %v3609 = vsel %vm3599, %v3481, %v3551
        %v3610 = vsel %vm3599, %v3484, %v3553
        %v3611 = vsel %vm3599, %v3487, %v3555
        %v3612 = vsel %vm3599, %v3490, %v3557
        %v3613 = vsel %vm3599, %v3493, %v3559
        %v3614 = vsel %vm3599, %v3496, %v3561
        %v3615 = vsel %vm3599, %v3499, %v3563
        %v3616 = vsel %vm3599, %v3457, %v3573
        %v3617 = vsel %vm3599, %v3460, %v3575
        %v3618 = vsel %vm3599, %v3463, %v3577
        %v3619 = vsel %vm3599, %v3466, %v3579
        %v3620 = vsel %vm3599, %v3469, %v3581
        %v3621 = vsel %vm3599, %v3472, %v3583
        %v3622 = vsel %vm3599, %v3475, %v3585
        %v3623 = vsel %vm3599, %v3512, %v3587
        %v3624 = vsel %vm3599, %v3428, %v3597
        %v3625 = vlaneseq
        %v3626 = vshrl.u32 %v3625, 7
        %v3627 = vsub.s32 1, %v3626
        %v3628 = vrot.slane %v196, %v3627
        %v3629 = vsel %vm3599, %v3484, 0
        %v3631 = vsel %vm3599, %v3487, 0
        %v3633 = vsel %vm3599, %v3490, 0
        %v3635 = vsel %vm3599, %v3493, 0
        %v3637 = vsel %vm3599, %v3496, 0
        %v3639 = vsel %vm3599, %v3499, 0
        %v3641 = vsel %vm3599, %v3523, 0
        %v3643 = vsel %vm3599, %v3478, 0
        %3645 = vmatprep.subr.mxu0 0.0
        %3646 = vmatpush1.msra.mxu0 %v3109
        %3647 = vmatprep.subr.mxu0 0.0
        %3648 = vmatpush1.msra.mxu0 %v3110
        %3649 = vmatprep.subr.mxu0 0.0
        %3650 = vmatpush1.msra.mxu0 %v3111
        %3651 = vmatprep.subr.mxu0 0.0
        %3652 = vmatpush1.msra.mxu0 %v3112
        %3653 = vmatprep.subr.mxu0 0.0
        %3654 = vmatpush1.msra.mxu0 %v3113
        %3655 = vmatprep.subr.mxu0 0.0
        %3656 = vmatpush1.msra.mxu0 %v3114
        %3657 = vmatprep.subr.mxu0 0.0
        %3658 = vmatpush1.msra.mxu0 %v3115
        %3659 = vmatprep.subr.mxu0 0.0
        %3660 = vmatpush1.msra.mxu0 %v3116
        %3661 = vmatprep.subr.mxu0 0.0
        %3662 = vmatpush1.msra.mxu0 %v3117
        %3663 = vmatprep.subr.mxu0 0.0
        %3664 = vmatpush1.msra.mxu0 %v3118
        %3665 = vmatprep.subr.mxu0 0.0
        %3666 = vmatpush1.msra.mxu0 %v3119
        %3667 = vmatprep.subr.mxu0 0.0
        %3668 = vmatpush1.msra.mxu0 %v3120
        %3669 = vmatprep.subr.mxu0 0.0
        %3670 = vmatpush1.msra.mxu0 %v3121
        %3671 = vmatprep.subr.mxu0 0.0
        %3672 = vmatpush1.msra.mxu0 %v3122
        %3673 = vmatprep.subr.mxu0 0.0
        %3674 = vmatpush1.msra.mxu0 %v3123
        %3675 = vmatprep.subr.mxu0 0.0
        %3676 = vmatpush1.msra.mxu0 %v3124
        %3677 = vmatprep.subr.mxu0 0.0
        %3678 = vmatpush1.msra.mxu0 %v3125
        %3679 = vmatprep.subr.mxu0 0.0
        %3680 = vmatpush1.msra.mxu0 %v3126
        %3681 = vmatprep.subr.mxu0 0.0
        %3682 = vmatpush1.msra.mxu0 %v3127
        %3683 = vmatprep.subr.mxu0 0.0
        %3684 = vmatpush1.msra.mxu0 %v3128
        %3685 = vmatprep.subr.mxu0 0.0
        %3686 = vmatpush1.msra.mxu0 %v3129
        %3687 = vmatprep.subr.mxu0 0.0
        %3688 = vmatpush1.msra.mxu0 %v3130
        %3689 = vmatprep.subr.mxu0 0.0
        %3690 = vmatpush1.msra.mxu0 %v3131
        %3691 = vmatprep.subr.mxu0 0.0
        %3692 = vmatpush1.msra.mxu0 %v3132
        %3693 = vmatprep.subr.mxu0 0.0
        %3694 = vmatpush1.msra.mxu0 %v3133
        %3695 = vmatprep.subr.mxu0 0.0
        %3696 = vmatpush1.msra.mxu0 %v3134
        %3697 = vmatprep.subr.mxu0 0.0
        %3698 = vmatpush1.msra.mxu0 %v3135
        %3699 = vmatprep.subr.mxu0 0.0
        %3700 = vmatpush1.msra.mxu0 %v3136
        %3701 = vmatprep.subr.mxu0 0.0
        %3702 = vmatpush1.msra.mxu0 %v3137
        %3703 = vmatprep.subr.mxu0 0.0
        %3704 = vmatpush1.msra.mxu0 %v3138
        %3705 = vmatprep.subr.mxu0 0.0
        %3706 = vmatpush1.msra.mxu0 %v3139
        %3707 = vmatprep.subr.mxu0 0.0
        %3708 = vmatpush1.msra.mxu0 %v3140
        %3709 = vmatprep.mubr.f32.mxu0 %v3608
        %3710 = vmatmul.mubr.f32.gmra.mrb[0].mxu0 %v3600
        %v3711 = vpop.f32.mrb[0].mxu0
        %v3712 = vadd.f32 %v3628, %v3711
        %v3713 = vpop.f32.mrb[0].mxu0
        %3714 = vmatprep.mubr.f32.mxu0 %v3609
        %3715 = vmatmul.mubr.f32.gmra.mrb[0].mxu0 %v3601
        %v3716 = vpop.f32.mrb[0].mxu0
        %v3717 = vadd.f32 %v3628, %v3716
        %v3718 = vpop.f32.mrb[0].mxu0
        %3719 = vmatprep.mubr.f32.mxu0 %v3610
        %3720 = vmatmul.mubr.f32.gmra.mrb[0].mxu0 %v3602
        %v3721 = vpop.f32.mrb[0].mxu0
        %v3722 = vadd.f32 %v3628, %v3721
        %v3723 = vpop.f32.mrb[0].mxu0
        %3724 = vmatprep.mubr.f32.mxu0 %v3611
        %3725 = vmatmul.mubr.f32.gmra.mrb[0].mxu0 %v3603
        %v3726 = vpop.f32.mrb[0].mxu0
        %v3727 = vadd.f32 %v3628, %v3726
        %v3728 = vpop.f32.mrb[0].mxu0
        %3729 = vmatprep.mubr.f32.mxu0 %v3612
        %3730 = vmatmul.mubr.f32.gmra.mrb[0].mxu0 %v3604
        %v3731 = vpop.f32.mrb[0].mxu0
        %v3732 = vadd.f32 %v3628, %v3731
        %v3733 = vpop.f32.mrb[0].mxu0
        %3734 = vmatprep.mubr.f32.mxu0 %v3613
        %3735 = vmatmul.mubr.f32.gmra.mrb[0].mxu0 %v3605
        %v3736 = vpop.f32.mrb[0].mxu0
        %v3737 = vadd.f32 %v3628, %v3736
        %v3738 = vpop.f32.mrb[0].mxu0
        %3739 = vmatprep.mubr.f32.mxu0 %v3614
        %3740 = vmatmul.mubr.f32.gmra.mrb[0].mxu0 %v3606
        %v3741 = vpop.f32.mrb[0].mxu0
        %v3742 = vadd.f32 %v3628, %v3741
        %v3743 = vpop.f32.mrb[0].mxu0
        %3744 = vmatprep.mubr.f32.mxu0 %v3615
        %3745 = vmatmul.mubr.f32.gmra.mrb[0].mxu0 %v3607
        %v3746 = vpop.f32.mrb[0].mxu0
        %v3747 = vadd.f32 %v3628, %v3746
        %v3748 = vpop.f32.mrb[0].mxu0
        %3749 = vdwg.mxu0
        %3750 = vmatprep.subr.mxu0 0.0
        %3751 = vmatpush1.msra.mxu0 %v3141
        %3752 = vmatprep.subr.mxu0 0.0
        %3753 = vmatpush1.msra.mxu0 %v3142
        %3754 = vmatprep.subr.mxu0 0.0
        %3755 = vmatpush1.msra.mxu0 %v3143
        %3756 = vmatprep.subr.mxu0 0.0
        %3757 = vmatpush1.msra.mxu0 %v3144
        %3758 = vmatprep.subr.mxu0 0.0
        %3759 = vmatpush1.msra.mxu0 %v3145
        %3760 = vmatprep.subr.mxu0 0.0
        %3761 = vmatpush1.msra.mxu0 %v3146
        %3762 = vmatprep.subr.mxu0 0.0
        %3763 = vmatpush1.msra.mxu0 %v3147
        %3764 = vmatprep.subr.mxu0 0.0
        %3765 = vmatpush1.msra.mxu0 %v3148
        %3766 = vmatprep.subr.mxu0 0.0
        %3767 = vmatpush1.msra.mxu0 %v3149
        %3768 = vmatprep.subr.mxu0 0.0
        %3769 = vmatpush1.msra.mxu0 %v3150
        %3770 = vmatprep.subr.mxu0 0.0
        %3771 = vmatpush1.msra.mxu0 %v3151
        %3772 = vmatprep.subr.mxu0 0.0
        %3773 = vmatpush1.msra.mxu0 %v3152
        %3774 = vmatprep.subr.mxu0 0.0
        %3775 = vmatpush1.msra.mxu0 %v3153
        %3776 = vmatprep.subr.mxu0 0.0
        %3777 = vmatpush1.msra.mxu0 %v3154
        %3778 = vmatprep.subr.mxu0 0.0
        %3779 = vmatpush1.msra.mxu0 %v3155
        %3780 = vmatprep.subr.mxu0 0.0
        %3781 = vmatpush1.msra.mxu0 %v3156
        %3782 = vmatprep.subr.mxu0 0.0
        %3783 = vmatpush1.msra.mxu0 %v3157
        %3784 = vmatprep.subr.mxu0 0.0
        %3785 = vmatpush1.msra.mxu0 %v3158
        %3786 = vmatprep.subr.mxu0 0.0
        %3787 = vmatpush1.msra.mxu0 %v3159
        %3788 = vmatprep.subr.mxu0 0.0
        %3789 = vmatpush1.msra.mxu0 %v3160
        %3790 = vmatprep.subr.mxu0 0.0
        %3791 = vmatpush1.msra.mxu0 %v3161
        %3792 = vmatprep.subr.mxu0 0.0
        %3793 = vmatpush1.msra.mxu0 %v3162
        %3794 = vmatprep.subr.mxu0 0.0
        %3795 = vmatpush1.msra.mxu0 %v3163
        %3796 = vmatprep.subr.mxu0 0.0
        %3797 = vmatpush1.msra.mxu0 %v3164
        %3798 = vmatprep.subr.mxu0 0.0
        %3799 = vmatpush1.msra.mxu0 %v3165
        %3800 = vmatprep.subr.mxu0 0.0
        %3801 = vmatpush1.msra.mxu0 %v3166
        %3802 = vmatprep.subr.mxu0 0.0
        %3803 = vmatpush1.msra.mxu0 %v3167
        %3804 = vmatprep.subr.mxu0 0.0
        %3805 = vmatpush1.msra.mxu0 %v3168
        %3806 = vmatprep.subr.mxu0 0.0
        %3807 = vmatpush1.msra.mxu0 %v3169
        %3808 = vmatprep.subr.mxu0 0.0
        %3809 = vmatpush1.msra.mxu0 %v3170
        %3810 = vmatprep.subr.mxu0 0.0
        %3811 = vmatpush1.msra.mxu0 %v3171
        %3812 = vmatprep.subr.mxu0 0.0
        %3813 = vmatpush1.msra.mxu0 %v3172
        %3814 = vmatprep.mubr.f32.mxu0 %v3602
        %3815 = vmatmul.mubr.f32.gmra.mrb[0].mxu0 %v3616
        %v3816 = vpop.f32.mrb[0].mxu0
        %v3817 = vadd.f32 %v3712, %v3816
        %v3818 = vpop.f32.mrb[0].mxu0
        %3819 = vmatprep.mubr.f32.mxu0 %v3603
        %3820 = vmatmul.mubr.f32.gmra.mrb[0].mxu0 %v3617
        %v3821 = vpop.f32.mrb[0].mxu0
        %v3822 = vadd.f32 %v3717, %v3821
        %v3823 = vpop.f32.mrb[0].mxu0
        %3824 = vmatprep.mubr.f32.mxu0 %v3604
        %3825 = vmatmul.mubr.f32.gmra.mrb[0].mxu0 %v3618
        %v3826 = vpop.f32.mrb[0].mxu0
        %v3827 = vadd.f32 %v3722, %v3826
        %v3828 = vpop.f32.mrb[0].mxu0
        %3829 = vmatprep.mubr.f32.mxu0 %v3605
        %3830 = vmatmul.mubr.f32.gmra.mrb[0].mxu0 %v3619
        %v3831 = vpop.f32.mrb[0].mxu0
        %v3832 = vadd.f32 %v3727, %v3831
        %v3833 = vpop.f32.mrb[0].mxu0
        %3834 = vmatprep.mubr.f32.mxu0 %v3606
        %3835 = vmatmul.mubr.f32.gmra.mrb[0].mxu0 %v3620
        %v3836 = vpop.f32.mrb[0].mxu0
        %v3837 = vadd.f32 %v3732, %v3836
        %v3838 = vpop.f32.mrb[0].mxu0
        %3839 = vmatprep.mubr.f32.mxu0 %v3607
        %3840 = vmatmul.mubr.f32.gmra.mrb[0].mxu0 %v3621
        %v3841 = vpop.f32.mrb[0].mxu0
        %v3842 = vadd.f32 %v3737, %v3841
        %v3843 = vpop.f32.mrb[0].mxu0
        %3844 = vmatprep.mubr.f32.mxu0 %v3624
        %3845 = vmatmul.mubr.f32.gmra.mrb[0].mxu0 %v3622
        %v3846 = vpop.f32.mrb[0].mxu0
        %v3847 = vadd.f32 %v3742, %v3846
        %v3848 = vpop.f32.mrb[0].mxu0
        %3849 = vmatprep.mubr.f32.mxu0 %v3600
        %3850 = vmatmul.mubr.f32.gmra.mrb[0].mxu0 %v3623
        %v3851 = vpop.f32.mrb[0].mxu0
        %v3852 = vadd.f32 %v3747, %v3851
        %v3853 = vpop.f32.mrb[0].mxu0
        %3854 = vdwg.mxu0
        %3855 = vmatprep.subr.mxu0 0.0
        %3856 = vmatpush1.msra.mxu0 %v3173
        %3857 = vmatprep.subr.mxu0 0.0
        %3858 = vmatpush1.msra.mxu0 %v3174
        %3859 = vmatprep.subr.mxu0 0.0
        %3860 = vmatpush1.msra.mxu0 %v3175
        %3861 = vmatprep.subr.mxu0 0.0
        %3862 = vmatpush1.msra.mxu0 %v3176
        %3863 = vmatprep.subr.mxu0 0.0
        %3864 = vmatpush1.msra.mxu0 %v3177
        %3865 = vmatprep.subr.mxu0 0.0
        %3866 = vmatpush1.msra.mxu0 %v3178
        %3867 = vmatprep.subr.mxu0 0.0
        %3868 = vmatpush1.msra.mxu0 %v3179
        %3869 = vmatprep.subr.mxu0 0.0
        %3870 = vmatpush1.msra.mxu0 %v3180
        %3871 = vmatprep.subr.mxu0 0.0
        %3872 = vmatpush1.msra.mxu0 0.0
        %3873 = vmatprep.subr.mxu0 0.0
        %3874 = vmatpush1.msra.mxu0 0.0
        %3875 = vmatprep.subr.mxu0 0.0
        %3876 = vmatpush1.msra.mxu0 0.0
        %3877 = vmatprep.subr.mxu0 0.0
        %3878 = vmatpush1.msra.mxu0 0.0
        %3879 = vmatprep.subr.mxu0 0.0
        %3880 = vmatpush1.msra.mxu0 0.0
        %3881 = vmatprep.subr.mxu0 0.0
        %3882 = vmatpush1.msra.mxu0 0.0
        %3883 = vmatprep.subr.mxu0 0.0
        %3884 = vmatpush1.msra.mxu0 0.0
        %3885 = vmatprep.subr.mxu0 0.0
        %3886 = vmatpush1.msra.mxu0 0.0
        %3887 = vmatprep.subr.mxu0 0.0
        %3888 = vmatpush1.msra.mxu0 0.0
        %3889 = vmatprep.subr.mxu0 0.0
        %3890 = vmatpush1.msra.mxu0 0.0
        %3891 = vmatprep.subr.mxu0 0.0
        %3892 = vmatpush1.msra.mxu0 0.0
        %3893 = vmatprep.subr.mxu0 0.0
        %3894 = vmatpush1.msra.mxu0 0.0
        %3895 = vmatprep.subr.mxu0 0.0
        %3896 = vmatpush1.msra.mxu0 0.0
        %3897 = vmatprep.subr.mxu0 0.0
        %3898 = vmatpush1.msra.mxu0 0.0
        %3899 = vmatprep.subr.mxu0 0.0
        %3900 = vmatpush1.msra.mxu0 0.0
        %3901 = vmatprep.subr.mxu0 0.0
        %3902 = vmatpush1.msra.mxu0 0.0
        %3903 = vmatprep.subr.mxu0 0.0
        %3904 = vmatpush1.msra.mxu0 0.0
        %3905 = vmatprep.subr.mxu0 0.0
        %3906 = vmatpush1.msra.mxu0 0.0
        %3907 = vmatprep.subr.mxu0 0.0
        %3908 = vmatpush1.msra.mxu0 0.0
        %3909 = vmatprep.subr.mxu0 0.0
        %3910 = vmatpush1.msra.mxu0 0.0
        %3911 = vmatprep.subr.mxu0 0.0
        %3912 = vmatpush1.msra.mxu0 0.0
        %3913 = vmatprep.subr.mxu0 0.0
        %3914 = vmatpush1.msra.mxu0 0.0
        %3915 = vmatprep.subr.mxu0 0.0
        %3916 = vmatpush1.msra.mxu0 0.0
        %3917 = vmatprep.subr.mxu0 0.0
        %3918 = vmatpush1.msra.mxu0 0.0
        %3919 = vmatprep.mubr.f32.mxu0 0.0
        %3920 = vmatmul.mubr.f32.gmra.mrb[0].mxu0 %v3629
        %v3921 = vpop.f32.mrb[0].mxu0
        %v3922 = vadd.f32 %v3817, %v3921
        %v3923 = vpop.f32.mrb[0].mxu0
        %3924 = vmatprep.mubr.f32.mxu0 0.0
        %3925 = vmatmul.mubr.f32.gmra.mrb[0].mxu0 %v3631
        %v3926 = vpop.f32.mrb[0].mxu0
        %v3927 = vadd.f32 %v3822, %v3926
        %v3928 = vpop.f32.mrb[0].mxu0
        %3929 = vmatprep.mubr.f32.mxu0 0.0
        %3930 = vmatmul.mubr.f32.gmra.mrb[0].mxu0 %v3633
        %v3931 = vpop.f32.mrb[0].mxu0
        %v3932 = vadd.f32 %v3827, %v3931
        %v3933 = vpop.f32.mrb[0].mxu0
        %3934 = vmatprep.mubr.f32.mxu0 0.0
        %3935 = vmatmul.mubr.f32.gmra.mrb[0].mxu0 %v3635
        %v3936 = vpop.f32.mrb[0].mxu0
        %v3937 = vadd.f32 %v3832, %v3936
        %v3938 = vpop.f32.mrb[0].mxu0
        %3939 = vmatprep.mubr.f32.mxu0 0.0
        %3940 = vmatmul.mubr.f32.gmra.mrb[0].mxu0 %v3637
        %v3941 = vpop.f32.mrb[0].mxu0
        %v3942 = vadd.f32 %v3837, %v3941
        %v3943 = vpop.f32.mrb[0].mxu0
        %3944 = vmatprep.mubr.f32.mxu0 0.0
        %3945 = vmatmul.mubr.f32.gmra.mrb[0].mxu0 %v3639
        %v3946 = vpop.f32.mrb[0].mxu0
        %v3947 = vadd.f32 %v3842, %v3946
        %v3948 = vpop.f32.mrb[0].mxu0
        %3949 = vmatprep.mubr.f32.mxu0 0.0
        %3950 = vmatmul.mubr.f32.gmra.mrb[0].mxu0 %v3641
        %v3951 = vpop.f32.mrb[0].mxu0
        %v3952 = vadd.f32 %v3847, %v3951
        %v3953 = vpop.f32.mrb[0].mxu0
        %3954 = vmatprep.mubr.f32.mxu0 0.0
        %3955 = vmatmul.mubr.f32.gmra.mrb[0].mxu0 %v3643
        %v3956 = vpop.f32.mrb[0].mxu0
        %v3957 = vadd.f32 %v3852, %v3956
        %v3958 = vpop.f32.mrb[0].mxu0
        %3959 = vdwg.mxu0
        %v3960 = vmax.f32 %v3922, 0.0
        %v3961 = vmax.f32 %v3927, 0.0
        %v3962 = vmax.f32 %v3932, 0.0
        %v3963 = vmax.f32 %v3937, 0.0
        %v3964 = vmax.f32 %v3942, 0.0
        %v3965 = vmax.f32 %v3947, 0.0
        %v3966 = vmax.f32 %v3952, 0.0
        %v3967 = vmax.f32 %v3957, 0.0
        %v3976 = vrot.slane %v3960, 7
        %v3977 = vrot.slane %v3961, 7
        %v3978 = vrot.slane %v3962, 7
        %v3979 = vrot.slane %v3963, 7
        %v3980 = vrot.slane %v3964, 7
        %v3981 = vrot.slane %v3965, 7
        %v3982 = vrot.slane %v3966, 7
        %v3983 = vrot.slane %v3967, 7
        %v3992 = vsel %vm586, 0.0, %v3976
        %v3993 = vsel %vm586, 0.0, %v3977
        %v3994 = vsel %vm586, 0.0, %v3978
        %v3995 = vsel %vm586, 0.0, %v3979
        %v3996 = vsel %vm586, 0.0, %v3980
        %v3997 = vsel %vm586, 0.0, %v3981
        %v3998 = vsel %vm586, 0.0, %v3982
        %v3999 = vsel %vm586, 0.0, %v3983
        %v4000 = vsel %vm586, %v3976, 0.0
        %v4001 = vsel %vm586, %v3977, 0.0
        %v4002 = vsel %vm586, %v3978, 0.0
        %v4003 = vsel %vm586, %v3979, 0.0
        %v4004 = vsel %vm586, %v3980, 0.0
        %v4005 = vsel %vm586, %v3981, 0.0
        %v4006 = vsel %vm586, %v3982, 0.0
        %v4007 = vsel %vm586, %v3983, 0.0
        %v4022 = vrot.slane %v3992, 1
        %v4023 = vrot.slane %v4000, 1
        %v4024 = vsel %vm3452, %v4022, %v4023
        %v4025 = vrot.slane %v3993, 1
        %v4026 = vrot.slane %v4001, 1
        %v4027 = vsel %vm3452, %v4025, %v4026
        %v4028 = vrot.slane %v3994, 1
        %v4029 = vrot.slane %v4002, 1
        %v4030 = vsel %vm3452, %v4028, %v4029
        %v4031 = vrot.slane %v3995, 1
        %v4032 = vrot.slane %v4003, 1
        %v4033 = vsel %vm3452, %v4031, %v4032
        %v4034 = vrot.slane %v3996, 1
        %v4035 = vrot.slane %v4004, 1
        %v4036 = vsel %vm3452, %v4034, %v4035
        %v4037 = vrot.slane %v3997, 1
        %v4038 = vrot.slane %v4005, 1
        %v4039 = vsel %vm3452, %v4037, %v4038
        %v4040 = vrot.slane %v3998, 1
        %v4041 = vrot.slane %v4006, 1
        %v4042 = vsel %vm3452, %v4040, %v4041
        %v4043 = vrot.slane %v3992, 2
        %v4044 = vrot.slane %v4000, 2
        %v4045 = vsel %vm3476, %v4043, %v4044
        %v4046 = vrot.slane %v3993, 2
        %v4047 = vrot.slane %v4001, 2
        %v4048 = vsel %vm3476, %v4046, %v4047
        %v4049 = vrot.slane %v3994, 2
        %v4050 = vrot.slane %v4002, 2
        %v4051 = vsel %vm3476, %v4049, %v4050
        %v4052 = vrot.slane %v3995, 2
        %v4053 = vrot.slane %v4003, 2
        %v4054 = vsel %vm3476, %v4052, %v4053
        %v4055 = vrot.slane %v3996, 2
        %v4056 = vrot.slane %v4004, 2
        %v4057 = vsel %vm3476, %v4055, %v4056
        %v4058 = vrot.slane %v3997, 2
        %v4059 = vrot.slane %v4005, 2
        %v4060 = vsel %vm3476, %v4058, %v4059
        %v4061 = vrot.slane %v3998, 2
        %v4062 = vrot.slane %v4006, 2
        %v4063 = vsel %vm3476, %v4061, %v4062
        %v4073 = vrot.slane %v3999, 1
        %v4074 = vrot.slane %v4007, 1
        %v4075 = vsel %vm3452, %v4073, %v4074
        %v4084 = vrot.slane %v3999, 2
        %v4085 = vrot.slane %v4007, 2
        %v4086 = vsel %vm3476, %v4084, %v4085
        %4087 = vrot.lane.b32.xlu0 %v4024, 64
        %v4088 = vpop.permute.xlu0 %4087
        %4089 = vrot.lane.b32.xlu0 %v4027, 64
        %v4090 = vpop.permute.xlu0 %4089
        %4091 = vrot.lane.b32.xlu0 %v4030, 64
        %v4092 = vpop.permute.xlu0 %4091
        %4093 = vrot.lane.b32.xlu0 %v4033, 64
        %v4094 = vpop.permute.xlu0 %4093
        %4095 = vrot.lane.b32.xlu0 %v4036, 64
        %v4096 = vpop.permute.xlu0 %4095
        %4097 = vrot.lane.b32.xlu0 %v4039, 64
        %v4098 = vpop.permute.xlu0 %4097
        %4099 = vrot.lane.b32.xlu0 %v4042, 64
        %v4100 = vpop.permute.xlu0 %4099
        %4108 = vrot.lane.b32.xlu0 %v3992, 64
        %v4109 = vpop.permute.xlu0 %4108
        %4110 = vrot.lane.b32.xlu0 %v3993, 64
        %v4111 = vpop.permute.xlu0 %4110
        %4112 = vrot.lane.b32.xlu0 %v3994, 64
        %v4113 = vpop.permute.xlu0 %4112
        %4114 = vrot.lane.b32.xlu0 %v3995, 64
        %v4115 = vpop.permute.xlu0 %4114
        %4116 = vrot.lane.b32.xlu0 %v3996, 64
        %v4117 = vpop.permute.xlu0 %4116
        %4118 = vrot.lane.b32.xlu0 %v3997, 64
        %v4119 = vpop.permute.xlu0 %4118
        %4120 = vrot.lane.b32.xlu0 %v3998, 64
        %v4121 = vpop.permute.xlu0 %4120
        %4122 = vrot.lane.b32.xlu0 %v3999, 64
        %v4123 = vpop.permute.xlu0 %4122
        %4132 = vrot.lane.b32.xlu0 %v4045, 64
        %v4133 = vpop.permute.xlu0 %4132
        %4134 = vrot.lane.b32.xlu0 %v4048, 64
        %v4135 = vpop.permute.xlu0 %4134
        %4136 = vrot.lane.b32.xlu0 %v4051, 64
        %v4137 = vpop.permute.xlu0 %4136
        %4138 = vrot.lane.b32.xlu0 %v4054, 64
        %v4139 = vpop.permute.xlu0 %4138
        %4140 = vrot.lane.b32.xlu0 %v4057, 64
        %v4141 = vpop.permute.xlu0 %4140
        %4142 = vrot.lane.b32.xlu0 %v4060, 64
        %v4143 = vpop.permute.xlu0 %4142
        %4144 = vrot.lane.b32.xlu0 %v4063, 64
        %v4145 = vpop.permute.xlu0 %4144
        %4146 = vrot.lane.b32.xlu0 %v4086, 64
        %v4147 = vpop.permute.xlu0 %4146
        %4156 = vrot.lane.b32.xlu0 %v4075, 64
        %v4157 = vpop.permute.xlu0 %4156
        %v4159 = vsel %vm3599, %v3992, %v4088
        %v4160 = vsel %vm3599, %v3993, %v4090
        %v4161 = vsel %vm3599, %v3994, %v4092
        %v4162 = vsel %vm3599, %v3995, %v4094
        %v4163 = vsel %vm3599, %v3996, %v4096
        %v4164 = vsel %vm3599, %v3997, %v4098
        %v4165 = vsel %vm3599, %v3998, %v4100
        %v4166 = vsel %vm3599, %v3478, %v4109
        %v4167 = vsel %vm3599, %v4045, %v4111
        %v4168 = vsel %vm3599, %v4048, %v4113
        %v4169 = vsel %vm3599, %v4051, %v4115
        %v4170 = vsel %vm3599, %v4054, %v4117
        %v4171 = vsel %vm3599, %v4057, %v4119
        %v4172 = vsel %vm3599, %v4060, %v4121
        %v4173 = vsel %vm3599, %v4063, %v4123
        %v4174 = vsel %vm3599, %v4024, %v4133
        %v4175 = vsel %vm3599, %v4027, %v4135
        %v4176 = vsel %vm3599, %v4030, %v4137
        %v4177 = vsel %vm3599, %v4033, %v4139
        %v4178 = vsel %vm3599, %v4036, %v4141
        %v4179 = vsel %vm3599, %v4039, %v4143
        %v4180 = vsel %vm3599, %v4042, %v4145
        %v4181 = vsel %vm3599, %v4075, %v4147
        %v4182 = vsel %vm3599, %v3999, %v4157
        %v4183 = vlaneseq
        %v4184 = vshrl.u32 %v4183, 7
        %v4185 = vsub.s32 2, %v4184
        %v4186 = vrot.slane %v196, %v4185
        %v4187 = vsel %vm3599, %v4048, 0
        %v4189 = vsel %vm3599, %v4051, 0
        %v4191 = vsel %vm3599, %v4054, 0
        %v4193 = vsel %vm3599, %v4057, 0
        %v4195 = vsel %vm3599, %v4060, 0
        %v4197 = vsel %vm3599, %v4063, 0
        %v4199 = vsel %vm3599, %v4086, 0
        %4201 = vmatprep.subr.mxu0 0.0
        %4202 = vmatpush1.msra.mxu0 %v3181
        %4203 = vmatprep.subr.mxu0 0.0
        %4204 = vmatpush1.msra.mxu0 %v3182
        %4205 = vmatprep.subr.mxu0 0.0
        %4206 = vmatpush1.msra.mxu0 %v3183
        %4207 = vmatprep.subr.mxu0 0.0
        %4208 = vmatpush1.msra.mxu0 %v3184
        %4209 = vmatprep.subr.mxu0 0.0
        %4210 = vmatpush1.msra.mxu0 %v3185
        %4211 = vmatprep.subr.mxu0 0.0
        %4212 = vmatpush1.msra.mxu0 %v3186
        %4213 = vmatprep.subr.mxu0 0.0
        %4214 = vmatpush1.msra.mxu0 %v3187
        %4215 = vmatprep.subr.mxu0 0.0
        %4216 = vmatpush1.msra.mxu0 %v3188
        %4217 = vmatprep.subr.mxu0 0.0
        %4218 = vmatpush1.msra.mxu0 %v3189
        %4219 = vmatprep.subr.mxu0 0.0
        %4220 = vmatpush1.msra.mxu0 %v3190
        %4221 = vmatprep.subr.mxu0 0.0
        %4222 = vmatpush1.msra.mxu0 %v3191
        %4223 = vmatprep.subr.mxu0 0.0
        %4224 = vmatpush1.msra.mxu0 %v3192
        %4225 = vmatprep.subr.mxu0 0.0
        %4226 = vmatpush1.msra.mxu0 %v3193
        %4227 = vmatprep.subr.mxu0 0.0
        %4228 = vmatpush1.msra.mxu0 %v3194
        %4229 = vmatprep.subr.mxu0 0.0
        %4230 = vmatpush1.msra.mxu0 %v3195
        %4231 = vmatprep.subr.mxu0 0.0
        %4232 = vmatpush1.msra.mxu0 %v3196
        %4233 = vmatprep.subr.mxu0 0.0
        %4234 = vmatpush1.msra.mxu0 %v3197
        %4235 = vmatprep.subr.mxu0 0.0
        %4236 = vmatpush1.msra.mxu0 %v3198
        %4237 = vmatprep.subr.mxu0 0.0
        %4238 = vmatpush1.msra.mxu0 %v3199
        %4239 = vmatprep.subr.mxu0 0.0
        %4240 = vmatpush1.msra.mxu0 %v3200
        %4241 = vmatprep.subr.mxu0 0.0
        %4242 = vmatpush1.msra.mxu0 %v3201
        %4243 = vmatprep.subr.mxu0 0.0
        %4244 = vmatpush1.msra.mxu0 %v3202
        %4245 = vmatprep.subr.mxu0 0.0
        %4246 = vmatpush1.msra.mxu0 %v3203
        %4247 = vmatprep.subr.mxu0 0.0
        %4248 = vmatpush1.msra.mxu0 %v3204
        %4249 = vmatprep.subr.mxu0 0.0
        %4250 = vmatpush1.msra.mxu0 %v3205
        %4251 = vmatprep.subr.mxu0 0.0
        %4252 = vmatpush1.msra.mxu0 %v3206
        %4253 = vmatprep.subr.mxu0 0.0
        %4254 = vmatpush1.msra.mxu0 %v3207
        %4255 = vmatprep.subr.mxu0 0.0
        %4256 = vmatpush1.msra.mxu0 %v3208
        %4257 = vmatprep.subr.mxu0 0.0
        %4258 = vmatpush1.msra.mxu0 %v3209
        %4259 = vmatprep.subr.mxu0 0.0
        %4260 = vmatpush1.msra.mxu0 %v3210
        %4261 = vmatprep.subr.mxu0 0.0
        %4262 = vmatpush1.msra.mxu0 %v3211
        %4263 = vmatprep.subr.mxu0 0.0
        %4264 = vmatpush1.msra.mxu0 %v3212
        %4265 = vmatprep.mubr.f32.mxu0 %v4166
        %4266 = vmatmul.mubr.f32.gmra.mrb[0].mxu0 %v3600
        %v4267 = vpop.f32.mrb[0].mxu0
        %v4268 = vadd.f32 %v4186, %v4267
        %v4269 = vpop.f32.mrb[0].mxu0
        %4270 = vmatprep.mubr.f32.mxu0 %v4167
        %4271 = vmatmul.mubr.f32.gmra.mrb[0].mxu0 %v4159
        %v4272 = vpop.f32.mrb[0].mxu0
        %v4273 = vadd.f32 %v4186, %v4272
        %v4274 = vpop.f32.mrb[0].mxu0
        %4275 = vmatprep.mubr.f32.mxu0 %v4168
        %4276 = vmatmul.mubr.f32.gmra.mrb[0].mxu0 %v4160
        %v4277 = vpop.f32.mrb[0].mxu0
        %v4278 = vadd.f32 %v4186, %v4277
        %v4279 = vpop.f32.mrb[0].mxu0
        %4280 = vmatprep.mubr.f32.mxu0 %v4169
        %4281 = vmatmul.mubr.f32.gmra.mrb[0].mxu0 %v4161
        %v4282 = vpop.f32.mrb[0].mxu0
        %v4283 = vadd.f32 %v4186, %v4282
        %v4284 = vpop.f32.mrb[0].mxu0
        %4285 = vmatprep.mubr.f32.mxu0 %v4170
        %4286 = vmatmul.mubr.f32.gmra.mrb[0].mxu0 %v4162
        %v4287 = vpop.f32.mrb[0].mxu0
        %v4288 = vadd.f32 %v4186, %v4287
        %v4289 = vpop.f32.mrb[0].mxu0
        %4290 = vmatprep.mubr.f32.mxu0 %v4171
        %4291 = vmatmul.mubr.f32.gmra.mrb[0].mxu0 %v4163
        %v4292 = vpop.f32.mrb[0].mxu0
        %v4293 = vadd.f32 %v4186, %v4292
        %v4294 = vpop.f32.mrb[0].mxu0
        %4295 = vmatprep.mubr.f32.mxu0 %v4172
        %4296 = vmatmul.mubr.f32.gmra.mrb[0].mxu0 %v4164
        %v4297 = vpop.f32.mrb[0].mxu0
        %v4298 = vadd.f32 %v4186, %v4297
        %v4299 = vpop.f32.mrb[0].mxu0
        %4300 = vmatprep.mubr.f32.mxu0 %v4173
        %4301 = vmatmul.mubr.f32.gmra.mrb[0].mxu0 %v4165
        %v4302 = vpop.f32.mrb[0].mxu0
        %v4303 = vadd.f32 %v4186, %v4302
        %v4304 = vpop.f32.mrb[0].mxu0
        %4305 = vdwg.mxu0
        %4306 = vmatprep.subr.mxu0 0.0
        %4307 = vmatpush1.msra.mxu0 %v3213
        %4308 = vmatprep.subr.mxu0 0.0
        %4309 = vmatpush1.msra.mxu0 %v3214
        %4310 = vmatprep.subr.mxu0 0.0
        %4311 = vmatpush1.msra.mxu0 %v3215
        %4312 = vmatprep.subr.mxu0 0.0
        %4313 = vmatpush1.msra.mxu0 %v3216
        %4314 = vmatprep.subr.mxu0 0.0
        %4315 = vmatpush1.msra.mxu0 %v3217
        %4316 = vmatprep.subr.mxu0 0.0
        %4317 = vmatpush1.msra.mxu0 %v3218
        %4318 = vmatprep.subr.mxu0 0.0
        %4319 = vmatpush1.msra.mxu0 %v3219
        %4320 = vmatprep.subr.mxu0 0.0
        %4321 = vmatpush1.msra.mxu0 %v3220
        %4322 = vmatprep.subr.mxu0 0.0
        %4323 = vmatpush1.msra.mxu0 %v3221
        %4324 = vmatprep.subr.mxu0 0.0
        %4325 = vmatpush1.msra.mxu0 %v3222
        %4326 = vmatprep.subr.mxu0 0.0
        %4327 = vmatpush1.msra.mxu0 %v3223
        %4328 = vmatprep.subr.mxu0 0.0
        %4329 = vmatpush1.msra.mxu0 %v3224
        %4330 = vmatprep.subr.mxu0 0.0
        %4331 = vmatpush1.msra.mxu0 %v3225
        %4332 = vmatprep.subr.mxu0 0.0
        %4333 = vmatpush1.msra.mxu0 %v3226
        %4334 = vmatprep.subr.mxu0 0.0
        %4335 = vmatpush1.msra.mxu0 %v3227
        %4336 = vmatprep.subr.mxu0 0.0
        %4337 = vmatpush1.msra.mxu0 %v3228
        %4338 = vmatprep.subr.mxu0 0.0
        %4339 = vmatpush1.msra.mxu0 %v3229
        %4340 = vmatprep.subr.mxu0 0.0
        %4341 = vmatpush1.msra.mxu0 %v3230
        %4342 = vmatprep.subr.mxu0 0.0
        %4343 = vmatpush1.msra.mxu0 %v3231
        %4344 = vmatprep.subr.mxu0 0.0
        %4345 = vmatpush1.msra.mxu0 %v3232
        %4346 = vmatprep.subr.mxu0 0.0
        %4347 = vmatpush1.msra.mxu0 %v3233
        %4348 = vmatprep.subr.mxu0 0.0
        %4349 = vmatpush1.msra.mxu0 %v3234
        %4350 = vmatprep.subr.mxu0 0.0
        %4351 = vmatpush1.msra.mxu0 %v3235
        %4352 = vmatprep.subr.mxu0 0.0
        %4353 = vmatpush1.msra.mxu0 %v3236
        %4354 = vmatprep.subr.mxu0 0.0
        %4355 = vmatpush1.msra.mxu0 %v3237
        %4356 = vmatprep.subr.mxu0 0.0
        %4357 = vmatpush1.msra.mxu0 %v3238
        %4358 = vmatprep.subr.mxu0 0.0
        %4359 = vmatpush1.msra.mxu0 %v3239
        %4360 = vmatprep.subr.mxu0 0.0
        %4361 = vmatpush1.msra.mxu0 %v3240
        %4362 = vmatprep.subr.mxu0 0.0
        %4363 = vmatpush1.msra.mxu0 %v3241
        %4364 = vmatprep.subr.mxu0 0.0
        %4365 = vmatpush1.msra.mxu0 %v3242
        %4366 = vmatprep.subr.mxu0 0.0
        %4367 = vmatpush1.msra.mxu0 %v3243
        %4368 = vmatprep.subr.mxu0 0.0
        %4369 = vmatpush1.msra.mxu0 %v3244
        %4370 = vmatprep.mubr.f32.mxu0 %v4160
        %4371 = vmatmul.mubr.f32.gmra.mrb[0].mxu0 %v4174
        %v4372 = vpop.f32.mrb[0].mxu0
        %v4373 = vadd.f32 %v4268, %v4372
        %v4374 = vpop.f32.mrb[0].mxu0
        %4375 = vmatprep.mubr.f32.mxu0 %v4161
        %4376 = vmatmul.mubr.f32.gmra.mrb[0].mxu0 %v4175
        %v4377 = vpop.f32.mrb[0].mxu0
        %v4378 = vadd.f32 %v4273, %v4377
        %v4379 = vpop.f32.mrb[0].mxu0
        %4380 = vmatprep.mubr.f32.mxu0 %v4162
        %4381 = vmatmul.mubr.f32.gmra.mrb[0].mxu0 %v4176
        %v4382 = vpop.f32.mrb[0].mxu0
        %v4383 = vadd.f32 %v4278, %v4382
        %v4384 = vpop.f32.mrb[0].mxu0
        %4385 = vmatprep.mubr.f32.mxu0 %v4163
        %4386 = vmatmul.mubr.f32.gmra.mrb[0].mxu0 %v4177
        %v4387 = vpop.f32.mrb[0].mxu0
        %v4388 = vadd.f32 %v4283, %v4387
        %v4389 = vpop.f32.mrb[0].mxu0
        %4390 = vmatprep.mubr.f32.mxu0 %v4164
        %4391 = vmatmul.mubr.f32.gmra.mrb[0].mxu0 %v4178
        %v4392 = vpop.f32.mrb[0].mxu0
        %v4393 = vadd.f32 %v4288, %v4392
        %v4394 = vpop.f32.mrb[0].mxu0
        %4395 = vmatprep.mubr.f32.mxu0 %v4165
        %4396 = vmatmul.mubr.f32.gmra.mrb[0].mxu0 %v4179
        %v4397 = vpop.f32.mrb[0].mxu0
        %v4398 = vadd.f32 %v4293, %v4397
        %v4399 = vpop.f32.mrb[0].mxu0
        %4400 = vmatprep.mubr.f32.mxu0 %v4182
        %4401 = vmatmul.mubr.f32.gmra.mrb[0].mxu0 %v4180
        %v4402 = vpop.f32.mrb[0].mxu0
        %v4403 = vadd.f32 %v4298, %v4402
        %v4404 = vpop.f32.mrb[0].mxu0
        %4405 = vmatprep.mubr.f32.mxu0 %v3600
        %4406 = vmatmul.mubr.f32.gmra.mrb[0].mxu0 %v4181
        %v4407 = vpop.f32.mrb[0].mxu0
        %v4408 = vadd.f32 %v4303, %v4407
        %v4409 = vpop.f32.mrb[0].mxu0
        %4410 = vdwg.mxu0
        %4411 = vmatprep.subr.mxu0 0.0
        %4412 = vmatpush1.msra.mxu0 %v3245
        %4413 = vmatprep.subr.mxu0 0.0
        %4414 = vmatpush1.msra.mxu0 %v3246
        %4415 = vmatprep.subr.mxu0 0.0
        %4416 = vmatpush1.msra.mxu0 %v3247
        %4417 = vmatprep.subr.mxu0 0.0
        %4418 = vmatpush1.msra.mxu0 %v3248
        %4419 = vmatprep.subr.mxu0 0.0
        %4420 = vmatpush1.msra.mxu0 %v3249
        %4421 = vmatprep.subr.mxu0 0.0
        %4422 = vmatpush1.msra.mxu0 %v3250
        %4423 = vmatprep.subr.mxu0 0.0
        %4424 = vmatpush1.msra.mxu0 %v3251
        %4425 = vmatprep.subr.mxu0 0.0
        %4426 = vmatpush1.msra.mxu0 %v3252
        %4427 = vmatprep.subr.mxu0 0.0
        %4428 = vmatpush1.msra.mxu0 0.0
        %4429 = vmatprep.subr.mxu0 0.0
        %4430 = vmatpush1.msra.mxu0 0.0
        %4431 = vmatprep.subr.mxu0 0.0
        %4432 = vmatpush1.msra.mxu0 0.0
        %4433 = vmatprep.subr.mxu0 0.0
        %4434 = vmatpush1.msra.mxu0 0.0
        %4435 = vmatprep.subr.mxu0 0.0
        %4436 = vmatpush1.msra.mxu0 0.0
        %4437 = vmatprep.subr.mxu0 0.0
        %4438 = vmatpush1.msra.mxu0 0.0
        %4439 = vmatprep.subr.mxu0 0.0
        %4440 = vmatpush1.msra.mxu0 0.0
        %4441 = vmatprep.subr.mxu0 0.0
        %4442 = vmatpush1.msra.mxu0 0.0
        %4443 = vmatprep.subr.mxu0 0.0
        %4444 = vmatpush1.msra.mxu0 0.0
        %4445 = vmatprep.subr.mxu0 0.0
        %4446 = vmatpush1.msra.mxu0 0.0
        %4447 = vmatprep.subr.mxu0 0.0
        %4448 = vmatpush1.msra.mxu0 0.0
        %4449 = vmatprep.subr.mxu0 0.0
        %4450 = vmatpush1.msra.mxu0 0.0
        %4451 = vmatprep.subr.mxu0 0.0
        %4452 = vmatpush1.msra.mxu0 0.0
        %4453 = vmatprep.subr.mxu0 0.0
        %4454 = vmatpush1.msra.mxu0 0.0
        %4455 = vmatprep.subr.mxu0 0.0
        %4456 = vmatpush1.msra.mxu0 0.0
        %4457 = vmatprep.subr.mxu0 0.0
        %4458 = vmatpush1.msra.mxu0 0.0
        %4459 = vmatprep.subr.mxu0 0.0
        %4460 = vmatpush1.msra.mxu0 0.0
        %4461 = vmatprep.subr.mxu0 0.0
        %4462 = vmatpush1.msra.mxu0 0.0
        %4463 = vmatprep.subr.mxu0 0.0
        %4464 = vmatpush1.msra.mxu0 0.0
        %4465 = vmatprep.subr.mxu0 0.0
        %4466 = vmatpush1.msra.mxu0 0.0
        %4467 = vmatprep.subr.mxu0 0.0
        %4468 = vmatpush1.msra.mxu0 0.0
        %4469 = vmatprep.subr.mxu0 0.0
        %4470 = vmatpush1.msra.mxu0 0.0
        %4471 = vmatprep.subr.mxu0 0.0
        %4472 = vmatpush1.msra.mxu0 0.0
        %4473 = vmatprep.subr.mxu0 0.0
        %4474 = vmatpush1.msra.mxu0 0.0
        %4475 = vmatprep.mubr.f32.mxu0 0.0
        %4476 = vmatmul.mubr.f32.gmra.mrb[0].mxu0 %v4187
        %v4477 = vpop.f32.mrb[0].mxu0
        %v4478 = vadd.f32 %v4373, %v4477
        %v4479 = vpop.f32.mrb[0].mxu0
        %4480 = vmatprep.mubr.f32.mxu0 0.0
        %4481 = vmatmul.mubr.f32.gmra.mrb[0].mxu0 %v4189
        %v4482 = vpop.f32.mrb[0].mxu0
        %v4483 = vadd.f32 %v4378, %v4482
        %v4484 = vpop.f32.mrb[0].mxu0
        %4485 = vmatprep.mubr.f32.mxu0 0.0
        %4486 = vmatmul.mubr.f32.gmra.mrb[0].mxu0 %v4191
        %v4487 = vpop.f32.mrb[0].mxu0
        %v4488 = vadd.f32 %v4383, %v4487
        %v4489 = vpop.f32.mrb[0].mxu0
        %4490 = vmatprep.mubr.f32.mxu0 0.0
        %4491 = vmatmul.mubr.f32.gmra.mrb[0].mxu0 %v4193
        %v4492 = vpop.f32.mrb[0].mxu0
        %v4493 = vadd.f32 %v4388, %v4492
        %v4494 = vpop.f32.mrb[0].mxu0
        %4495 = vmatprep.mubr.f32.mxu0 0.0
        %4496 = vmatmul.mubr.f32.gmra.mrb[0].mxu0 %v4195
        %v4497 = vpop.f32.mrb[0].mxu0
        %v4498 = vadd.f32 %v4393, %v4497
        %v4499 = vpop.f32.mrb[0].mxu0
        %4500 = vmatprep.mubr.f32.mxu0 0.0
        %4501 = vmatmul.mubr.f32.gmra.mrb[0].mxu0 %v4197
        %v4502 = vpop.f32.mrb[0].mxu0
        %v4503 = vadd.f32 %v4398, %v4502
        %v4504 = vpop.f32.mrb[0].mxu0
        %4505 = vmatprep.mubr.f32.mxu0 0.0
        %4506 = vmatmul.mubr.f32.gmra.mrb[0].mxu0 %v4199
        %v4507 = vpop.f32.mrb[0].mxu0
        %v4508 = vadd.f32 %v4403, %v4507
        %v4509 = vpop.f32.mrb[0].mxu0
        %4510 = vmatprep.mubr.f32.mxu0 0.0
        %4511 = vmatmul.mubr.f32.gmra.mrb[0].mxu0 %v3643
        %v4512 = vpop.f32.mrb[0].mxu0
        %v4513 = vadd.f32 %v4408, %v4512
        %v4514 = vpop.f32.mrb[0].mxu0
        %4515 = vdwg.mxu0
        %v4516 = vadd.f32 %v4478, %v3101
        %v4517 = vadd.f32 %v4483, %v3102
        %v4518 = vadd.f32 %v4488, %v3103
        %v4519 = vadd.f32 %v4493, %v3104
        %v4520 = vadd.f32 %v4498, %v3105
        %v4521 = vadd.f32 %v4503, %v3106
        %v4522 = vadd.f32 %v4508, %v3107
        %v4523 = vadd.f32 %v4513, %v3108
        %v4524 = vmax.f32 %v4516, 0.0
        %v4525 = vmax.f32 %v4517, 0.0
        %v4526 = vmax.f32 %v4518, 0.0
        %v4527 = vmax.f32 %v4519, 0.0
        %v4528 = vmax.f32 %v4520, 0.0
        %v4529 = vmax.f32 %v4521, 0.0
        %v4530 = vmax.f32 %v4522, 0.0
        %v4531 = vmax.f32 %v4523, 0.0
        %v4540 = vrot.slane %v4524, 7
        %v4541 = vrot.slane %v4525, 7
        %v4542 = vrot.slane %v4526, 7
        %v4543 = vrot.slane %v4527, 7
        %v4544 = vrot.slane %v4528, 7
        %v4545 = vrot.slane %v4529, 7
        %v4546 = vrot.slane %v4530, 7
        %v4547 = vrot.slane %v4531, 7
        %v4556 = vsel %vm586, 0.0, %v4540
        %v4557 = vsel %vm586, 0.0, %v4541
        %v4558 = vsel %vm586, 0.0, %v4542
        %v4559 = vsel %vm586, 0.0, %v4543
        %v4560 = vsel %vm586, 0.0, %v4544
        %v4561 = vsel %vm586, 0.0, %v4545
        %v4562 = vsel %vm586, 0.0, %v4546
        %v4563 = vsel %vm586, 0.0, %v4547
        %v4564 = vsel %vm586, %v4540, 0.0
        %v4565 = vsel %vm586, %v4541, 0.0
        %v4566 = vsel %vm586, %v4542, 0.0
        %v4567 = vsel %vm586, %v4543, 0.0
        %v4568 = vsel %vm586, %v4544, 0.0
        %v4569 = vsel %vm586, %v4545, 0.0
        %v4570 = vsel %vm586, %v4546, 0.0
        %v4571 = vsel %vm586, %v4547, 0.0
        %v4586 = vrot.slane %v4556, 1
        %v4587 = vrot.slane %v4564, 1
        %v4588 = vsel %vm3452, %v4586, %v4587
        %v4589 = vrot.slane %v4557, 1
        %v4590 = vrot.slane %v4565, 1
        %v4591 = vsel %vm3452, %v4589, %v4590
        %v4592 = vrot.slane %v4558, 1
        %v4593 = vrot.slane %v4566, 1
        %v4594 = vsel %vm3452, %v4592, %v4593
        %v4595 = vrot.slane %v4559, 1
        %v4596 = vrot.slane %v4567, 1
        %v4597 = vsel %vm3452, %v4595, %v4596
        %v4598 = vrot.slane %v4560, 1
        %v4599 = vrot.slane %v4568, 1
        %v4600 = vsel %vm3452, %v4598, %v4599
        %v4601 = vrot.slane %v4561, 1
        %v4602 = vrot.slane %v4569, 1
        %v4603 = vsel %vm3452, %v4601, %v4602
        %v4604 = vrot.slane %v4562, 1
        %v4605 = vrot.slane %v4570, 1
        %v4606 = vsel %vm3452, %v4604, %v4605
        %v4607 = vrot.slane %v4556, 2
        %v4608 = vrot.slane %v4564, 2
        %v4609 = vsel %vm3476, %v4607, %v4608
        %v4610 = vrot.slane %v4557, 2
        %v4611 = vrot.slane %v4565, 2
        %v4612 = vsel %vm3476, %v4610, %v4611
        %v4613 = vrot.slane %v4558, 2
        %v4614 = vrot.slane %v4566, 2
        %v4615 = vsel %vm3476, %v4613, %v4614
        %v4616 = vrot.slane %v4559, 2
        %v4617 = vrot.slane %v4567, 2
        %v4618 = vsel %vm3476, %v4616, %v4617
        %v4619 = vrot.slane %v4560, 2
        %v4620 = vrot.slane %v4568, 2
        %v4621 = vsel %vm3476, %v4619, %v4620
        %v4622 = vrot.slane %v4561, 2
        %v4623 = vrot.slane %v4569, 2
        %v4624 = vsel %vm3476, %v4622, %v4623
        %v4625 = vrot.slane %v4562, 2
        %v4626 = vrot.slane %v4570, 2
        %v4627 = vsel %vm3476, %v4625, %v4626
        %v4637 = vrot.slane %v4563, 1
        %v4638 = vrot.slane %v4571, 1
        %v4639 = vsel %vm3452, %v4637, %v4638
        %v4648 = vrot.slane %v4563, 2
        %v4649 = vrot.slane %v4571, 2
        %v4650 = vsel %vm3476, %v4648, %v4649
        %4651 = vrot.lane.b32.xlu0 %v4588, 64
        %v4652 = vpop.permute.xlu0 %4651
        %4653 = vrot.lane.b32.xlu0 %v4591, 64
        %v4654 = vpop.permute.xlu0 %4653
        %4655 = vrot.lane.b32.xlu0 %v4594, 64
        %v4656 = vpop.permute.xlu0 %4655
        %4657 = vrot.lane.b32.xlu0 %v4597, 64
        %v4658 = vpop.permute.xlu0 %4657
        %4659 = vrot.lane.b32.xlu0 %v4600, 64
        %v4660 = vpop.permute.xlu0 %4659
        %4661 = vrot.lane.b32.xlu0 %v4603, 64
        %v4662 = vpop.permute.xlu0 %4661
        %4663 = vrot.lane.b32.xlu0 %v4606, 64
        %v4664 = vpop.permute.xlu0 %4663
        %4672 = vrot.lane.b32.xlu0 %v4556, 64
        %v4673 = vpop.permute.xlu0 %4672
        %4674 = vrot.lane.b32.xlu0 %v4557, 64
        %v4675 = vpop.permute.xlu0 %4674
        %4676 = vrot.lane.b32.xlu0 %v4558, 64
        %v4677 = vpop.permute.xlu0 %4676
        %4678 = vrot.lane.b32.xlu0 %v4559, 64
        %v4679 = vpop.permute.xlu0 %4678
        %4680 = vrot.lane.b32.xlu0 %v4560, 64
        %v4681 = vpop.permute.xlu0 %4680
        %4682 = vrot.lane.b32.xlu0 %v4561, 64
        %v4683 = vpop.permute.xlu0 %4682
        %4684 = vrot.lane.b32.xlu0 %v4562, 64
        %v4685 = vpop.permute.xlu0 %4684
        %4686 = vrot.lane.b32.xlu0 %v4563, 64
        %v4687 = vpop.permute.xlu0 %4686
        %4696 = vrot.lane.b32.xlu0 %v4609, 64
        %v4697 = vpop.permute.xlu0 %4696
        %4698 = vrot.lane.b32.xlu0 %v4612, 64
        %v4699 = vpop.permute.xlu0 %4698
        %4700 = vrot.lane.b32.xlu0 %v4615, 64
        %v4701 = vpop.permute.xlu0 %4700
        %4702 = vrot.lane.b32.xlu0 %v4618, 64
        %v4703 = vpop.permute.xlu0 %4702
        %4704 = vrot.lane.b32.xlu0 %v4621, 64
        %v4705 = vpop.permute.xlu0 %4704
        %4706 = vrot.lane.b32.xlu0 %v4624, 64
        %v4707 = vpop.permute.xlu0 %4706
        %4708 = vrot.lane.b32.xlu0 %v4627, 64
        %v4709 = vpop.permute.xlu0 %4708
        %4710 = vrot.lane.b32.xlu0 %v4650, 64
        %v4711 = vpop.permute.xlu0 %4710
        %4720 = vrot.lane.b32.xlu0 %v4639, 64
        %v4721 = vpop.permute.xlu0 %4720
        %v4723 = vsel %vm3599, %v4556, %v4652
        %v4724 = vsel %vm3599, %v4557, %v4654
        %v4725 = vsel %vm3599, %v4558, %v4656
        %v4726 = vsel %vm3599, %v4559, %v4658
        %v4727 = vsel %vm3599, %v4560, %v4660
        %v4728 = vsel %vm3599, %v4561, %v4662
        %v4729 = vsel %vm3599, %v4562, %v4664
        %v4730 = vsel %vm3599, %v3478, %v4673
        %v4731 = vsel %vm3599, %v4609, %v4675
        %v4732 = vsel %vm3599, %v4612, %v4677
        %v4733 = vsel %vm3599, %v4615, %v4679
        %v4734 = vsel %vm3599, %v4618, %v4681
        %v4735 = vsel %vm3599, %v4621, %v4683
        %v4736 = vsel %vm3599, %v4624, %v4685
        %v4737 = vsel %vm3599, %v4627, %v4687
        %v4738 = vsel %vm3599, %v4588, %v4697
        %v4739 = vsel %vm3599, %v4591, %v4699
        %v4740 = vsel %vm3599, %v4594, %v4701
        %v4741 = vsel %vm3599, %v4597, %v4703
        %v4742 = vsel %vm3599, %v4600, %v4705
        %v4743 = vsel %vm3599, %v4603, %v4707
        %v4744 = vsel %vm3599, %v4606, %v4709
        %v4745 = vsel %vm3599, %v4639, %v4711
        %v4746 = vsel %vm3599, %v4563, %v4721
        %v4747 = vlaneseq
        %v4748 = vshrl.u32 %v4747, 7
        %v4749 = vsub.s32 3, %v4748
        %v4750 = vrot.slane %v196, %v4749
        %v4751 = vsel %vm3599, %v4612, 0
        %v4753 = vsel %vm3599, %v4615, 0
        %v4755 = vsel %vm3599, %v4618, 0
        %v4757 = vsel %vm3599, %v4621, 0
        %v4759 = vsel %vm3599, %v4624, 0
        %v4761 = vsel %vm3599, %v4627, 0
        %v4763 = vsel %vm3599, %v4650, 0
        %4765 = vmatprep.subr.mxu0 0.0
        %4766 = vmatpush1.msra.mxu0 %v3253
        %4767 = vmatprep.subr.mxu0 0.0
        %4768 = vmatpush1.msra.mxu0 %v3254
        %4769 = vmatprep.subr.mxu0 0.0
        %4770 = vmatpush1.msra.mxu0 %v3255
        %4771 = vmatprep.subr.mxu0 0.0
        %4772 = vmatpush1.msra.mxu0 %v3256
        %4773 = vmatprep.subr.mxu0 0.0
        %4774 = vmatpush1.msra.mxu0 %v3257
        %4775 = vmatprep.subr.mxu0 0.0
        %4776 = vmatpush1.msra.mxu0 %v3258
        %4777 = vmatprep.subr.mxu0 0.0
        %4778 = vmatpush1.msra.mxu0 %v3259
        %4779 = vmatprep.subr.mxu0 0.0
        %4780 = vmatpush1.msra.mxu0 %v3260
        %4781 = vmatprep.subr.mxu0 0.0
        %4782 = vmatpush1.msra.mxu0 %v3261
        %4783 = vmatprep.subr.mxu0 0.0
        %4784 = vmatpush1.msra.mxu0 %v3262
        %4785 = vmatprep.subr.mxu0 0.0
        %4786 = vmatpush1.msra.mxu0 %v3263
        %4787 = vmatprep.subr.mxu0 0.0
        %4788 = vmatpush1.msra.mxu0 %v3264
        %4789 = vmatprep.subr.mxu0 0.0
        %4790 = vmatpush1.msra.mxu0 %v3265
        %4791 = vmatprep.subr.mxu0 0.0
        %4792 = vmatpush1.msra.mxu0 %v3266
        %4793 = vmatprep.subr.mxu0 0.0
        %4794 = vmatpush1.msra.mxu0 %v3267
        %4795 = vmatprep.subr.mxu0 0.0
        %4796 = vmatpush1.msra.mxu0 %v3268
        %4797 = vmatprep.subr.mxu0 0.0
        %4798 = vmatpush1.msra.mxu0 %v3269
        %4799 = vmatprep.subr.mxu0 0.0
        %4800 = vmatpush1.msra.mxu0 %v3270
        %4801 = vmatprep.subr.mxu0 0.0
        %4802 = vmatpush1.msra.mxu0 %v3271
        %4803 = vmatprep.subr.mxu0 0.0
        %4804 = vmatpush1.msra.mxu0 %v3272
        %4805 = vmatprep.subr.mxu0 0.0
        %4806 = vmatpush1.msra.mxu0 %v3273
        %4807 = vmatprep.subr.mxu0 0.0
        %4808 = vmatpush1.msra.mxu0 %v3274
        %4809 = vmatprep.subr.mxu0 0.0
        %4810 = vmatpush1.msra.mxu0 %v3275
        %4811 = vmatprep.subr.mxu0 0.0
        %4812 = vmatpush1.msra.mxu0 %v3276
        %4813 = vmatprep.subr.mxu0 0.0
        %4814 = vmatpush1.msra.mxu0 %v3277
        %4815 = vmatprep.subr.mxu0 0.0
        %4816 = vmatpush1.msra.mxu0 %v3278
        %4817 = vmatprep.subr.mxu0 0.0
        %4818 = vmatpush1.msra.mxu0 %v3279
        %4819 = vmatprep.subr.mxu0 0.0
        %4820 = vmatpush1.msra.mxu0 %v3280
        %4821 = vmatprep.subr.mxu0 0.0
        %4822 = vmatpush1.msra.mxu0 %v3281
        %4823 = vmatprep.subr.mxu0 0.0
        %4824 = vmatpush1.msra.mxu0 %v3282
        %4825 = vmatprep.subr.mxu0 0.0
        %4826 = vmatpush1.msra.mxu0 %v3283
        %4827 = vmatprep.subr.mxu0 0.0
        %4828 = vmatpush1.msra.mxu0 %v3284
        %4829 = vmatprep.mubr.f32.mxu0 %v4730
        %4830 = vmatmul.mubr.f32.gmra.mrb[0].mxu0 %v3600
        %v4831 = vpop.f32.mrb[0].mxu0
        %v4832 = vadd.f32 %v4750, %v4831
        %v4833 = vpop.f32.mrb[0].mxu0
        %4834 = vmatprep.mubr.f32.mxu0 %v4731
        %4835 = vmatmul.mubr.f32.gmra.mrb[0].mxu0 %v4723
        %v4836 = vpop.f32.mrb[0].mxu0
        %v4837 = vadd.f32 %v4750, %v4836
        %v4838 = vpop.f32.mrb[0].mxu0
        %4839 = vmatprep.mubr.f32.mxu0 %v4732
        %4840 = vmatmul.mubr.f32.gmra.mrb[0].mxu0 %v4724
        %v4841 = vpop.f32.mrb[0].mxu0
        %v4842 = vadd.f32 %v4750, %v4841
        %v4843 = vpop.f32.mrb[0].mxu0
        %4844 = vmatprep.mubr.f32.mxu0 %v4733
        %4845 = vmatmul.mubr.f32.gmra.mrb[0].mxu0 %v4725
        %v4846 = vpop.f32.mrb[0].mxu0
        %v4847 = vadd.f32 %v4750, %v4846
        %v4848 = vpop.f32.mrb[0].mxu0
        %4849 = vmatprep.mubr.f32.mxu0 %v4734
        %4850 = vmatmul.mubr.f32.gmra.mrb[0].mxu0 %v4726
        %v4851 = vpop.f32.mrb[0].mxu0
        %v4852 = vadd.f32 %v4750, %v4851
        %v4853 = vpop.f32.mrb[0].mxu0
        %4854 = vmatprep.mubr.f32.mxu0 %v4735
        %4855 = vmatmul.mubr.f32.gmra.mrb[0].mxu0 %v4727
        %v4856 = vpop.f32.mrb[0].mxu0
        %v4857 = vadd.f32 %v4750, %v4856
        %v4858 = vpop.f32.mrb[0].mxu0
        %4859 = vmatprep.mubr.f32.mxu0 %v4736
        %4860 = vmatmul.mubr.f32.gmra.mrb[0].mxu0 %v4728
        %v4861 = vpop.f32.mrb[0].mxu0
        %v4862 = vadd.f32 %v4750, %v4861
        %v4863 = vpop.f32.mrb[0].mxu0
        %4864 = vmatprep.mubr.f32.mxu0 %v4737
        %4865 = vmatmul.mubr.f32.gmra.mrb[0].mxu0 %v4729
        %v4866 = vpop.f32.mrb[0].mxu0
        %v4867 = vadd.f32 %v4750, %v4866
        %v4868 = vpop.f32.mrb[0].mxu0
        %4869 = vdwg.mxu0
        %4870 = vmatprep.subr.mxu0 0.0
        %4871 = vmatpush1.msra.mxu0 %v3285
        %4872 = vmatprep.subr.mxu0 0.0
        %4873 = vmatpush1.msra.mxu0 %v3286
        %4874 = vmatprep.subr.mxu0 0.0
        %4875 = vmatpush1.msra.mxu0 %v3287
        %4876 = vmatprep.subr.mxu0 0.0
        %4877 = vmatpush1.msra.mxu0 %v3288
        %4878 = vmatprep.subr.mxu0 0.0
        %4879 = vmatpush1.msra.mxu0 %v3289
        %4880 = vmatprep.subr.mxu0 0.0
        %4881 = vmatpush1.msra.mxu0 %v3290
        %4882 = vmatprep.subr.mxu0 0.0
        %4883 = vmatpush1.msra.mxu0 %v3291
        %4884 = vmatprep.subr.mxu0 0.0
        %4885 = vmatpush1.msra.mxu0 %v3292
        %4886 = vmatprep.subr.mxu0 0.0
        %4887 = vmatpush1.msra.mxu0 %v3293
        %4888 = vmatprep.subr.mxu0 0.0
        %4889 = vmatpush1.msra.mxu0 %v3294
        %4890 = vmatprep.subr.mxu0 0.0
        %4891 = vmatpush1.msra.mxu0 %v3295
        %4892 = vmatprep.subr.mxu0 0.0
        %4893 = vmatpush1.msra.mxu0 %v3296
        %4894 = vmatprep.subr.mxu0 0.0
        %4895 = vmatpush1.msra.mxu0 %v3297
        %4896 = vmatprep.subr.mxu0 0.0
        %4897 = vmatpush1.msra.mxu0 %v3298
        %4898 = vmatprep.subr.mxu0 0.0
        %4899 = vmatpush1.msra.mxu0 %v3299
        %4900 = vmatprep.subr.mxu0 0.0
        %4901 = vmatpush1.msra.mxu0 %v3300
        %4902 = vmatprep.subr.mxu0 0.0
        %4903 = vmatpush1.msra.mxu0 %v3301
        %4904 = vmatprep.subr.mxu0 0.0
        %4905 = vmatpush1.msra.mxu0 %v3302
        %4906 = vmatprep.subr.mxu0 0.0
        %4907 = vmatpush1.msra.mxu0 %v3303
        %4908 = vmatprep.subr.mxu0 0.0
        %4909 = vmatpush1.msra.mxu0 %v3304
        %4910 = vmatprep.subr.mxu0 0.0
        %4911 = vmatpush1.msra.mxu0 %v3305
        %4912 = vmatprep.subr.mxu0 0.0
        %4913 = vmatpush1.msra.mxu0 %v3306
        %4914 = vmatprep.subr.mxu0 0.0
        %4915 = vmatpush1.msra.mxu0 %v3307
        %4916 = vmatprep.subr.mxu0 0.0
        %4917 = vmatpush1.msra.mxu0 %v3308
        %4918 = vmatprep.subr.mxu0 0.0
        %4919 = vmatpush1.msra.mxu0 %v3309
        %4920 = vmatprep.subr.mxu0 0.0
        %4921 = vmatpush1.msra.mxu0 %v3310
        %4922 = vmatprep.subr.mxu0 0.0
        %4923 = vmatpush1.msra.mxu0 %v3311
        %4924 = vmatprep.subr.mxu0 0.0
        %4925 = vmatpush1.msra.mxu0 %v3312
        %4926 = vmatprep.subr.mxu0 0.0
        %4927 = vmatpush1.msra.mxu0 %v3313
        %4928 = vmatprep.subr.mxu0 0.0
        %4929 = vmatpush1.msra.mxu0 %v3314
        %4930 = vmatprep.subr.mxu0 0.0
        %4931 = vmatpush1.msra.mxu0 %v3315
        %4932 = vmatprep.subr.mxu0 0.0
        %4933 = vmatpush1.msra.mxu0 %v3316
        %4934 = vmatprep.mubr.f32.mxu0 %v4724
        %4935 = vmatmul.mubr.f32.gmra.mrb[0].mxu0 %v4738
        %v4936 = vpop.f32.mrb[0].mxu0
        %v4937 = vadd.f32 %v4832, %v4936
        %v4938 = vpop.f32.mrb[0].mxu0
        %4939 = vmatprep.mubr.f32.mxu0 %v4725
        %4940 = vmatmul.mubr.f32.gmra.mrb[0].mxu0 %v4739
        %v4941 = vpop.f32.mrb[0].mxu0
        %v4942 = vadd.f32 %v4837, %v4941
        %v4943 = vpop.f32.mrb[0].mxu0
        %4944 = vmatprep.mubr.f32.mxu0 %v4726
        %4945 = vmatmul.mubr.f32.gmra.mrb[0].mxu0 %v4740
        %v4946 = vpop.f32.mrb[0].mxu0
        %v4947 = vadd.f32 %v4842, %v4946
        %v4948 = vpop.f32.mrb[0].mxu0
        %4949 = vmatprep.mubr.f32.mxu0 %v4727
        %4950 = vmatmul.mubr.f32.gmra.mrb[0].mxu0 %v4741
        %v4951 = vpop.f32.mrb[0].mxu0
        %v4952 = vadd.f32 %v4847, %v4951
        %v4953 = vpop.f32.mrb[0].mxu0
        %4954 = vmatprep.mubr.f32.mxu0 %v4728
        %4955 = vmatmul.mubr.f32.gmra.mrb[0].mxu0 %v4742
        %v4956 = vpop.f32.mrb[0].mxu0
        %v4957 = vadd.f32 %v4852, %v4956
        %v4958 = vpop.f32.mrb[0].mxu0
        %4959 = vmatprep.mubr.f32.mxu0 %v4729
        %4960 = vmatmul.mubr.f32.gmra.mrb[0].mxu0 %v4743
        %v4961 = vpop.f32.mrb[0].mxu0
        %v4962 = vadd.f32 %v4857, %v4961
        %v4963 = vpop.f32.mrb[0].mxu0
        %4964 = vmatprep.mubr.f32.mxu0 %v4746
        %4965 = vmatmul.mubr.f32.gmra.mrb[0].mxu0 %v4744
        %v4966 = vpop.f32.mrb[0].mxu0
        %v4967 = vadd.f32 %v4862, %v4966
        %v4968 = vpop.f32.mrb[0].mxu0
        %4969 = vmatprep.mubr.f32.mxu0 %v3600
        %4970 = vmatmul.mubr.f32.gmra.mrb[0].mxu0 %v4745
        %v4971 = vpop.f32.mrb[0].mxu0
        %v4972 = vadd.f32 %v4867, %v4971
        %v4973 = vpop.f32.mrb[0].mxu0
        %4974 = vdwg.mxu0
        %4975 = vmatprep.subr.mxu0 0.0
        %4976 = vmatpush1.msra.mxu0 %v3317
        %4977 = vmatprep.subr.mxu0 0.0
        %4978 = vmatpush1.msra.mxu0 %v3318
        %4979 = vmatprep.subr.mxu0 0.0
        %4980 = vmatpush1.msra.mxu0 %v3319
        %4981 = vmatprep.subr.mxu0 0.0
        %4982 = vmatpush1.msra.mxu0 %v3320
        %4983 = vmatprep.subr.mxu0 0.0
        %4984 = vmatpush1.msra.mxu0 %v3321
        %4985 = vmatprep.subr.mxu0 0.0
        %4986 = vmatpush1.msra.mxu0 %v3322
        %4987 = vmatprep.subr.mxu0 0.0
        %4988 = vmatpush1.msra.mxu0 %v3323
        %4989 = vmatprep.subr.mxu0 0.0
        %4990 = vmatpush1.msra.mxu0 %v3324
        %4991 = vmatprep.subr.mxu0 0.0
        %4992 = vmatpush1.msra.mxu0 0.0
        %4993 = vmatprep.subr.mxu0 0.0
        %4994 = vmatpush1.msra.mxu0 0.0
        %4995 = vmatprep.subr.mxu0 0.0
        %4996 = vmatpush1.msra.mxu0 0.0
        %4997 = vmatprep.subr.mxu0 0.0
        %4998 = vmatpush1.msra.mxu0 0.0
        %4999 = vmatprep.subr.mxu0 0.0
        %5000 = vmatpush1.msra.mxu0 0.0
        %5001 = vmatprep.subr.mxu0 0.0
        %5002 = vmatpush1.msra.mxu0 0.0
        %5003 = vmatprep.subr.mxu0 0.0
        %5004 = vmatpush1.msra.mxu0 0.0
        %5005 = vmatprep.subr.mxu0 0.0
        %5006 = vmatpush1.msra.mxu0 0.0
        %5007 = vmatprep.subr.mxu0 0.0
        %5008 = vmatpush1.msra.mxu0 0.0
        %5009 = vmatprep.subr.mxu0 0.0
        %5010 = vmatpush1.msra.mxu0 0.0
        %5011 = vmatprep.subr.mxu0 0.0
        %5012 = vmatpush1.msra.mxu0 0.0
        %5013 = vmatprep.subr.mxu0 0.0
        %5014 = vmatpush1.msra.mxu0 0.0
        %5015 = vmatprep.subr.mxu0 0.0
        %5016 = vmatpush1.msra.mxu0 0.0
        %5017 = vmatprep.subr.mxu0 0.0
        %5018 = vmatpush1.msra.mxu0 0.0
        %5019 = vmatprep.subr.mxu0 0.0
        %5020 = vmatpush1.msra.mxu0 0.0
        %5021 = vmatprep.subr.mxu0 0.0
        %5022 = vmatpush1.msra.mxu0 0.0
        %5023 = vmatprep.subr.mxu0 0.0
        %5024 = vmatpush1.msra.mxu0 0.0
        %5025 = vmatprep.subr.mxu0 0.0
        %5026 = vmatpush1.msra.mxu0 0.0
        %5027 = vmatprep.subr.mxu0 0.0
        %5028 = vmatpush1.msra.mxu0 0.0
        %5029 = vmatprep.subr.mxu0 0.0
        %5030 = vmatpush1.msra.mxu0 0.0
        %5031 = vmatprep.subr.mxu0 0.0
        %5032 = vmatpush1.msra.mxu0 0.0
        %5033 = vmatprep.subr.mxu0 0.0
        %5034 = vmatpush1.msra.mxu0 0.0
        %5035 = vmatprep.subr.mxu0 0.0
        %5036 = vmatpush1.msra.mxu0 0.0
        %5037 = vmatprep.subr.mxu0 0.0
        %5038 = vmatpush1.msra.mxu0 0.0
        %5039 = vmatprep.mubr.f32.mxu0 0.0
        %5040 = vmatmul.mubr.f32.gmra.mrb[0].mxu0 %v4751
        %v5041 = vpop.f32.mrb[0].mxu0
        %v5042 = vadd.f32 %v4937, %v5041
        %v5043 = vpop.f32.mrb[0].mxu0
        %5044 = vmatprep.mubr.f32.mxu0 0.0
        %5045 = vmatmul.mubr.f32.gmra.mrb[0].mxu0 %v4753
        %v5046 = vpop.f32.mrb[0].mxu0
        %v5047 = vadd.f32 %v4942, %v5046
        %v5048 = vpop.f32.mrb[0].mxu0
        %5049 = vmatprep.mubr.f32.mxu0 0.0
        %5050 = vmatmul.mubr.f32.gmra.mrb[0].mxu0 %v4755
        %v5051 = vpop.f32.mrb[0].mxu0
        %v5052 = vadd.f32 %v4947, %v5051
        %v5053 = vpop.f32.mrb[0].mxu0
        %5054 = vmatprep.mubr.f32.mxu0 0.0
        %5055 = vmatmul.mubr.f32.gmra.mrb[0].mxu0 %v4757
        %v5056 = vpop.f32.mrb[0].mxu0
        %v5057 = vadd.f32 %v4952, %v5056
        %v5058 = vpop.f32.mrb[0].mxu0
        %5059 = vmatprep.mubr.f32.mxu0 0.0
        %5060 = vmatmul.mubr.f32.gmra.mrb[0].mxu0 %v4759
        %v5061 = vpop.f32.mrb[0].mxu0
        %v5062 = vadd.f32 %v4957, %v5061
        %v5063 = vpop.f32.mrb[0].mxu0
        %5064 = vmatprep.mubr.f32.mxu0 0.0
        %5065 = vmatmul.mubr.f32.gmra.mrb[0].mxu0 %v4761
        %v5066 = vpop.f32.mrb[0].mxu0
        %v5067 = vadd.f32 %v4962, %v5066
        %v5068 = vpop.f32.mrb[0].mxu0
        %5069 = vmatprep.mubr.f32.mxu0 0.0
        %5070 = vmatmul.mubr.f32.gmra.mrb[0].mxu0 %v4763
        %v5071 = vpop.f32.mrb[0].mxu0
        %v5072 = vadd.f32 %v4967, %v5071
        %v5073 = vpop.f32.mrb[0].mxu0
        %5074 = vmatprep.mubr.f32.mxu0 0.0
        %5075 = vmatmul.mubr.f32.gmra.mrb[0].mxu0 %v3643
        %v5076 = vpop.f32.mrb[0].mxu0
        %v5077 = vadd.f32 %v4972, %v5076
        %v5078 = vpop.f32.mrb[0].mxu0
        %5079 = vdwg.mxu0
        %v5080 = vmax.f32 %v5042, 0.0
        %v5081 = vmax.f32 %v5047, 0.0
        %v5082 = vmax.f32 %v5052, 0.0
        %v5083 = vmax.f32 %v5057, 0.0
        %v5084 = vmax.f32 %v5062, 0.0
        %v5085 = vmax.f32 %v5067, 0.0
        %v5086 = vmax.f32 %v5072, 0.0
        %v5087 = vmax.f32 %v5077, 0.0
        %v5096 = vrot.slane %v5080, 7
        %v5097 = vrot.slane %v5081, 7
        %v5098 = vrot.slane %v5082, 7
        %v5099 = vrot.slane %v5083, 7
        %v5100 = vrot.slane %v5084, 7
        %v5101 = vrot.slane %v5085, 7
        %v5102 = vrot.slane %v5086, 7
        %v5103 = vrot.slane %v5087, 7
        %v5112 = vsel %vm586, 0.0, %v5096
        %v5113 = vsel %vm586, 0.0, %v5097
        %v5114 = vsel %vm586, 0.0, %v5098
        %v5115 = vsel %vm586, 0.0, %v5099
        %v5116 = vsel %vm586, 0.0, %v5100
        %v5117 = vsel %vm586, 0.0, %v5101
        %v5118 = vsel %vm586, 0.0, %v5102
        %v5119 = vsel %vm586, 0.0, %v5103
        %v5120 = vsel %vm586, %v5096, 0.0
        %v5121 = vsel %vm586, %v5097, 0.0
        %v5122 = vsel %vm586, %v5098, 0.0
        %v5123 = vsel %vm586, %v5099, 0.0
        %v5124 = vsel %vm586, %v5100, 0.0
        %v5125 = vsel %vm586, %v5101, 0.0
        %v5126 = vsel %vm586, %v5102, 0.0
        %v5127 = vsel %vm586, %v5103, 0.0
        %v5142 = vrot.slane %v5112, 1
        %v5143 = vrot.slane %v5120, 1
        %v5144 = vsel %vm3452, %v5142, %v5143
        %v5145 = vrot.slane %v5113, 1
        %v5146 = vrot.slane %v5121, 1
        %v5147 = vsel %vm3452, %v5145, %v5146
        %v5148 = vrot.slane %v5114, 1
        %v5149 = vrot.slane %v5122, 1
        %v5150 = vsel %vm3452, %v5148, %v5149
        %v5151 = vrot.slane %v5115, 1
        %v5152 = vrot.slane %v5123, 1
        %v5153 = vsel %vm3452, %v5151, %v5152
        %v5154 = vrot.slane %v5116, 1
        %v5155 = vrot.slane %v5124, 1
        %v5156 = vsel %vm3452, %v5154, %v5155
        %v5157 = vrot.slane %v5117, 1
        %v5158 = vrot.slane %v5125, 1
        %v5159 = vsel %vm3452, %v5157, %v5158
        %v5160 = vrot.slane %v5118, 1
        %v5161 = vrot.slane %v5126, 1
        %v5162 = vsel %vm3452, %v5160, %v5161
        %v5163 = vrot.slane %v5112, 2
        %v5164 = vrot.slane %v5120, 2
        %v5165 = vsel %vm3476, %v5163, %v5164
        %v5166 = vrot.slane %v5113, 2
        %v5167 = vrot.slane %v5121, 2
        %v5168 = vsel %vm3476, %v5166, %v5167
        %v5169 = vrot.slane %v5114, 2
        %v5170 = vrot.slane %v5122, 2
        %v5171 = vsel %vm3476, %v5169, %v5170
        %v5172 = vrot.slane %v5115, 2
        %v5173 = vrot.slane %v5123, 2
        %v5174 = vsel %vm3476, %v5172, %v5173
        %v5175 = vrot.slane %v5116, 2
        %v5176 = vrot.slane %v5124, 2
        %v5177 = vsel %vm3476, %v5175, %v5176
        %v5178 = vrot.slane %v5117, 2
        %v5179 = vrot.slane %v5125, 2
        %v5180 = vsel %vm3476, %v5178, %v5179
        %v5181 = vrot.slane %v5118, 2
        %v5182 = vrot.slane %v5126, 2
        %v5183 = vsel %vm3476, %v5181, %v5182
        %v5193 = vrot.slane %v5119, 1
        %v5194 = vrot.slane %v5127, 1
        %v5195 = vsel %vm3452, %v5193, %v5194
        %v5204 = vrot.slane %v5119, 2
        %v5205 = vrot.slane %v5127, 2
        %v5206 = vsel %vm3476, %v5204, %v5205
        %5207 = vrot.lane.b32.xlu0 %v5144, 64
        %v5208 = vpop.permute.xlu0 %5207
        %5209 = vrot.lane.b32.xlu0 %v5147, 64
        %v5210 = vpop.permute.xlu0 %5209
        %5211 = vrot.lane.b32.xlu0 %v5150, 64
        %v5212 = vpop.permute.xlu0 %5211
        %5213 = vrot.lane.b32.xlu0 %v5153, 64
        %v5214 = vpop.permute.xlu0 %5213
        %5215 = vrot.lane.b32.xlu0 %v5156, 64
        %v5216 = vpop.permute.xlu0 %5215
        %5217 = vrot.lane.b32.xlu0 %v5159, 64
        %v5218 = vpop.permute.xlu0 %5217
        %5219 = vrot.lane.b32.xlu0 %v5162, 64
        %v5220 = vpop.permute.xlu0 %5219
        %5228 = vrot.lane.b32.xlu0 %v5112, 64
        %v5229 = vpop.permute.xlu0 %5228
        %5230 = vrot.lane.b32.xlu0 %v5113, 64
        %v5231 = vpop.permute.xlu0 %5230
        %5232 = vrot.lane.b32.xlu0 %v5114, 64
        %v5233 = vpop.permute.xlu0 %5232
        %5234 = vrot.lane.b32.xlu0 %v5115, 64
        %v5235 = vpop.permute.xlu0 %5234
        %5236 = vrot.lane.b32.xlu0 %v5116, 64
        %v5237 = vpop.permute.xlu0 %5236
        %5238 = vrot.lane.b32.xlu0 %v5117, 64
        %v5239 = vpop.permute.xlu0 %5238
        %5240 = vrot.lane.b32.xlu0 %v5118, 64
        %v5241 = vpop.permute.xlu0 %5240
        %5242 = vrot.lane.b32.xlu0 %v5119, 64
        %v5243 = vpop.permute.xlu0 %5242
        %5252 = vrot.lane.b32.xlu0 %v5165, 64
        %v5253 = vpop.permute.xlu0 %5252
        %5254 = vrot.lane.b32.xlu0 %v5168, 64
        %v5255 = vpop.permute.xlu0 %5254
        %5256 = vrot.lane.b32.xlu0 %v5171, 64
        %v5257 = vpop.permute.xlu0 %5256
        %5258 = vrot.lane.b32.xlu0 %v5174, 64
        %v5259 = vpop.permute.xlu0 %5258
        %5260 = vrot.lane.b32.xlu0 %v5177, 64
        %v5261 = vpop.permute.xlu0 %5260
        %5262 = vrot.lane.b32.xlu0 %v5180, 64
        %v5263 = vpop.permute.xlu0 %5262
        %5264 = vrot.lane.b32.xlu0 %v5183, 64
        %v5265 = vpop.permute.xlu0 %5264
        %5266 = vrot.lane.b32.xlu0 %v5206, 64
        %v5267 = vpop.permute.xlu0 %5266
        %5276 = vrot.lane.b32.xlu0 %v5195, 64
        %v5277 = vpop.permute.xlu0 %5276
        %v5279 = vsel %vm3599, %v5112, %v5208
        %v5280 = vsel %vm3599, %v5113, %v5210
        %v5281 = vsel %vm3599, %v5114, %v5212
        %v5282 = vsel %vm3599, %v5115, %v5214
        %v5283 = vsel %vm3599, %v5116, %v5216
        %v5284 = vsel %vm3599, %v5117, %v5218
        %v5285 = vsel %vm3599, %v5118, %v5220
        %v5286 = vsel %vm3599, %v3478, %v5229
        %v5287 = vsel %vm3599, %v5165, %v5231
        %v5288 = vsel %vm3599, %v5168, %v5233
        %v5289 = vsel %vm3599, %v5171, %v5235
        %v5290 = vsel %vm3599, %v5174, %v5237
        %v5291 = vsel %vm3599, %v5177, %v5239
        %v5292 = vsel %vm3599, %v5180, %v5241
        %v5293 = vsel %vm3599, %v5183, %v5243
        %v5294 = vsel %vm3599, %v5144, %v5253
        %v5295 = vsel %vm3599, %v5147, %v5255
        %v5296 = vsel %vm3599, %v5150, %v5257
        %v5297 = vsel %vm3599, %v5153, %v5259
        %v5298 = vsel %vm3599, %v5156, %v5261
        %v5299 = vsel %vm3599, %v5159, %v5263
        %v5300 = vsel %vm3599, %v5162, %v5265
        %v5301 = vsel %vm3599, %v5195, %v5267
        %v5302 = vsel %vm3599, %v5119, %v5277
        %v5303 = vlaneseq
        %v5304 = vshrl.u32 %v5303, 7
        %v5305 = vsub.s32 4, %v5304
        %v5306 = vrot.slane %v196, %v5305
        %v5307 = vsel %vm3599, %v5168, 0
        %v5309 = vsel %vm3599, %v5171, 0
        %v5311 = vsel %vm3599, %v5174, 0
        %v5313 = vsel %vm3599, %v5177, 0
        %v5315 = vsel %vm3599, %v5180, 0
        %v5317 = vsel %vm3599, %v5183, 0
        %v5319 = vsel %vm3599, %v5206, 0
        %5321 = vmatprep.subr.mxu0 0.0
        %5322 = vmatpush1.msra.mxu0 %v3325
        %5323 = vmatprep.subr.mxu0 0.0
        %5324 = vmatpush1.msra.mxu0 %v3326
        %5325 = vmatprep.subr.mxu0 0.0
        %5326 = vmatpush1.msra.mxu0 %v3327
        %5327 = vmatprep.subr.mxu0 0.0
        %5328 = vmatpush1.msra.mxu0 %v3328
        %5329 = vmatprep.subr.mxu0 0.0
        %5330 = vmatpush1.msra.mxu0 %v3329
        %5331 = vmatprep.subr.mxu0 0.0
        %5332 = vmatpush1.msra.mxu0 %v3330
        %5333 = vmatprep.subr.mxu0 0.0
        %5334 = vmatpush1.msra.mxu0 %v3331
        %5335 = vmatprep.subr.mxu0 0.0
        %5336 = vmatpush1.msra.mxu0 %v3332
        %5337 = vmatprep.subr.mxu0 0.0
        %5338 = vmatpush1.msra.mxu0 %v3333
        %5339 = vmatprep.subr.mxu0 0.0
        %5340 = vmatpush1.msra.mxu0 %v3334
        %5341 = vmatprep.subr.mxu0 0.0
        %5342 = vmatpush1.msra.mxu0 %v3335
        %5343 = vmatprep.subr.mxu0 0.0
        %5344 = vmatpush1.msra.mxu0 %v3336
        %5345 = vmatprep.subr.mxu0 0.0
        %5346 = vmatpush1.msra.mxu0 %v3337
        %5347 = vmatprep.subr.mxu0 0.0
        %5348 = vmatpush1.msra.mxu0 %v3338
        %5349 = vmatprep.subr.mxu0 0.0
        %5350 = vmatpush1.msra.mxu0 %v3339
        %5351 = vmatprep.subr.mxu0 0.0
        %5352 = vmatpush1.msra.mxu0 %v3340
        %5353 = vmatprep.subr.mxu0 0.0
        %5354 = vmatpush1.msra.mxu0 %v3341
        %5355 = vmatprep.subr.mxu0 0.0
        %5356 = vmatpush1.msra.mxu0 %v3342
        %5357 = vmatprep.subr.mxu0 0.0
        %5358 = vmatpush1.msra.mxu0 %v3343
        %5359 = vmatprep.subr.mxu0 0.0
        %5360 = vmatpush1.msra.mxu0 %v3344
        %5361 = vmatprep.subr.mxu0 0.0
        %5362 = vmatpush1.msra.mxu0 %v3345
        %5363 = vmatprep.subr.mxu0 0.0
        %5364 = vmatpush1.msra.mxu0 %v3346
        %5365 = vmatprep.subr.mxu0 0.0
        %5366 = vmatpush1.msra.mxu0 %v3347
        %5367 = vmatprep.subr.mxu0 0.0
        %5368 = vmatpush1.msra.mxu0 %v3348
        %5369 = vmatprep.subr.mxu0 0.0
        %5370 = vmatpush1.msra.mxu0 %v3349
        %5371 = vmatprep.subr.mxu0 0.0
        %5372 = vmatpush1.msra.mxu0 %v3350
        %5373 = vmatprep.subr.mxu0 0.0
        %5374 = vmatpush1.msra.mxu0 %v3351
        %5375 = vmatprep.subr.mxu0 0.0
        %5376 = vmatpush1.msra.mxu0 %v3352
        %5377 = vmatprep.subr.mxu0 0.0
        %5378 = vmatpush1.msra.mxu0 %v3353
        %5379 = vmatprep.subr.mxu0 0.0
        %5380 = vmatpush1.msra.mxu0 %v3354
        %5381 = vmatprep.subr.mxu0 0.0
        %5382 = vmatpush1.msra.mxu0 %v3355
        %5383 = vmatprep.subr.mxu0 0.0
        %5384 = vmatpush1.msra.mxu0 %v3356
        %5385 = vmatprep.mubr.f32.mxu0 %v5286
        %5386 = vmatmul.mubr.f32.gmra.mrb[0].mxu0 %v3600
        %v5387 = vpop.f32.mrb[0].mxu0
        %v5388 = vadd.f32 %v5306, %v5387
        %v5389 = vpop.f32.mrb[0].mxu0
        %5390 = vmatprep.mubr.f32.mxu0 %v5287
        %5391 = vmatmul.mubr.f32.gmra.mrb[0].mxu0 %v5279
        %v5392 = vpop.f32.mrb[0].mxu0
        %v5393 = vadd.f32 %v5306, %v5392
        %v5394 = vpop.f32.mrb[0].mxu0
        %5395 = vmatprep.mubr.f32.mxu0 %v5288
        %5396 = vmatmul.mubr.f32.gmra.mrb[0].mxu0 %v5280
        %v5397 = vpop.f32.mrb[0].mxu0
        %v5398 = vadd.f32 %v5306, %v5397
        %v5399 = vpop.f32.mrb[0].mxu0
        %5400 = vmatprep.mubr.f32.mxu0 %v5289
        %5401 = vmatmul.mubr.f32.gmra.mrb[0].mxu0 %v5281
        %v5402 = vpop.f32.mrb[0].mxu0
        %v5403 = vadd.f32 %v5306, %v5402
        %v5404 = vpop.f32.mrb[0].mxu0
        %5405 = vmatprep.mubr.f32.mxu0 %v5290
        %5406 = vmatmul.mubr.f32.gmra.mrb[0].mxu0 %v5282
        %v5407 = vpop.f32.mrb[0].mxu0
        %v5408 = vadd.f32 %v5306, %v5407
        %v5409 = vpop.f32.mrb[0].mxu0
        %5410 = vmatprep.mubr.f32.mxu0 %v5291
        %5411 = vmatmul.mubr.f32.gmra.mrb[0].mxu0 %v5283
        %v5412 = vpop.f32.mrb[0].mxu0
        %v5413 = vadd.f32 %v5306, %v5412
        %v5414 = vpop.f32.mrb[0].mxu0
        %5415 = vmatprep.mubr.f32.mxu0 %v5292
        %5416 = vmatmul.mubr.f32.gmra.mrb[0].mxu0 %v5284
        %v5417 = vpop.f32.mrb[0].mxu0
        %v5418 = vadd.f32 %v5306, %v5417
        %v5419 = vpop.f32.mrb[0].mxu0
        %5420 = vmatprep.mubr.f32.mxu0 %v5293
        %5421 = vmatmul.mubr.f32.gmra.mrb[0].mxu0 %v5285
        %v5422 = vpop.f32.mrb[0].mxu0
        %v5423 = vadd.f32 %v5306, %v5422
        %v5424 = vpop.f32.mrb[0].mxu0
        %5425 = vdwg.mxu0
        %5426 = vmatprep.subr.mxu0 0.0
        %5427 = vmatpush1.msra.mxu0 %v3357
        %5428 = vmatprep.subr.mxu0 0.0
        %5429 = vmatpush1.msra.mxu0 %v3358
        %5430 = vmatprep.subr.mxu0 0.0
        %5431 = vmatpush1.msra.mxu0 %v3359
        %5432 = vmatprep.subr.mxu0 0.0
        %5433 = vmatpush1.msra.mxu0 %v3360
        %5434 = vmatprep.subr.mxu0 0.0
        %5435 = vmatpush1.msra.mxu0 %v3361
        %5436 = vmatprep.subr.mxu0 0.0
        %5437 = vmatpush1.msra.mxu0 %v3362
        %5438 = vmatprep.subr.mxu0 0.0
        %5439 = vmatpush1.msra.mxu0 %v3363
        %5440 = vmatprep.subr.mxu0 0.0
        %5441 = vmatpush1.msra.mxu0 %v3364
        %5442 = vmatprep.subr.mxu0 0.0
        %5443 = vmatpush1.msra.mxu0 %v3365
        %5444 = vmatprep.subr.mxu0 0.0
        %5445 = vmatpush1.msra.mxu0 %v3366
        %5446 = vmatprep.subr.mxu0 0.0
        %5447 = vmatpush1.msra.mxu0 %v3367
        %5448 = vmatprep.subr.mxu0 0.0
        %5449 = vmatpush1.msra.mxu0 %v3368
        %5450 = vmatprep.subr.mxu0 0.0
        %5451 = vmatpush1.msra.mxu0 %v3369
        %5452 = vmatprep.subr.mxu0 0.0
        %5453 = vmatpush1.msra.mxu0 %v3370
        %5454 = vmatprep.subr.mxu0 0.0
        %5455 = vmatpush1.msra.mxu0 %v3371
        %5456 = vmatprep.subr.mxu0 0.0
        %5457 = vmatpush1.msra.mxu0 %v3372
        %5458 = vmatprep.subr.mxu0 0.0
        %5459 = vmatpush1.msra.mxu0 %v3373
        %5460 = vmatprep.subr.mxu0 0.0
        %5461 = vmatpush1.msra.mxu0 %v3374
        %5462 = vmatprep.subr.mxu0 0.0
        %5463 = vmatpush1.msra.mxu0 %v3375
        %5464 = vmatprep.subr.mxu0 0.0
        %5465 = vmatpush1.msra.mxu0 %v3376
        %5466 = vmatprep.subr.mxu0 0.0
        %5467 = vmatpush1.msra.mxu0 %v3377
        %5468 = vmatprep.subr.mxu0 0.0
        %5469 = vmatpush1.msra.mxu0 %v3378
        %5470 = vmatprep.subr.mxu0 0.0
        %5471 = vmatpush1.msra.mxu0 %v3379
        %5472 = vmatprep.subr.mxu0 0.0
        %5473 = vmatpush1.msra.mxu0 %v3380
        %5474 = vmatprep.subr.mxu0 0.0
        %5475 = vmatpush1.msra.mxu0 %v3381
        %5476 = vmatprep.subr.mxu0 0.0
        %5477 = vmatpush1.msra.mxu0 %v3382
        %5478 = vmatprep.subr.mxu0 0.0
        %5479 = vmatpush1.msra.mxu0 %v3383
        %5480 = vmatprep.subr.mxu0 0.0
        %5481 = vmatpush1.msra.mxu0 %v3384
        %5482 = vmatprep.subr.mxu0 0.0
        %5483 = vmatpush1.msra.mxu0 %v3385
        %5484 = vmatprep.subr.mxu0 0.0
        %5485 = vmatpush1.msra.mxu0 %v3386
        %5486 = vmatprep.subr.mxu0 0.0
        %5487 = vmatpush1.msra.mxu0 %v3387
        %5488 = vmatprep.subr.mxu0 0.0
        %5489 = vmatpush1.msra.mxu0 %v3388
        %5490 = vmatprep.mubr.f32.mxu0 %v5280
        %5491 = vmatmul.mubr.f32.gmra.mrb[0].mxu0 %v5294
        %v5492 = vpop.f32.mrb[0].mxu0
        %v5493 = vadd.f32 %v5388, %v5492
        %v5494 = vpop.f32.mrb[0].mxu0
        %5495 = vmatprep.mubr.f32.mxu0 %v5281
        %5496 = vmatmul.mubr.f32.gmra.mrb[0].mxu0 %v5295
        %v5497 = vpop.f32.mrb[0].mxu0
        %v5498 = vadd.f32 %v5393, %v5497
        %v5499 = vpop.f32.mrb[0].mxu0
        %5500 = vmatprep.mubr.f32.mxu0 %v5282
        %5501 = vmatmul.mubr.f32.gmra.mrb[0].mxu0 %v5296
        %v5502 = vpop.f32.mrb[0].mxu0
        %v5503 = vadd.f32 %v5398, %v5502
        %v5504 = vpop.f32.mrb[0].mxu0
        %5505 = vmatprep.mubr.f32.mxu0 %v5283
        %5506 = vmatmul.mubr.f32.gmra.mrb[0].mxu0 %v5297
        %v5507 = vpop.f32.mrb[0].mxu0
        %v5508 = vadd.f32 %v5403, %v5507
        %v5509 = vpop.f32.mrb[0].mxu0
        %5510 = vmatprep.mubr.f32.mxu0 %v5284
        %5511 = vmatmul.mubr.f32.gmra.mrb[0].mxu0 %v5298
        %v5512 = vpop.f32.mrb[0].mxu0
        %v5513 = vadd.f32 %v5408, %v5512
        %v5514 = vpop.f32.mrb[0].mxu0
        %5515 = vmatprep.mubr.f32.mxu0 %v5285
        %5516 = vmatmul.mubr.f32.gmra.mrb[0].mxu0 %v5299
        %v5517 = vpop.f32.mrb[0].mxu0
        %v5518 = vadd.f32 %v5413, %v5517
        %v5519 = vpop.f32.mrb[0].mxu0
        %5520 = vmatprep.mubr.f32.mxu0 %v5302
        %5521 = vmatmul.mubr.f32.gmra.mrb[0].mxu0 %v5300
        %v5522 = vpop.f32.mrb[0].mxu0
        %v5523 = vadd.f32 %v5418, %v5522
        %v5524 = vpop.f32.mrb[0].mxu0
        %5525 = vmatprep.mubr.f32.mxu0 %v3600
        %5526 = vmatmul.mubr.f32.gmra.mrb[0].mxu0 %v5301
        %v5527 = vpop.f32.mrb[0].mxu0
        %v5528 = vadd.f32 %v5423, %v5527
        %v5529 = vpop.f32.mrb[0].mxu0
        %5530 = vdwg.mxu0
        %5531 = vmatprep.subr.mxu0 0.0
        %5532 = vmatpush1.msra.mxu0 %v3389
        %5533 = vmatprep.subr.mxu0 0.0
        %5534 = vmatpush1.msra.mxu0 %v3390
        %5535 = vmatprep.subr.mxu0 0.0
        %5536 = vmatpush1.msra.mxu0 %v3391
        %5537 = vmatprep.subr.mxu0 0.0
        %5538 = vmatpush1.msra.mxu0 %v3392
        %5539 = vmatprep.subr.mxu0 0.0
        %5540 = vmatpush1.msra.mxu0 %v3393
        %5541 = vmatprep.subr.mxu0 0.0
        %5542 = vmatpush1.msra.mxu0 %v3394
        %5543 = vmatprep.subr.mxu0 0.0
        %5544 = vmatpush1.msra.mxu0 %v3395
        %5545 = vmatprep.subr.mxu0 0.0
        %5546 = vmatpush1.msra.mxu0 %v3396
        %5547 = vmatprep.subr.mxu0 0.0
        %5548 = vmatpush1.msra.mxu0 0.0
        %5549 = vmatprep.subr.mxu0 0.0
        %5550 = vmatpush1.msra.mxu0 0.0
        %5551 = vmatprep.subr.mxu0 0.0
        %5552 = vmatpush1.msra.mxu0 0.0
        %5553 = vmatprep.subr.mxu0 0.0
        %5554 = vmatpush1.msra.mxu0 0.0
        %5555 = vmatprep.subr.mxu0 0.0
        %5556 = vmatpush1.msra.mxu0 0.0
        %5557 = vmatprep.subr.mxu0 0.0
        %5558 = vmatpush1.msra.mxu0 0.0
        %5559 = vmatprep.subr.mxu0 0.0
        %5560 = vmatpush1.msra.mxu0 0.0
        %5561 = vmatprep.subr.mxu0 0.0
        %5562 = vmatpush1.msra.mxu0 0.0
        %5563 = vmatprep.subr.mxu0 0.0
        %5564 = vmatpush1.msra.mxu0 0.0
        %5565 = vmatprep.subr.mxu0 0.0
        %5566 = vmatpush1.msra.mxu0 0.0
        %5567 = vmatprep.subr.mxu0 0.0
        %5568 = vmatpush1.msra.mxu0 0.0
        %5569 = vmatprep.subr.mxu0 0.0
        %5570 = vmatpush1.msra.mxu0 0.0
        %5571 = vmatprep.subr.mxu0 0.0
        %5572 = vmatpush1.msra.mxu0 0.0
        %5573 = vmatprep.subr.mxu0 0.0
        %5574 = vmatpush1.msra.mxu0 0.0
        %5575 = vmatprep.subr.mxu0 0.0
        %5576 = vmatpush1.msra.mxu0 0.0
        %5577 = vmatprep.subr.mxu0 0.0
        %5578 = vmatpush1.msra.mxu0 0.0
        %5579 = vmatprep.subr.mxu0 0.0
        %5580 = vmatpush1.msra.mxu0 0.0
        %5581 = vmatprep.subr.mxu0 0.0
        %5582 = vmatpush1.msra.mxu0 0.0
        %5583 = vmatprep.subr.mxu0 0.0
        %5584 = vmatpush1.msra.mxu0 0.0
        %5585 = vmatprep.subr.mxu0 0.0
        %5586 = vmatpush1.msra.mxu0 0.0
        %5587 = vmatprep.subr.mxu0 0.0
        %5588 = vmatpush1.msra.mxu0 0.0
        %5589 = vmatprep.subr.mxu0 0.0
        %5590 = vmatpush1.msra.mxu0 0.0
        %5591 = vmatprep.subr.mxu0 0.0
        %5592 = vmatpush1.msra.mxu0 0.0
        %5593 = vmatprep.subr.mxu0 0.0
        %5594 = vmatpush1.msra.mxu0 0.0
        %5595 = vmatprep.mubr.f32.mxu0 0.0
        %5596 = vmatmul.mubr.f32.gmra.mrb[0].mxu0 %v5307
        %v5597 = vpop.f32.mrb[0].mxu0
        %v5598 = vadd.f32 %v5493, %v5597
        %v5599 = vpop.f32.mrb[0].mxu0
        %5600 = vmatprep.mubr.f32.mxu0 0.0
        %5601 = vmatmul.mubr.f32.gmra.mrb[0].mxu0 %v5309
        %v5602 = vpop.f32.mrb[0].mxu0
        %v5603 = vadd.f32 %v5498, %v5602
        %v5604 = vpop.f32.mrb[0].mxu0
        %5605 = vmatprep.mubr.f32.mxu0 0.0
        %5606 = vmatmul.mubr.f32.gmra.mrb[0].mxu0 %v5311
        %v5607 = vpop.f32.mrb[0].mxu0
        %v5608 = vadd.f32 %v5503, %v5607
        %v5609 = vpop.f32.mrb[0].mxu0
        %5610 = vmatprep.mubr.f32.mxu0 0.0
        %5611 = vmatmul.mubr.f32.gmra.mrb[0].mxu0 %v5313
        %v5612 = vpop.f32.mrb[0].mxu0
        %v5613 = vadd.f32 %v5508, %v5612
        %v5614 = vpop.f32.mrb[0].mxu0
        %5615 = vmatprep.mubr.f32.mxu0 0.0
        %5616 = vmatmul.mubr.f32.gmra.mrb[0].mxu0 %v5315
        %v5617 = vpop.f32.mrb[0].mxu0
        %v5618 = vadd.f32 %v5513, %v5617
        %v5619 = vpop.f32.mrb[0].mxu0
        %5620 = vmatprep.mubr.f32.mxu0 0.0
        %5621 = vmatmul.mubr.f32.gmra.mrb[0].mxu0 %v5317
        %v5622 = vpop.f32.mrb[0].mxu0
        %v5623 = vadd.f32 %v5518, %v5622
        %v5624 = vpop.f32.mrb[0].mxu0
        %5625 = vmatprep.mubr.f32.mxu0 0.0
        %5626 = vmatmul.mubr.f32.gmra.mrb[0].mxu0 %v5319
        %v5627 = vpop.f32.mrb[0].mxu0
        %v5628 = vadd.f32 %v5523, %v5627
        %v5629 = vpop.f32.mrb[0].mxu0
        %5630 = vmatprep.mubr.f32.mxu0 0.0
        %5631 = vmatmul.mubr.f32.gmra.mrb[0].mxu0 %v3643
        %v5632 = vpop.f32.mrb[0].mxu0
        %v5633 = vadd.f32 %v5528, %v5632
        %v5634 = vpop.f32.mrb[0].mxu0
        %5635 = vdwg.mxu0
        %v5636 = vadd.f32 %v5598, %v4524
        %v5637 = vadd.f32 %v5603, %v4525
        %v5638 = vadd.f32 %v5608, %v4526
        %v5639 = vadd.f32 %v5613, %v4527
        %v5640 = vadd.f32 %v5618, %v4528
        %v5641 = vadd.f32 %v5623, %v4529
        %v5642 = vadd.f32 %v5628, %v4530
        %v5643 = vadd.f32 %v5633, %v4531
        %v5644 = vmax.f32 %v5636, 0.0
        %v5645 = vmax.f32 %v5637, 0.0
        %v5646 = vmax.f32 %v5638, 0.0
        %v5647 = vmax.f32 %v5639, 0.0
        %v5648 = vmax.f32 %v5640, 0.0
        %v5649 = vmax.f32 %v5641, 0.0
        %v5650 = vmax.f32 %v5642, 0.0
        %v5651 = vmax.f32 %v5643, 0.0
        %5652 = vst.msk [vmem:[%s190] sm:$0xff] %vm3599, %v5644
        %5653 = vst.msk [vmem:[%s190 + $0x8] sm:$0xff] %vm3599, %v5645
        %5654 = vst.msk [vmem:[%s190 + $0x10] sm:$0xff] %vm3599, %v5646
        %5655 = vst.msk [vmem:[%s190 + $0x18] sm:$0xff] %vm3599, %v5647
        %5656 = vst.msk [vmem:[%s190 + $0x20] sm:$0xff] %vm3599, %v5648
        %5657 = vst.msk [vmem:[%s190 + $0x28] sm:$0xff] %vm3599, %v5649
        %5658 = vst.msk [vmem:[%s190 + $0x30] sm:$0xff] %vm3599, %v5650
        %5659 = vst.msk [vmem:[%s190 + $0x38] sm:$0xff] %vm3599, %v5651
        %s5660 = sand.u32 %s115, 1
        %s5661 = scalar_lea.sflag [#allocation3], %s5660
        %s5662 = sand.u32 %s115, 1
        %s5663 = smul.addr %s5662, 64
        %s5664 = scalar_lea.vmem [#allocation2], %s5663
        // Predicated region
        $region37: #{new_model_forward.1} parent=35 // pred_check
          %p5665 = pneg %p125
        $region38: #{new_model_forward.1} parent=35 // pred_check_branch
          %5667 = sbr.rel (%p5665) target = $region40
        $region39: #{new_model_forward.1} parent=35 // pred_region
          %s5669 = ssub.s32 1024, 1024
          %5670 = vsyncadd %s5661, %s5669
          %s5671 = smul.addr %s18, 8
          %s5672 = smul.addr %s5671, 128
          %s5673 = scalar_lea.hbm %s4, %s5672
          %s5674 = sshll.u32 %s5664, 4
          %s5675 = int_to_ptr.vmem [resolvable:$true] %s5674
          %5680 = dma.vmem_to_hbm [thread:$0]  %s5675, 1024, %s5673, %s5661, 128, 128, 8
        $region40: #{new_model_forward.1} parent=35 // pred_fallthru
          _
      $region36: #{new_model_forward.1} parent=5 // pred_fallthru
        _
      %p5681 = scmp.le.s32.totalorder 2, %s13
      // Predicated region
      $region41: #{new_model_forward.1} parent=5 // pred_check
        %p5682 = pneg %p5681
      $region42: #{new_model_forward.1} parent=5 // pred_check_branch
        %5684 = sbr.rel (%p5682) target = $region44
      $region43: #{new_model_forward.1} parent=5 // pred_region
        %s5685 = ssub.s32 %s13, 2
        // Predicated region
        $region45: #{new_model_forward.1} parent=43 // pred_check
          %p5686 = pneg %p131
        $region46: #{new_model_forward.1} parent=43 // pred_check_branch
          %5688 = sbr.rel (%p5686) target = $region48
        $region47: #{new_model_forward.1} parent=43 // pred_region
          %s5689 = sand.u32 %s116, 1
          %s5690 = scalar_lea.sflag [#allocation3], %s5689
          %s5691 = sand.u32 %s116, 1
          %s5692 = smul.addr %s5691, 64
          %s5693 = scalar_lea.vmem [#allocation2], %s5692
          %5694 = dma.done %s5690, 1024
        $region48: #{new_model_forward.1} parent=43 // pred_fallthru
          _
      $region44: #{new_model_forward.1} parent=5 // pred_fallthru
        _
    $region6: #{new_model_forward.1} parent=1 // loop_footer
      %s17 = sadd.s32 1, %s13
    $region7: #{new_model_forward.1} parent=1 // loop_footer_branch
      %12 = sbr.rel target = $region3
    $region8: #{new_model_forward.1} parent=1 // loop_exit
      _
    %5695 = vsyncpa [#allocation3], 1
    %s5696 = scalar_lea.sflag [#allocation3], 1
    %5697 = vsyncpa %s5696, 1

</llo_original>
